<compile_context>
chip_gen: v7x
topology: tpu7x:2x2x1
jax: 0.10.0
libtpu: 0.0.40
codegen_flags: <defaults>
</compile_context>

<pallas_src>
import numpy as np
import jax
import jax.numpy as jnp
from jax.experimental import pallas as pl
from jax.experimental.pallas import tpu as pltpu

IN_DIM = 5
HID = 50
OUT_DIM = 5
N_LAYERS = 7          # 6 hidden + 1 output
IN_PAD = 8            # input features padded 5 -> 8 (last dim == full array dim)
OUT_PAD = 8           # output features padded 5 -> 8
HID_PAD = 128         # hidden width padded 50 -> 128 (lane-dense matmuls)

_HIGHEST = jax.lax.Precision.HIGHEST


def _round_up(n, m):
    return ((n + m - 1) // m) * m


def _cdiv(a, b):
    return -(-a // b)


def _mlp_kernel(x_ref, w1_ref, wmid_ref, b_ref, w7_ref, b7_ref, o_ref):
    # x_ref    : (bt, 8)          narrow input batch tile
    # w1_ref   : (8, 128)         fc1 weight, zero-padded (5->50)
    # wmid_ref : (5, 128, 128)    fc2..fc6 weights, zero-padded (50->50)
    # b_ref    : (6, 1, 128)      fc1..fc6 biases, zero-padded
    # w7_ref   : (128, 8)         fc7 weight, zero-padded (50->5)
    # b7_ref   : (1, 8)           fc7 bias, zero-padded
    # o_ref    : (bt, 8)          narrow output tile
    h = jnp.dot(x_ref[...], w1_ref[...],
                preferred_element_type=jnp.float32,
                precision=_HIGHEST) + b_ref[0]
    h = jnp.maximum(h, 0.0)
    for l in range(N_LAYERS - 2):            # fc2 .. fc6
        h = jnp.dot(h, wmid_ref[l],
                    preferred_element_type=jnp.float32,
                    precision=_HIGHEST) + b_ref[l + 1]
        h = jnp.maximum(h, 0.0)
    out = jnp.dot(h, w7_ref[...],            # fc7, no activation
                  preferred_element_type=jnp.float32,
                  precision=_HIGHEST) + b7_ref[...]
    o_ref[...] = out.astype(o_ref.dtype)


def pack_params(params):
    """One-time host-side packing of 7 (W [in,out], b [1,out]) pairs.

    Done in numpy at init so the forward path carries no scatter / pad ops.
    """
    w1 = np.zeros((IN_PAD, HID_PAD), np.float32)
    w1[:IN_DIM, :HID] = np.asarray(params[0][0], np.float32)

    wmid = np.zeros((N_LAYERS - 2, HID_PAD, HID_PAD), np.float32)
    for l in range(N_LAYERS - 2):
        wmid[l, :HID, :HID] = np.asarray(params[l + 1][0], np.float32)

    b16 = np.zeros((N_LAYERS - 1, 1, HID_PAD), np.float32)
    for l in range(N_LAYERS - 1):
        b16[l, 0, :HID] = np.asarray(params[l][1], np.float32).reshape(-1)

    w7 = np.zeros((HID_PAD, OUT_PAD), np.float32)
    w7[:HID, :OUT_DIM] = np.asarray(params[-1][0], np.float32)

    b7 = np.zeros((1, OUT_PAD), np.float32)
    b7[0, :OUT_DIM] = np.asarray(params[-1][1], np.float32).reshape(-1)

    return (jnp.asarray(w1), jnp.asarray(wmid), jnp.asarray(b16),
            jnp.asarray(w7), jnp.asarray(b7))


def _choose_tiling(B, batch_tile):
    """Pick an 8-aligned batch tile.

    - at most `batch_tile` rows per grid step (amortizes ~600-cycle step cost),
    - padding overshoot bounded to one 8-row round-up (never ~2x work),
    - for large batches keep >= 2 grid steps so v7x megacore can shard the
      "parallel" batch axis across its two TensorCores.
    """
    if B > batch_tile:
        n_steps = _cdiv(B, batch_tile)
    elif B >= 1024:
        n_steps = 2
    else:
        n_steps = 1
    bt = _round_up(max(_cdiv(B, n_steps), 8), 8)
    B_pad = _round_up(B, bt)
    return bt, B_pad


def torchnet_forward(x, packed, *, batch_tile=1024):
    """x: [B, 5] float32; packed: output of pack_params()."""
    w1, wmid, b16, w7, b7 = packed
    B, F = x.shape
    assert F == IN_DIM

    bt, B_pad = _choose_tiling(B, batch_tile)
    grid = (B_pad // bt,)

    # Narrow pad only: 5 -> 8 features, B -> B_pad rows (~32 B/row of HBM).
    x_p = jnp.zeros((B_pad, IN_PAD), jnp.float32)
    x_p = x_p.at[:B, :IN_DIM].set(x.astype(jnp.float32))

    in_specs = [
        pl.BlockSpec((bt, IN_PAD), lambda i: (i, 0)),
        # Weight/bias blocks have constant index_maps -> loaded once, resident.
        pl.BlockSpec((IN_PAD, HID_PAD), lambda i: (0, 0)),
        pl.BlockSpec((N_LAYERS - 2, HID_PAD, HID_PAD), lambda i: (0, 0, 0)),
        pl.BlockSpec((N_LAYERS - 1, 1, HID_PAD), lambda i: (0, 0, 0)),
        pl.BlockSpec((HID_PAD, OUT_PAD), lambda i: (0, 0)),
        pl.BlockSpec((1, OUT_PAD), lambda i: (0, 0)),
    ]
    out_spec = pl.BlockSpec((bt, OUT_PAD), lambda i: (i, 0))

    out_padded = pl.pallas_call(
        _mlp_kernel,
        out_shape=jax.ShapeDtypeStruct((B_pad, OUT_PAD), jnp.float32),
        grid_spec=pltpu.PrefetchScalarGridSpec(
            num_scalar_prefetch=0,
            grid=grid,
            in_specs=in_specs,
            out_specs=out_spec,
        ),
        compiler_params=pltpu.CompilerParams(
            dimension_semantics=("parallel",)),
    )(x_p, w1, wmid, b16, w7, b7)

    # Tiny slice back to the real batch / output width.
    return out_padded[:B, :OUT_DIM]


def make_params(key):
    """Deterministic synthetic parameters matching TorchNet layer shapes.

    Returns list of (W [in,out], b [1,out]) for layers:
      fc1: 5->50, fc2..fc6: 50->50, fc7: 50->5
    """
    dims = [(IN_DIM, HID)] + [(HID, HID)] * 5 + [(HID, OUT_DIM)]
    params = []
    for (d_in, d_out) in dims:
        key, kw, kb = jax.random.split(key, 3)
        scale = 1.0 / jnp.sqrt(jnp.float32(d_in))
        w = jax.random.uniform(kw, (d_in, d_out), jnp.float32, -scale, scale)
        b = jax.random.uniform(kb, (1, d_out), jnp.float32, -scale, scale)
        params.append((w, b))
    return params


def reference_forward(x, params):
    h = x
    for i, (w, b) in enumerate(params):
        h = jnp.dot(h, w, precision=_HIGHEST) + b
        if i < len(params) - 1:
            h = jnp.maximum(h, 0.0)
    return h


if __name__ == "__main__":
    key = jax.random.PRNGKey(0)
    k_params, k_x = jax.random.split(key)

    params = make_params(k_params)
    packed = pack_params(params)       # one-time packing, outside forward path

    # Small demo batch (not a multiple of the tile -> exercises the pad path).
    B = 12
    x = jax.random.normal(k_x, (B, IN_DIM), dtype=jnp.float32)

    out = torchnet_forward(x, packed, batch_tile=1024)
    out = jax.block_until_ready(out)

    ref = reference_forward(x, params)
    assert out.shape == (B, OUT_DIM)
    assert jnp.allclose(out, ref, atol=1e-5, rtol=1e-5), "mismatch vs reference"

    print("KERNEL_OK")
</pallas_src>

<mosaic_0001>
module attributes {stable_mosaic.version = 11 : i64} {
  func.func @_mlp_kernel(%arg0: i32, %arg1: memref<16x8xf32, #tpu.memory_space<vmem>>, %arg2: memref<8x128xf32, #tpu.memory_space<vmem>>, %arg3: memref<5x128x128xf32, #tpu.memory_space<vmem>>, %arg4: memref<6x1x128xf32, #tpu.memory_space<vmem>>, %arg5: memref<128x8xf32, #tpu.memory_space<vmem>>, %arg6: memref<1x8xf32, #tpu.memory_space<vmem>>, %arg7: memref<16x8xf32, #tpu.memory_space<vmem>>) attributes {dimension_semantics = [#tpu.dimension_semantics<parallel>], iteration_bounds = array<i64: 1>, scalar_prefetch = 0 : i64, scratch_operands = 0 : i64, tpu.core_type = #tpu.core_type<tc>, window_params = [{transform_indices = @transform_0, window_bounds = array<i64: 16, 8>}, {pipeline_mode = #tpu.pipeline_mode<synchronous>, transform_indices = @transform_1, window_bounds = array<i64: 8, 128>}, {pipeline_mode = #tpu.pipeline_mode<synchronous>, transform_indices = @transform_2, window_bounds = array<i64: 5, 128, 128>}, {pipeline_mode = #tpu.pipeline_mode<synchronous>, transform_indices = @transform_3, window_bounds = array<i64: 6, 1, 128>}, {pipeline_mode = #tpu.pipeline_mode<synchronous>, transform_indices = @transform_4, window_bounds = array<i64: 128, 8>}, {pipeline_mode = #tpu.pipeline_mode<synchronous>, transform_indices = @transform_5, window_bounds = array<i64: 1, 8>}, {transform_indices = @transform_6, window_bounds = array<i64: 16, 8>}]} {
    %c0 = arith.constant 0 : index
    %c0_0 = arith.constant 0 : index
    %0 = vector.load %arg1[%c0, %c0_0] : memref<16x8xf32, #tpu.memory_space<vmem>>, vector<16x8xf32>
    %c0_1 = arith.constant 0 : index
    %c0_2 = arith.constant 0 : index
    %1 = vector.load %arg2[%c0_1, %c0_2] : memref<8x128xf32, #tpu.memory_space<vmem>>, vector<8x128xf32>
    %cst = arith.constant dense<0.000000e+00> : vector<16x128xf32>
    %2 = tpu.matmul %0, %1, %cst {dimension_numbers = #tpu.dot_dimension_numbers<[1], [0], [0], [1], [0, 0, 1, 1], [], []>, precision = #tpu.contract_precision<fp32>} : vector<16x8xf32>, vector<8x128xf32>, vector<16x128xf32> -> vector<16x128xf32>
    %c0_3 = arith.constant 0 : index
    %c0_4 = arith.constant 0 : index
    %c0_5 = arith.constant 0 : index
    %3 = vector.load %arg4[%c0_3, %c0_4, %c0_5] : memref<6x1x128xf32, #tpu.memory_space<vmem>>, vector<1x1x128xf32>
    %4 = vector.shape_cast %3 : vector<1x1x128xf32> to vector<1x128xf32>
    %5 = vector.broadcast %4 : vector<1x128xf32> to vector<16x128xf32>
    %6 = arith.addf %2, %5 : vector<16x128xf32>
    %cst_6 = arith.constant 0.000000e+00 : f32
    %7 = vector.broadcast %cst_6 : f32 to vector<16x128xf32>
    %8 = arith.maximumf %6, %7 : vector<16x128xf32>
    %c0_7 = arith.constant 0 : index
    %c0_8 = arith.constant 0 : index
    %c0_9 = arith.constant 0 : index
    %9 = vector.load %arg3[%c0_7, %c0_8, %c0_9] : memref<5x128x128xf32, #tpu.memory_space<vmem>>, vector<1x128x128xf32>
    %10 = vector.shape_cast %9 : vector<1x128x128xf32> to vector<128x128xf32>
    %cst_10 = arith.constant dense<0.000000e+00> : vector<16x128xf32>
    %11 = tpu.matmul %8, %10, %cst_10 {dimension_numbers = #tpu.dot_dimension_numbers<[1], [0], [0], [1], [0, 0, 1, 1], [], []>, precision = #tpu.contract_precision<fp32>} : vector<16x128xf32>, vector<128x128xf32>, vector<16x128xf32> -> vector<16x128xf32>
    %c1 = arith.constant 1 : index
    %c0_11 = arith.constant 0 : index
    %c0_12 = arith.constant 0 : index
    %12 = vector.load %arg4[%c1, %c0_11, %c0_12] : memref<6x1x128xf32, #tpu.memory_space<vmem>>, vector<1x1x128xf32>
    %13 = vector.shape_cast %12 : vector<1x1x128xf32> to vector<1x128xf32>
    %14 = vector.broadcast %13 : vector<1x128xf32> to vector<16x128xf32>
    %15 = arith.addf %11, %14 : vector<16x128xf32>
    %cst_13 = arith.constant 0.000000e+00 : f32
    %16 = vector.broadcast %cst_13 : f32 to vector<16x128xf32>
    %17 = arith.maximumf %15, %16 : vector<16x128xf32>
    %c1_14 = arith.constant 1 : index
    %c0_15 = arith.constant 0 : index
    %c0_16 = arith.constant 0 : index
    %18 = vector.load %arg3[%c1_14, %c0_15, %c0_16] : memref<5x128x128xf32, #tpu.memory_space<vmem>>, vector<1x128x128xf32>
    %19 = vector.shape_cast %18 : vector<1x128x128xf32> to vector<128x128xf32>
    %cst_17 = arith.constant dense<0.000000e+00> : vector<16x128xf32>
    %20 = tpu.matmul %17, %19, %cst_17 {dimension_numbers = #tpu.dot_dimension_numbers<[1], [0], [0], [1], [0, 0, 1, 1], [], []>, precision = #tpu.contract_precision<fp32>} : vector<16x128xf32>, vector<128x128xf32>, vector<16x128xf32> -> vector<16x128xf32>
    %c2 = arith.constant 2 : index
    %c0_18 = arith.constant 0 : index
    %c0_19 = arith.constant 0 : index
    %21 = vector.load %arg4[%c2, %c0_18, %c0_19] : memref<6x1x128xf32, #tpu.memory_space<vmem>>, vector<1x1x128xf32>
    %22 = vector.shape_cast %21 : vector<1x1x128xf32> to vector<1x128xf32>
    %23 = vector.broadcast %22 : vector<1x128xf32> to vector<16x128xf32>
    %24 = arith.addf %20, %23 : vector<16x128xf32>
    %cst_20 = arith.constant 0.000000e+00 : f32
    %25 = vector.broadcast %cst_20 : f32 to vector<16x128xf32>
    %26 = arith.maximumf %24, %25 : vector<16x128xf32>
    %c2_21 = arith.constant 2 : index
    %c0_22 = arith.constant 0 : index
    %c0_23 = arith.constant 0 : index
    %27 = vector.load %arg3[%c2_21, %c0_22, %c0_23] : memref<5x128x128xf32, #tpu.memory_space<vmem>>, vector<1x128x128xf32>
    %28 = vector.shape_cast %27 : vector<1x128x128xf32> to vector<128x128xf32>
    %cst_24 = arith.constant dense<0.000000e+00> : vector<16x128xf32>
    %29 = tpu.matmul %26, %28, %cst_24 {dimension_numbers = #tpu.dot_dimension_numbers<[1], [0], [0], [1], [0, 0, 1, 1], [], []>, precision = #tpu.contract_precision<fp32>} : vector<16x128xf32>, vector<128x128xf32>, vector<16x128xf32> -> vector<16x128xf32>
    %c3 = arith.constant 3 : index
    %c0_25 = arith.constant 0 : index
    %c0_26 = arith.constant 0 : index
    %30 = vector.load %arg4[%c3, %c0_25, %c0_26] : memref<6x1x128xf32, #tpu.memory_space<vmem>>, vector<1x1x128xf32>
    %31 = vector.shape_cast %30 : vector<1x1x128xf32> to vector<1x128xf32>
    %32 = vector.broadcast %31 : vector<1x128xf32> to vector<16x128xf32>
    %33 = arith.addf %29, %32 : vector<16x128xf32>
    %cst_27 = arith.constant 0.000000e+00 : f32
    %34 = vector.broadcast %cst_27 : f32 to vector<16x128xf32>
    %35 = arith.maximumf %33, %34 : vector<16x128xf32>
    %c3_28 = arith.constant 3 : index
    %c0_29 = arith.constant 0 : index
    %c0_30 = arith.constant 0 : index
    %36 = vector.load %arg3[%c3_28, %c0_29, %c0_30] : memref<5x128x128xf32, #tpu.memory_space<vmem>>, vector<1x128x128xf32>
    %37 = vector.shape_cast %36 : vector<1x128x128xf32> to vector<128x128xf32>
    %cst_31 = arith.constant dense<0.000000e+00> : vector<16x128xf32>
    %38 = tpu.matmul %35, %37, %cst_31 {dimension_numbers = #tpu.dot_dimension_numbers<[1], [0], [0], [1], [0, 0, 1, 1], [], []>, precision = #tpu.contract_precision<fp32>} : vector<16x128xf32>, vector<128x128xf32>, vector<16x128xf32> -> vector<16x128xf32>
    %c4 = arith.constant 4 : index
    %c0_32 = arith.constant 0 : index
    %c0_33 = arith.constant 0 : index
    %39 = vector.load %arg4[%c4, %c0_32, %c0_33] : memref<6x1x128xf32, #tpu.memory_space<vmem>>, vector<1x1x128xf32>
    %40 = vector.shape_cast %39 : vector<1x1x128xf32> to vector<1x128xf32>
    %41 = vector.broadcast %40 : vector<1x128xf32> to vector<16x128xf32>
    %42 = arith.addf %38, %41 : vector<16x128xf32>
    %cst_34 = arith.constant 0.000000e+00 : f32
    %43 = vector.broadcast %cst_34 : f32 to vector<16x128xf32>
    %44 = arith.maximumf %42, %43 : vector<16x128xf32>
    %c4_35 = arith.constant 4 : index
    %c0_36 = arith.constant 0 : index
    %c0_37 = arith.constant 0 : index
    %45 = vector.load %arg3[%c4_35, %c0_36, %c0_37] : memref<5x128x128xf32, #tpu.memory_space<vmem>>, vector<1x128x128xf32>
    %46 = vector.shape_cast %45 : vector<1x128x128xf32> to vector<128x128xf32>
    %cst_38 = arith.constant dense<0.000000e+00> : vector<16x128xf32>
    %47 = tpu.matmul %44, %46, %cst_38 {dimension_numbers = #tpu.dot_dimension_numbers<[1], [0], [0], [1], [0, 0, 1, 1], [], []>, precision = #tpu.contract_precision<fp32>} : vector<16x128xf32>, vector<128x128xf32>, vector<16x128xf32> -> vector<16x128xf32>
    %c5 = arith.constant 5 : index
    %c0_39 = arith.constant 0 : index
    %c0_40 = arith.constant 0 : index
    %48 = vector.load %arg4[%c5, %c0_39, %c0_40] : memref<6x1x128xf32, #tpu.memory_space<vmem>>, vector<1x1x128xf32>
    %49 = vector.shape_cast %48 : vector<1x1x128xf32> to vector<1x128xf32>
    %50 = vector.broadcast %49 : vector<1x128xf32> to vector<16x128xf32>
    %51 = arith.addf %47, %50 : vector<16x128xf32>
    %cst_41 = arith.constant 0.000000e+00 : f32
    %52 = vector.broadcast %cst_41 : f32 to vector<16x128xf32>
    %53 = arith.maximumf %51, %52 : vector<16x128xf32>
    %c0_42 = arith.constant 0 : index
    %c0_43 = arith.constant 0 : index
    %54 = vector.load %arg5[%c0_42, %c0_43] : memref<128x8xf32, #tpu.memory_space<vmem>>, vector<128x8xf32>
    %cst_44 = arith.constant dense<0.000000e+00> : vector<16x8xf32>
    %55 = tpu.matmul %53, %54, %cst_44 {dimension_numbers = #tpu.dot_dimension_numbers<[1], [0], [0], [1], [0, 0, 1, 1], [], []>, precision = #tpu.contract_precision<fp32>} : vector<16x128xf32>, vector<128x8xf32>, vector<16x8xf32> -> vector<16x8xf32>
    %c0_45 = arith.constant 0 : index
    %c0_46 = arith.constant 0 : index
    %56 = vector.load %arg6[%c0_45, %c0_46] : memref<1x8xf32, #tpu.memory_space<vmem>>, vector<1x8xf32>
    %57 = vector.broadcast %56 : vector<1x8xf32> to vector<16x8xf32>
    %58 = arith.addf %55, %57 : vector<16x8xf32>
    %c0_47 = arith.constant 0 : index
    %c0_48 = arith.constant 0 : index
    %59 = vector.load %arg7[%c0_47, %c0_48] : memref<16x8xf32, #tpu.memory_space<vmem>>, vector<16x8xf32>
    tpu.vector_store %arg7[%c0_47, %c0_48], %58 {strides = array<i32>} : memref<16x8xf32, #tpu.memory_space<vmem>>, vector<16x8xf32>,
    return
  }
  func.func @transform_0(%arg0: i32) -> (i32, i32) {
    %c0_i32 = arith.constant 0 : i32
    %c0_i32_0 = arith.constant 0 : i32
    return %arg0, %c0_i32 : i32, i32
  }
  func.func @transform_1(%arg0: i32) -> (i32, i32) {
    %c0_i32 = arith.constant 0 : i32
    %c0_i32_0 = arith.constant 0 : i32
    %c0_i32_1 = arith.constant 0 : i32
    return %c0_i32, %c0_i32_0 : i32, i32
  }
  func.func @transform_2(%arg0: i32) -> (i32, i32, i32) {
    %c0_i32 = arith.constant 0 : i32
    %c0_i32_0 = arith.constant 0 : i32
    %c0_i32_1 = arith.constant 0 : i32
    %c0_i32_2 = arith.constant 0 : i32
    return %c0_i32, %c0_i32_0, %c0_i32_1 : i32, i32, i32
  }
  func.func @transform_3(%arg0: i32) -> (i32, i32, i32) {
    %c0_i32 = arith.constant 0 : i32
    %c0_i32_0 = arith.constant 0 : i32
    %c0_i32_1 = arith.constant 0 : i32
    %c0_i32_2 = arith.constant 0 : i32
    return %c0_i32, %c0_i32_0, %c0_i32_1 : i32, i32, i32
  }
  func.func @transform_4(%arg0: i32) -> (i32, i32) {
    %c0_i32 = arith.constant 0 : i32
    %c0_i32_0 = arith.constant 0 : i32
    %c0_i32_1 = arith.constant 0 : i32
    return %c0_i32, %c0_i32_0 : i32, i32
  }
  func.func @transform_5(%arg0: i32) -> (i32, i32) {
    %c0_i32 = arith.constant 0 : i32
    %c0_i32_0 = arith.constant 0 : i32
    %c0_i32_1 = arith.constant 0 : i32
    return %c0_i32, %c0_i32_0 : i32, i32
  }
  func.func @transform_6(%arg0: i32) -> (i32, i32) {
    %c0_i32 = arith.constant 0 : i32
    %c0_i32_0 = arith.constant 0 : i32
    return %arg0, %c0_i32 : i32, i32
  }
}

</mosaic_0001>

<llo_original>
// kernel: tpu_custom_call.1
$region0: #{tpu_custom_call.1}
  #allocation0 [shape = 'u32[]', space=smem, size = 0x4, offset = 0x4, fixed_abs, tag = 'smem constant byte address 0x4 - core index']
  #allocation1 [shape = 'u32[144,128]{1,0:T(1,128)}', space=vmem, size = 0x12000, scoped, tag = 'internal scratch']
  %s0 = inlined_call_operand.vmem [shape: f32[16,8], index: 0, kind: input, shape index: {}]
  %s1 = inlined_call_operand.vmem [shape: f32[8,128], index: 1, kind: input, shape index: {}]
  %s2 = inlined_call_operand.hbm [shape: f32[5,128,128], index: 2, kind: input, shape index: {}]
  %s3 = inlined_call_operand.vmem [shape: f32[6,1,128], index: 3, kind: input, shape index: {}]
  %s4 = inlined_call_operand.vmem [shape: f32[128,8], index: 4, kind: input, shape index: {}]
  %s5 = inlined_call_operand.vmem [shape: f32[1,8], index: 5, kind: input, shape index: {}]
  %s6 = inlined_call_operand.vmem [shape: f32[16,8], index: 6, kind: output, shape index: {}]
  %s7 = sld [smem:[#allocation0]]
  $region38: #{tpu_custom_call.1} parent=0
    _
  %s9 = ssub.s32 1, %s7
  %s10 = scalar_select 0, %s9, %s7
  $region1: #{tpu_custom_call.1} parent=0
    #allocation2 [shape = 'u8[327680]{0}', space=vmem, size = 0x50000, scoped, tag = 'input window, operand 2, single buffered']
    #allocation3 [shape = 's32[1]{0}', space=sflag, size = 0x4, scoped, tag = 'scoped memory for tpu_custom_call.1']
    %11 = vsyncpa [#allocation3], 0
    // Predicated region
    $region2: #{tpu_custom_call.1} parent=1 // pred_check
      _
    $region3: #{tpu_custom_call.1} parent=1 // pred_check_branch
      %13 = sbr.rel (0) target = $region5
    $region4: #{tpu_custom_call.1} parent=1 // pred_region
      _
    $region5: #{tpu_custom_call.1} parent=1 // pred_fallthru
      _
    // Predicated region
    $region6: #{tpu_custom_call.1} parent=1 // pred_check
      _
    $region7: #{tpu_custom_call.1} parent=1 // pred_check_branch
      %15 = sbr.rel (0) target = $region9
    $region8: #{tpu_custom_call.1} parent=1 // pred_region
      _
    $region9: #{tpu_custom_call.1} parent=1 // pred_fallthru
      _
    // Predicated region
    $region10: #{tpu_custom_call.1} parent=1 // pred_check
      _
    $region11: #{tpu_custom_call.1} parent=1 // pred_check_branch
      %17 = sbr.rel (0) target = $region13
    $region12: #{tpu_custom_call.1} parent=1 // pred_region
      %s19 = ssub.s32 10240, 10240
      %20 = vsyncadd [#allocation3], %s19
      %s21 = sshll.u32 [#allocation2], 4
      %s22 = int_to_ptr.vmem [resolvable:$true] %s21
      %27 = dma.hbm_to_vmem [thread:$0]  %s2, 10240, %s22, [#allocation3], 128, 128, 8
    $region13: #{tpu_custom_call.1} parent=1 // pred_fallthru
      _
    // Predicated region
    $region14: #{tpu_custom_call.1} parent=1 // pred_check
      _
    $region15: #{tpu_custom_call.1} parent=1 // pred_check_branch
      %29 = sbr.rel (0) target = $region17
    $region16: #{tpu_custom_call.1} parent=1 // pred_region
      _
    $region17: #{tpu_custom_call.1} parent=1 // pred_fallthru
      _
    // Predicated region
    $region18: #{tpu_custom_call.1} parent=1 // pred_check
      _
    $region19: #{tpu_custom_call.1} parent=1 // pred_check_branch
      %31 = sbr.rel (0) target = $region21
    $region20: #{tpu_custom_call.1} parent=1 // pred_region
      _
    $region21: #{tpu_custom_call.1} parent=1 // pred_fallthru
      _
    // Predicated region
    $region22: #{tpu_custom_call.1} parent=1 // pred_check
      _
    $region23: #{tpu_custom_call.1} parent=1 // pred_check_branch
      %33 = sbr.rel (0) target = $region25
    $region24: #{tpu_custom_call.1} parent=1 // pred_region
      _
    $region25: #{tpu_custom_call.1} parent=1 // pred_fallthru
      _
    // Predicated region
    $region26: #{tpu_custom_call.1} parent=1 // pred_check
      _
    $region27: #{tpu_custom_call.1} parent=1 // pred_check_branch
      %35 = sbr.rel (0) target = $region29
    $region28: #{tpu_custom_call.1} parent=1 // pred_region
      %36 = dma.done [#allocation3], 10240
    $region29: #{tpu_custom_call.1} parent=1 // pred_fallthru
      _
    %v37 = vld [vmem:[%s0] sm:$0xff]
    %v38 = vld [vmem:[%s0 + $0x8] sm:$0xff]
    %v39 = vld [vmem:[%s1] sm:$0xff]
    %v40 = vld [vmem:[%s3] sm:$0x1]
    %v42 = vlaneseq
    %v43 = vshrl.u32 %v42, 7
    %v44 = vsub.s32 0, %v43
    %v45 = vrot.slane %v40, %v44
    %vm47 = vcmask 64512
    %v49 = vsel %vm47, %v37, 0
    %v52 = vsel %vm47, %v38, 0
    %54 = vmatprep.subr.mxu0 0.0
    %v55 = vand.u32 %v39, 4294901760
    %56 = vmatpush1.msra.mxu0 %v55
    %57 = vmatprep.subr.mxu0 0.0
    %58 = vmatpush1.msra.mxu0 0.0
    %59 = vmatprep.subr.mxu0 0.0
    %60 = vmatpush1.msra.mxu0 0.0
    %61 = vmatprep.subr.mxu0 0.0
    %62 = vmatpush1.msra.mxu0 0.0
    %63 = vmatprep.subr.mxu0 0.0
    %64 = vmatpush1.msra.mxu0 0.0
    %65 = vmatprep.subr.mxu0 0.0
    %66 = vmatpush1.msra.mxu0 0.0
    %67 = vmatprep.subr.mxu0 0.0
    %68 = vmatpush1.msra.mxu0 0.0
    %69 = vmatprep.subr.mxu0 0.0
    %70 = vmatpush1.msra.mxu0 0.0
    %71 = vmatprep.subr.mxu0 0.0
    %72 = vmatpush1.msra.mxu0 0.0
    %73 = vmatprep.subr.mxu0 0.0
    %74 = vmatpush1.msra.mxu0 0.0
    %75 = vmatprep.subr.mxu0 0.0
    %76 = vmatpush1.msra.mxu0 0.0
    %77 = vmatprep.subr.mxu0 0.0
    %78 = vmatpush1.msra.mxu0 0.0
    %79 = vmatprep.subr.mxu0 0.0
    %80 = vmatpush1.msra.mxu0 0.0
    %81 = vmatprep.subr.mxu0 0.0
    %82 = vmatpush1.msra.mxu0 0.0
    %83 = vmatprep.subr.mxu0 0.0
    %84 = vmatpush1.msra.mxu0 0.0
    %85 = vmatprep.subr.mxu0 0.0
    %86 = vmatpush1.msra.mxu0 0.0
    %87 = vmatprep.subr.mxu0 0.0
    %88 = vmatpush1.msra.mxu0 0.0
    %89 = vmatprep.subr.mxu0 0.0
    %90 = vmatpush1.msra.mxu0 0.0
    %91 = vmatprep.subr.mxu0 0.0
    %92 = vmatpush1.msra.mxu0 0.0
    %93 = vmatprep.subr.mxu0 0.0
    %94 = vmatpush1.msra.mxu0 0.0
    %95 = vmatprep.subr.mxu0 0.0
    %96 = vmatpush1.msra.mxu0 0.0
    %97 = vmatprep.subr.mxu0 0.0
    %98 = vmatpush1.msra.mxu0 0.0
    %99 = vmatprep.subr.mxu0 0.0
    %100 = vmatpush1.msra.mxu0 0.0
    %101 = vmatprep.subr.mxu0 0.0
    %102 = vmatpush1.msra.mxu0 0.0
    %103 = vmatprep.subr.mxu0 0.0
    %104 = vmatpush1.msra.mxu0 0.0
    %105 = vmatprep.subr.mxu0 0.0
    %106 = vmatpush1.msra.mxu0 0.0
    %107 = vmatprep.subr.mxu0 0.0
    %108 = vmatpush1.msra.mxu0 0.0
    %109 = vmatprep.subr.mxu0 0.0
    %110 = vmatpush1.msra.mxu0 0.0
    %111 = vmatprep.subr.mxu0 0.0
    %112 = vmatpush1.msra.mxu0 0.0
    %113 = vmatprep.subr.mxu0 0.0
    %114 = vmatpush1.msra.mxu0 0.0
    %115 = vmatprep.subr.mxu0 0.0
    %116 = vmatpush1.msra.mxu0 0.0
    %117 = vmatprep.subr.mxu0 0.0
    %118 = vmatpush1.msra.mxu0 0.0
    %119 = vmatprep.mubr.f32.mxu0 0.0
    %v120 = vand.u32 %v49, 4294901760
    %v121 = vsub.f32 %v49, %v120
    %v122 = vand.u32 %v121, 4294901760
    %v123 = vsub.f32 %v121, %v122
    %v124 = vand.u32 %v123, 4294901760
    %125 = vmatmul.mubr.f32.gmra.mrb[0].mxu0 %v124
    %v126 = vpop.f32.mrb[0].mxu0
    %v127 = vadd.f32 %v45, %v126
    %v128 = vpop.f32.mrb[0].mxu0
    %129 = vmatprep.mubr.f32.mxu0 0.0
    %v130 = vand.u32 %v52, 4294901760
    %v131 = vsub.f32 %v52, %v130
    %v132 = vand.u32 %v131, 4294901760
    %v133 = vsub.f32 %v131, %v132
    %v134 = vand.u32 %v133, 4294901760
    %135 = vmatmul.mubr.f32.gmra.mrb[0].mxu0 %v134
    %v136 = vpop.f32.mrb[0].mxu0
    %v137 = vadd.f32 %v45, %v136
    %v138 = vpop.f32.mrb[0].mxu0
    %139 = vdwg.mxu0
    %140 = vmatprep.subr.mxu0 0.0
    %v141 = vand.u32 %v39, 4294901760
    %v142 = vsub.f32 %v39, %v141
    %v143 = vand.u32 %v142, 4294901760
    %v144 = vsub.f32 %v142, %v143
    %v145 = vand.u32 %v144, 4294901760
    %146 = vmatpush1.msra.mxu0 %v145
    %147 = vmatprep.subr.mxu0 0.0
    %148 = vmatpush1.msra.mxu0 0.0
    %149 = vmatprep.subr.mxu0 0.0
    %150 = vmatpush1.msra.mxu0 0.0
    %151 = vmatprep.subr.mxu0 0.0
    %152 = vmatpush1.msra.mxu0 0.0
    %153 = vmatprep.subr.mxu0 0.0
    %154 = vmatpush1.msra.mxu0 0.0
    %155 = vmatprep.subr.mxu0 0.0
    %156 = vmatpush1.msra.mxu0 0.0
    %157 = vmatprep.subr.mxu0 0.0
    %158 = vmatpush1.msra.mxu0 0.0
    %159 = vmatprep.subr.mxu0 0.0
    %160 = vmatpush1.msra.mxu0 0.0
    %161 = vmatprep.subr.mxu0 0.0
    %162 = vmatpush1.msra.mxu0 0.0
    %163 = vmatprep.subr.mxu0 0.0
    %164 = vmatpush1.msra.mxu0 0.0
    %165 = vmatprep.subr.mxu0 0.0
    %166 = vmatpush1.msra.mxu0 0.0
    %167 = vmatprep.subr.mxu0 0.0
    %168 = vmatpush1.msra.mxu0 0.0
    %169 = vmatprep.subr.mxu0 0.0
    %170 = vmatpush1.msra.mxu0 0.0
    %171 = vmatprep.subr.mxu0 0.0
    %172 = vmatpush1.msra.mxu0 0.0
    %173 = vmatprep.subr.mxu0 0.0
    %174 = vmatpush1.msra.mxu0 0.0
    %175 = vmatprep.subr.mxu0 0.0
    %176 = vmatpush1.msra.mxu0 0.0
    %177 = vmatprep.subr.mxu0 0.0
    %178 = vmatpush1.msra.mxu0 0.0
    %179 = vmatprep.subr.mxu0 0.0
    %180 = vmatpush1.msra.mxu0 0.0
    %181 = vmatprep.subr.mxu0 0.0
    %182 = vmatpush1.msra.mxu0 0.0
    %183 = vmatprep.subr.mxu0 0.0
    %184 = vmatpush1.msra.mxu0 0.0
    %185 = vmatprep.subr.mxu0 0.0
    %186 = vmatpush1.msra.mxu0 0.0
    %187 = vmatprep.subr.mxu0 0.0
    %188 = vmatpush1.msra.mxu0 0.0
    %189 = vmatprep.subr.mxu0 0.0
    %190 = vmatpush1.msra.mxu0 0.0
    %191 = vmatprep.subr.mxu0 0.0
    %192 = vmatpush1.msra.mxu0 0.0
    %193 = vmatprep.subr.mxu0 0.0
    %194 = vmatpush1.msra.mxu0 0.0
    %195 = vmatprep.subr.mxu0 0.0
    %196 = vmatpush1.msra.mxu0 0.0
    %197 = vmatprep.subr.mxu0 0.0
    %198 = vmatpush1.msra.mxu0 0.0
    %199 = vmatprep.subr.mxu0 0.0
    %200 = vmatpush1.msra.mxu0 0.0
    %201 = vmatprep.subr.mxu0 0.0
    %202 = vmatpush1.msra.mxu0 0.0
    %203 = vmatprep.subr.mxu0 0.0
    %204 = vmatpush1.msra.mxu0 0.0
    %205 = vmatprep.subr.mxu0 0.0
    %206 = vmatpush1.msra.mxu0 0.0
    %207 = vmatprep.subr.mxu0 0.0
    %208 = vmatpush1.msra.mxu0 0.0
    %209 = vmatprep.mubr.f32.mxu0 0.0
    %v210 = vand.u32 %v49, 4294901760
    %211 = vmatmul.mubr.f32.gmra.mrb[0].mxu0 %v210
    %v212 = vpop.f32.mrb[0].mxu0
    %v213 = vadd.f32 %v127, %v212
    %v214 = vpop.f32.mrb[0].mxu0
    %215 = vmatprep.mubr.f32.mxu0 0.0
    %v216 = vand.u32 %v52, 4294901760
    %217 = vmatmul.mubr.f32.gmra.mrb[0].mxu0 %v216
    %v218 = vpop.f32.mrb[0].mxu0
    %v219 = vadd.f32 %v137, %v218
    %v220 = vpop.f32.mrb[0].mxu0
    %221 = vdwg.mxu0
    %222 = vmatprep.subr.mxu0 0.0
    %v223 = vand.u32 %v39, 4294901760
    %v224 = vsub.f32 %v39, %v223
    %225 = vmatpush1.msra.mxu0 %v224
    %226 = vmatprep.subr.mxu0 0.0
    %227 = vmatpush1.msra.mxu0 0.0
    %228 = vmatprep.subr.mxu0 0.0
    %229 = vmatpush1.msra.mxu0 0.0
    %230 = vmatprep.subr.mxu0 0.0
    %231 = vmatpush1.msra.mxu0 0.0
    %232 = vmatprep.subr.mxu0 0.0
    %233 = vmatpush1.msra.mxu0 0.0
    %234 = vmatprep.subr.mxu0 0.0
    %235 = vmatpush1.msra.mxu0 0.0
    %236 = vmatprep.subr.mxu0 0.0
    %237 = vmatpush1.msra.mxu0 0.0
    %238 = vmatprep.subr.mxu0 0.0
    %239 = vmatpush1.msra.mxu0 0.0
    %240 = vmatprep.subr.mxu0 0.0
    %241 = vmatpush1.msra.mxu0 0.0
    %242 = vmatprep.subr.mxu0 0.0
    %243 = vmatpush1.msra.mxu0 0.0
    %244 = vmatprep.subr.mxu0 0.0
    %245 = vmatpush1.msra.mxu0 0.0
    %246 = vmatprep.subr.mxu0 0.0
    %247 = vmatpush1.msra.mxu0 0.0
    %248 = vmatprep.subr.mxu0 0.0
    %249 = vmatpush1.msra.mxu0 0.0
    %250 = vmatprep.subr.mxu0 0.0
    %251 = vmatpush1.msra.mxu0 0.0
    %252 = vmatprep.subr.mxu0 0.0
    %253 = vmatpush1.msra.mxu0 0.0
    %254 = vmatprep.subr.mxu0 0.0
    %255 = vmatpush1.msra.mxu0 0.0
    %256 = vmatprep.subr.mxu0 0.0
    %257 = vmatpush1.msra.mxu0 0.0
    %258 = vmatprep.subr.mxu0 0.0
    %259 = vmatpush1.msra.mxu0 0.0
    %260 = vmatprep.subr.mxu0 0.0
    %261 = vmatpush1.msra.mxu0 0.0
    %262 = vmatprep.subr.mxu0 0.0
    %263 = vmatpush1.msra.mxu0 0.0
    %264 = vmatprep.subr.mxu0 0.0
    %265 = vmatpush1.msra.mxu0 0.0
    %266 = vmatprep.subr.mxu0 0.0
    %267 = vmatpush1.msra.mxu0 0.0
    %268 = vmatprep.subr.mxu0 0.0
    %269 = vmatpush1.msra.mxu0 0.0
    %270 = vmatprep.subr.mxu0 0.0
    %271 = vmatpush1.msra.mxu0 0.0
    %272 = vmatprep.subr.mxu0 0.0
    %273 = vmatpush1.msra.mxu0 0.0
    %274 = vmatprep.subr.mxu0 0.0
    %275 = vmatpush1.msra.mxu0 0.0
    %276 = vmatprep.subr.mxu0 0.0
    %277 = vmatpush1.msra.mxu0 0.0
    %278 = vmatprep.subr.mxu0 0.0
    %279 = vmatpush1.msra.mxu0 0.0
    %280 = vmatprep.subr.mxu0 0.0
    %281 = vmatpush1.msra.mxu0 0.0
    %282 = vmatprep.subr.mxu0 0.0
    %283 = vmatpush1.msra.mxu0 0.0
    %284 = vmatprep.subr.mxu0 0.0
    %285 = vmatpush1.msra.mxu0 0.0
    %286 = vmatprep.subr.mxu0 0.0
    %287 = vmatpush1.msra.mxu0 0.0
    %288 = vmatprep.mubr.f32.mxu0 0.0
    %v289 = vand.u32 %v49, 4294901760
    %v290 = vsub.f32 %v49, %v289
    %291 = vmatmul.mubr.f32.gmra.mrb[0].mxu0 %v290
    %v292 = vpop.f32.mrb[0].mxu0
    %v293 = vadd.f32 %v213, %v292
    %v294 = vpop.f32.mrb[0].mxu0
    %295 = vmatprep.mubr.f32.mxu0 0.0
    %v296 = vand.u32 %v52, 4294901760
    %v297 = vsub.f32 %v52, %v296
    %298 = vmatmul.mubr.f32.gmra.mrb[0].mxu0 %v297
    %v299 = vpop.f32.mrb[0].mxu0
    %v300 = vadd.f32 %v219, %v299
    %v301 = vpop.f32.mrb[0].mxu0
    %302 = vdwg.mxu0
    %303 = vmatprep.subr.mxu0 0.0
    %v304 = vand.u32 %v39, 4294901760
    %305 = vmatpush1.msra.mxu0 %v304
    %306 = vmatprep.subr.mxu0 0.0
    %307 = vmatpush1.msra.mxu0 0.0
    %308 = vmatprep.subr.mxu0 0.0
    %309 = vmatpush1.msra.mxu0 0.0
    %310 = vmatprep.subr.mxu0 0.0
    %311 = vmatpush1.msra.mxu0 0.0
    %312 = vmatprep.subr.mxu0 0.0
    %313 = vmatpush1.msra.mxu0 0.0
    %314 = vmatprep.subr.mxu0 0.0
    %315 = vmatpush1.msra.mxu0 0.0
    %316 = vmatprep.subr.mxu0 0.0
    %317 = vmatpush1.msra.mxu0 0.0
    %318 = vmatprep.subr.mxu0 0.0
    %319 = vmatpush1.msra.mxu0 0.0
    %320 = vmatprep.subr.mxu0 0.0
    %321 = vmatpush1.msra.mxu0 0.0
    %322 = vmatprep.subr.mxu0 0.0
    %323 = vmatpush1.msra.mxu0 0.0
    %324 = vmatprep.subr.mxu0 0.0
    %325 = vmatpush1.msra.mxu0 0.0
    %326 = vmatprep.subr.mxu0 0.0
    %327 = vmatpush1.msra.mxu0 0.0
    %328 = vmatprep.subr.mxu0 0.0
    %329 = vmatpush1.msra.mxu0 0.0
    %330 = vmatprep.subr.mxu0 0.0
    %331 = vmatpush1.msra.mxu0 0.0
    %332 = vmatprep.subr.mxu0 0.0
    %333 = vmatpush1.msra.mxu0 0.0
    %334 = vmatprep.subr.mxu0 0.0
    %335 = vmatpush1.msra.mxu0 0.0
    %336 = vmatprep.subr.mxu0 0.0
    %337 = vmatpush1.msra.mxu0 0.0
    %338 = vmatprep.subr.mxu0 0.0
    %339 = vmatpush1.msra.mxu0 0.0
    %340 = vmatprep.subr.mxu0 0.0
    %341 = vmatpush1.msra.mxu0 0.0
    %342 = vmatprep.subr.mxu0 0.0
    %343 = vmatpush1.msra.mxu0 0.0
    %344 = vmatprep.subr.mxu0 0.0
    %345 = vmatpush1.msra.mxu0 0.0
    %346 = vmatprep.subr.mxu0 0.0
    %347 = vmatpush1.msra.mxu0 0.0
    %348 = vmatprep.subr.mxu0 0.0
    %349 = vmatpush1.msra.mxu0 0.0
    %350 = vmatprep.subr.mxu0 0.0
    %351 = vmatpush1.msra.mxu0 0.0
    %352 = vmatprep.subr.mxu0 0.0
    %353 = vmatpush1.msra.mxu0 0.0
    %354 = vmatprep.subr.mxu0 0.0
    %355 = vmatpush1.msra.mxu0 0.0
    %356 = vmatprep.subr.mxu0 0.0
    %357 = vmatpush1.msra.mxu0 0.0
    %358 = vmatprep.subr.mxu0 0.0
    %359 = vmatpush1.msra.mxu0 0.0
    %360 = vmatprep.subr.mxu0 0.0
    %361 = vmatpush1.msra.mxu0 0.0
    %362 = vmatprep.subr.mxu0 0.0
    %363 = vmatpush1.msra.mxu0 0.0
    %364 = vmatprep.subr.mxu0 0.0
    %365 = vmatpush1.msra.mxu0 0.0
    %366 = vmatprep.subr.mxu0 0.0
    %367 = vmatpush1.msra.mxu0 0.0
    %368 = vmatprep.mubr.f32.mxu0 0.0
    %v369 = vand.u32 %v49, 4294901760
    %v370 = vsub.f32 %v49, %v369
    %v371 = vand.u32 %v370, 4294901760
    %372 = vmatmul.mubr.f32.gmra.mrb[0].mxu0 %v371
    %v373 = vpop.f32.mrb[0].mxu0
    %v374 = vadd.f32 %v293, %v373
    %v375 = vpop.f32.mrb[0].mxu0
    %376 = vmatprep.mubr.f32.mxu0 0.0
    %v377 = vand.u32 %v52, 4294901760
    %v378 = vsub.f32 %v52, %v377
    %v379 = vand.u32 %v378, 4294901760
    %380 = vmatmul.mubr.f32.gmra.mrb[0].mxu0 %v379
    %v381 = vpop.f32.mrb[0].mxu0
    %v382 = vadd.f32 %v300, %v381
    %v383 = vpop.f32.mrb[0].mxu0
    %384 = vdwg.mxu0
    %385 = vmatprep.subr.mxu0 0.0
    %v386 = vand.u32 %v39, 4294901760
    %v387 = vsub.f32 %v39, %v386
    %v388 = vand.u32 %v387, 4294901760
    %389 = vmatpush1.msra.mxu0 %v388
    %390 = vmatprep.subr.mxu0 0.0
    %391 = vmatpush1.msra.mxu0 0.0
    %392 = vmatprep.subr.mxu0 0.0
    %393 = vmatpush1.msra.mxu0 0.0
    %394 = vmatprep.subr.mxu0 0.0
    %395 = vmatpush1.msra.mxu0 0.0
    %396 = vmatprep.subr.mxu0 0.0
    %397 = vmatpush1.msra.mxu0 0.0
    %398 = vmatprep.subr.mxu0 0.0
    %399 = vmatpush1.msra.mxu0 0.0
    %400 = vmatprep.subr.mxu0 0.0
    %401 = vmatpush1.msra.mxu0 0.0
    %402 = vmatprep.subr.mxu0 0.0
    %403 = vmatpush1.msra.mxu0 0.0
    %404 = vmatprep.subr.mxu0 0.0
    %405 = vmatpush1.msra.mxu0 0.0
    %406 = vmatprep.subr.mxu0 0.0
    %407 = vmatpush1.msra.mxu0 0.0
    %408 = vmatprep.subr.mxu0 0.0
    %409 = vmatpush1.msra.mxu0 0.0
    %410 = vmatprep.subr.mxu0 0.0
    %411 = vmatpush1.msra.mxu0 0.0
    %412 = vmatprep.subr.mxu0 0.0
    %413 = vmatpush1.msra.mxu0 0.0
    %414 = vmatprep.subr.mxu0 0.0
    %415 = vmatpush1.msra.mxu0 0.0
    %416 = vmatprep.subr.mxu0 0.0
    %417 = vmatpush1.msra.mxu0 0.0
    %418 = vmatprep.subr.mxu0 0.0
    %419 = vmatpush1.msra.mxu0 0.0
    %420 = vmatprep.subr.mxu0 0.0
    %421 = vmatpush1.msra.mxu0 0.0
    %422 = vmatprep.subr.mxu0 0.0
    %423 = vmatpush1.msra.mxu0 0.0
    %424 = vmatprep.subr.mxu0 0.0
    %425 = vmatpush1.msra.mxu0 0.0
    %426 = vmatprep.subr.mxu0 0.0
    %427 = vmatpush1.msra.mxu0 0.0
    %428 = vmatprep.subr.mxu0 0.0
    %429 = vmatpush1.msra.mxu0 0.0
    %430 = vmatprep.subr.mxu0 0.0
    %431 = vmatpush1.msra.mxu0 0.0
    %432 = vmatprep.subr.mxu0 0.0
    %433 = vmatpush1.msra.mxu0 0.0
    %434 = vmatprep.subr.mxu0 0.0
    %435 = vmatpush1.msra.mxu0 0.0
    %436 = vmatprep.subr.mxu0 0.0
    %437 = vmatpush1.msra.mxu0 0.0
    %438 = vmatprep.subr.mxu0 0.0
    %439 = vmatpush1.msra.mxu0 0.0
    %440 = vmatprep.subr.mxu0 0.0
    %441 = vmatpush1.msra.mxu0 0.0
    %442 = vmatprep.subr.mxu0 0.0
    %443 = vmatpush1.msra.mxu0 0.0
    %444 = vmatprep.subr.mxu0 0.0
    %445 = vmatpush1.msra.mxu0 0.0
    %446 = vmatprep.subr.mxu0 0.0
    %447 = vmatpush1.msra.mxu0 0.0
    %448 = vmatprep.subr.mxu0 0.0
    %449 = vmatpush1.msra.mxu0 0.0
    %450 = vmatprep.subr.mxu0 0.0
    %451 = vmatpush1.msra.mxu0 0.0
    %452 = vmatprep.mubr.f32.mxu0 0.0
    %v453 = vand.u32 %v49, 4294901760
    %454 = vmatmul.mubr.f32.gmra.mrb[0].mxu0 %v453
    %v455 = vpop.f32.mrb[0].mxu0
    %v456 = vadd.f32 %v374, %v455
    %v457 = vpop.f32.mrb[0].mxu0
    %458 = vmatprep.mubr.f32.mxu0 0.0
    %v459 = vand.u32 %v52, 4294901760
    %460 = vmatmul.mubr.f32.gmra.mrb[0].mxu0 %v459
    %v461 = vpop.f32.mrb[0].mxu0
    %v462 = vadd.f32 %v382, %v461
    %v463 = vpop.f32.mrb[0].mxu0
    %464 = vdwg.mxu0
    %465 = vmatprep.subr.mxu0 0.0
    %v466 = vand.u32 %v39, 4294901760
    %467 = vmatpush1.msra.mxu0 %v466
    %468 = vmatprep.subr.mxu0 0.0
    %469 = vmatpush1.msra.mxu0 0.0
    %470 = vmatprep.subr.mxu0 0.0
    %471 = vmatpush1.msra.mxu0 0.0
    %472 = vmatprep.subr.mxu0 0.0
    %473 = vmatpush1.msra.mxu0 0.0
    %474 = vmatprep.subr.mxu0 0.0
    %475 = vmatpush1.msra.mxu0 0.0
    %476 = vmatprep.subr.mxu0 0.0
    %477 = vmatpush1.msra.mxu0 0.0
    %478 = vmatprep.subr.mxu0 0.0
    %479 = vmatpush1.msra.mxu0 0.0
    %480 = vmatprep.subr.mxu0 0.0
    %481 = vmatpush1.msra.mxu0 0.0
    %482 = vmatprep.subr.mxu0 0.0
    %483 = vmatpush1.msra.mxu0 0.0
    %484 = vmatprep.subr.mxu0 0.0
    %485 = vmatpush1.msra.mxu0 0.0
    %486 = vmatprep.subr.mxu0 0.0
    %487 = vmatpush1.msra.mxu0 0.0
    %488 = vmatprep.subr.mxu0 0.0
    %489 = vmatpush1.msra.mxu0 0.0
    %490 = vmatprep.subr.mxu0 0.0
    %491 = vmatpush1.msra.mxu0 0.0
    %492 = vmatprep.subr.mxu0 0.0
    %493 = vmatpush1.msra.mxu0 0.0
    %494 = vmatprep.subr.mxu0 0.0
    %495 = vmatpush1.msra.mxu0 0.0
    %496 = vmatprep.subr.mxu0 0.0
    %497 = vmatpush1.msra.mxu0 0.0
    %498 = vmatprep.subr.mxu0 0.0
    %499 = vmatpush1.msra.mxu0 0.0
    %500 = vmatprep.subr.mxu0 0.0
    %501 = vmatpush1.msra.mxu0 0.0
    %502 = vmatprep.subr.mxu0 0.0
    %503 = vmatpush1.msra.mxu0 0.0
    %504 = vmatprep.subr.mxu0 0.0
    %505 = vmatpush1.msra.mxu0 0.0
    %506 = vmatprep.subr.mxu0 0.0
    %507 = vmatpush1.msra.mxu0 0.0
    %508 = vmatprep.subr.mxu0 0.0
    %509 = vmatpush1.msra.mxu0 0.0
    %510 = vmatprep.subr.mxu0 0.0
    %511 = vmatpush1.msra.mxu0 0.0
    %512 = vmatprep.subr.mxu0 0.0
    %513 = vmatpush1.msra.mxu0 0.0
    %514 = vmatprep.subr.mxu0 0.0
    %515 = vmatpush1.msra.mxu0 0.0
    %516 = vmatprep.subr.mxu0 0.0
    %517 = vmatpush1.msra.mxu0 0.0
    %518 = vmatprep.subr.mxu0 0.0
    %519 = vmatpush1.msra.mxu0 0.0
    %520 = vmatprep.subr.mxu0 0.0
    %521 = vmatpush1.msra.mxu0 0.0
    %522 = vmatprep.subr.mxu0 0.0
    %523 = vmatpush1.msra.mxu0 0.0
    %524 = vmatprep.subr.mxu0 0.0
    %525 = vmatpush1.msra.mxu0 0.0
    %526 = vmatprep.subr.mxu0 0.0
    %527 = vmatpush1.msra.mxu0 0.0
    %528 = vmatprep.subr.mxu0 0.0
    %529 = vmatpush1.msra.mxu0 0.0
    %530 = vmatprep.mubr.f32.mxu0 0.0
    %v531 = vand.u32 %v49, 4294901760
    %532 = vmatmul.mubr.f32.gmra.mrb[0].mxu0 %v531
    %v533 = vpop.f32.mrb[0].mxu0
    %v534 = vadd.f32 %v456, %v533
    %v535 = vpop.f32.mrb[0].mxu0
    %536 = vmatprep.mubr.f32.mxu0 0.0
    %v537 = vand.u32 %v52, 4294901760
    %538 = vmatmul.mubr.f32.gmra.mrb[0].mxu0 %v537
    %v539 = vpop.f32.mrb[0].mxu0
    %v540 = vadd.f32 %v462, %v539
    %v541 = vpop.f32.mrb[0].mxu0
    %542 = vdwg.mxu0
    %v543 = vmax.f32 %v534, 0.0
    %v544 = vmax.f32 %v540, 0.0
    %v545 = vld [vmem:[#allocation2] sm:$0xff]
    %v546 = vld [vmem:[#allocation2 + $0x8] sm:$0xff]
    %v547 = vld [vmem:[#allocation2 + $0x10] sm:$0xff]
    %v548 = vld [vmem:[#allocation2 + $0x18] sm:$0xff]
    %v549 = vld [vmem:[#allocation2 + $0x20] sm:$0xff]
    %v550 = vld [vmem:[#allocation2 + $0x28] sm:$0xff]
    %v551 = vld [vmem:[#allocation2 + $0x30] sm:$0xff]
    %v552 = vld [vmem:[#allocation2 + $0x38] sm:$0xff]
    %v553 = vld [vmem:[#allocation2 + $0x40] sm:$0xff]
    %v554 = vld [vmem:[#allocation2 + $0x48] sm:$0xff]
    %v555 = vld [vmem:[#allocation2 + $0x50] sm:$0xff]
    %v556 = vld [vmem:[#allocation2 + $0x58] sm:$0xff]
    %v557 = vld [vmem:[#allocation2 + $0x60] sm:$0xff]
    %v558 = vld [vmem:[#allocation2 + $0x68] sm:$0xff]
    %v559 = vld [vmem:[#allocation2 + $0x70] sm:$0xff]
    %v560 = vld [vmem:[#allocation2 + $0x78] sm:$0xff]
    %s561 = scalar_lea.vmem %s3, 1
    %v562 = vld [vmem:[%s561] sm:$0x1]
    %v564 = vlaneseq
    %v565 = vshrl.u32 %v564, 7
    %v566 = vsub.s32 0, %v565
    %v567 = vrot.slane %v562, %v566
    %569 = vmatprep.subr.mxu0 0.0
    %v570 = vand.u32 %v545, 4294901760
    %571 = vmatpush1.msra.mxu0 %v570
    %572 = vmatprep.subr.mxu0 0.0
    %v573 = vand.u32 %v546, 4294901760
    %574 = vmatpush1.msra.mxu0 %v573
    %575 = vmatprep.subr.mxu0 0.0
    %v576 = vand.u32 %v547, 4294901760
    %577 = vmatpush1.msra.mxu0 %v576
    %578 = vmatprep.subr.mxu0 0.0
    %v579 = vand.u32 %v548, 4294901760
    %580 = vmatpush1.msra.mxu0 %v579
    %581 = vmatprep.subr.mxu0 0.0
    %v582 = vand.u32 %v549, 4294901760
    %583 = vmatpush1.msra.mxu0 %v582
    %584 = vmatprep.subr.mxu0 0.0
    %v585 = vand.u32 %v550, 4294901760
    %586 = vmatpush1.msra.mxu0 %v585
    %587 = vmatprep.subr.mxu0 0.0
    %v588 = vand.u32 %v551, 4294901760
    %589 = vmatpush1.msra.mxu0 %v588
    %590 = vmatprep.subr.mxu0 0.0
    %v591 = vand.u32 %v552, 4294901760
    %592 = vmatpush1.msra.mxu0 %v591
    %593 = vmatprep.subr.mxu0 0.0
    %v594 = vand.u32 %v553, 4294901760
    %595 = vmatpush1.msra.mxu0 %v594
    %596 = vmatprep.subr.mxu0 0.0
    %v597 = vand.u32 %v554, 4294901760
    %598 = vmatpush1.msra.mxu0 %v597
    %599 = vmatprep.subr.mxu0 0.0
    %v600 = vand.u32 %v555, 4294901760
    %601 = vmatpush1.msra.mxu0 %v600
    %602 = vmatprep.subr.mxu0 0.0
    %v603 = vand.u32 %v556, 4294901760
    %604 = vmatpush1.msra.mxu0 %v603
    %605 = vmatprep.subr.mxu0 0.0
    %v606 = vand.u32 %v557, 4294901760
    %607 = vmatpush1.msra.mxu0 %v606
    %608 = vmatprep.subr.mxu0 0.0
    %v609 = vand.u32 %v558, 4294901760
    %610 = vmatpush1.msra.mxu0 %v609
    %611 = vmatprep.subr.mxu0 0.0
    %v612 = vand.u32 %v559, 4294901760
    %613 = vmatpush1.msra.mxu0 %v612
    %614 = vmatprep.subr.mxu0 0.0
    %v615 = vand.u32 %v560, 4294901760
    %616 = vmatpush1.msra.mxu0 %v615
    %617 = vmatprep.subr.mxu0 0.0
    %618 = vmatpush1.msra.mxu0 0.0
    %619 = vmatprep.subr.mxu0 0.0
    %620 = vmatpush1.msra.mxu0 0.0
    %621 = vmatprep.subr.mxu0 0.0
    %622 = vmatpush1.msra.mxu0 0.0
    %623 = vmatprep.subr.mxu0 0.0
    %624 = vmatpush1.msra.mxu0 0.0
    %625 = vmatprep.subr.mxu0 0.0
    %626 = vmatpush1.msra.mxu0 0.0
    %627 = vmatprep.subr.mxu0 0.0
    %628 = vmatpush1.msra.mxu0 0.0
    %629 = vmatprep.subr.mxu0 0.0
    %630 = vmatpush1.msra.mxu0 0.0
    %631 = vmatprep.subr.mxu0 0.0
    %632 = vmatpush1.msra.mxu0 0.0
    %633 = vmatprep.subr.mxu0 0.0
    %634 = vmatpush1.msra.mxu0 0.0
    %635 = vmatprep.subr.mxu0 0.0
    %636 = vmatpush1.msra.mxu0 0.0
    %637 = vmatprep.subr.mxu0 0.0
    %638 = vmatpush1.msra.mxu0 0.0
    %639 = vmatprep.subr.mxu0 0.0
    %640 = vmatpush1.msra.mxu0 0.0
    %641 = vmatprep.subr.mxu0 0.0
    %642 = vmatpush1.msra.mxu0 0.0
    %643 = vmatprep.subr.mxu0 0.0
    %644 = vmatpush1.msra.mxu0 0.0
    %645 = vmatprep.subr.mxu0 0.0
    %646 = vmatpush1.msra.mxu0 0.0
    %647 = vmatprep.subr.mxu0 0.0
    %648 = vmatpush1.msra.mxu0 0.0
    %649 = vmatprep.mubr.f32.mxu0 0.0
    %v650 = vand.u32 %v543, 4294901760
    %v651 = vsub.f32 %v543, %v650
    %v652 = vand.u32 %v651, 4294901760
    %v653 = vsub.f32 %v651, %v652
    %v654 = vand.u32 %v653, 4294901760
    %655 = vmatmul.mubr.f32.gmra.mrb[0].mxu0 %v654
    %v656 = vpop.f32.mrb[0].mxu0
    %v657 = vadd.f32 %v567, %v656
    %v658 = vpop.f32.mrb[0].mxu0
    %659 = vmatprep.mubr.f32.mxu0 0.0
    %v660 = vand.u32 %v544, 4294901760
    %v661 = vsub.f32 %v544, %v660
    %v662 = vand.u32 %v661, 4294901760
    %v663 = vsub.f32 %v661, %v662
    %v664 = vand.u32 %v663, 4294901760
    %665 = vmatmul.mubr.f32.gmra.mrb[0].mxu0 %v664
    %v666 = vpop.f32.mrb[0].mxu0
    %v667 = vadd.f32 %v567, %v666
    %v668 = vpop.f32.mrb[0].mxu0
    %669 = vdwg.mxu0
    %670 = vmatprep.subr.mxu0 0.0
    %v671 = vand.u32 %v545, 4294901760
    %v672 = vsub.f32 %v545, %v671
    %v673 = vand.u32 %v672, 4294901760
    %v674 = vsub.f32 %v672, %v673
    %v675 = vand.u32 %v674, 4294901760
    %676 = vmatpush1.msra.mxu0 %v675
    %677 = vmatprep.subr.mxu0 0.0
    %v678 = vand.u32 %v546, 4294901760
    %v679 = vsub.f32 %v546, %v678
    %v680 = vand.u32 %v679, 4294901760
    %v681 = vsub.f32 %v679, %v680
    %v682 = vand.u32 %v681, 4294901760
    %683 = vmatpush1.msra.mxu0 %v682
    %684 = vmatprep.subr.mxu0 0.0
    %v685 = vand.u32 %v547, 4294901760
    %v686 = vsub.f32 %v547, %v685
    %v687 = vand.u32 %v686, 4294901760
    %v688 = vsub.f32 %v686, %v687
    %v689 = vand.u32 %v688, 4294901760
    %690 = vmatpush1.msra.mxu0 %v689
    %691 = vmatprep.subr.mxu0 0.0
    %v692 = vand.u32 %v548, 4294901760
    %v693 = vsub.f32 %v548, %v692
    %v694 = vand.u32 %v693, 4294901760
    %v695 = vsub.f32 %v693, %v694
    %v696 = vand.u32 %v695, 4294901760
    %697 = vmatpush1.msra.mxu0 %v696
    %698 = vmatprep.subr.mxu0 0.0
    %v699 = vand.u32 %v549, 4294901760
    %v700 = vsub.f32 %v549, %v699
    %v701 = vand.u32 %v700, 4294901760
    %v702 = vsub.f32 %v700, %v701
    %v703 = vand.u32 %v702, 4294901760
    %704 = vmatpush1.msra.mxu0 %v703
    %705 = vmatprep.subr.mxu0 0.0
    %v706 = vand.u32 %v550, 4294901760
    %v707 = vsub.f32 %v550, %v706
    %v708 = vand.u32 %v707, 4294901760
    %v709 = vsub.f32 %v707, %v708
    %v710 = vand.u32 %v709, 4294901760
    %711 = vmatpush1.msra.mxu0 %v710
    %712 = vmatprep.subr.mxu0 0.0
    %v713 = vand.u32 %v551, 4294901760
    %v714 = vsub.f32 %v551, %v713
    %v715 = vand.u32 %v714, 4294901760
    %v716 = vsub.f32 %v714, %v715
    %v717 = vand.u32 %v716, 4294901760
    %718 = vmatpush1.msra.mxu0 %v717
    %719 = vmatprep.subr.mxu0 0.0
    %v720 = vand.u32 %v552, 4294901760
    %v721 = vsub.f32 %v552, %v720
    %v722 = vand.u32 %v721, 4294901760
    %v723 = vsub.f32 %v721, %v722
    %v724 = vand.u32 %v723, 4294901760
    %725 = vmatpush1.msra.mxu0 %v724
    %726 = vmatprep.subr.mxu0 0.0
    %v727 = vand.u32 %v553, 4294901760
    %v728 = vsub.f32 %v553, %v727
    %v729 = vand.u32 %v728, 4294901760
    %v730 = vsub.f32 %v728, %v729
    %v731 = vand.u32 %v730, 4294901760
    %732 = vmatpush1.msra.mxu0 %v731
    %733 = vmatprep.subr.mxu0 0.0
    %v734 = vand.u32 %v554, 4294901760
    %v735 = vsub.f32 %v554, %v734
    %v736 = vand.u32 %v735, 4294901760
    %v737 = vsub.f32 %v735, %v736
    %v738 = vand.u32 %v737, 4294901760
    %739 = vmatpush1.msra.mxu0 %v738
    %740 = vmatprep.subr.mxu0 0.0
    %v741 = vand.u32 %v555, 4294901760
    %v742 = vsub.f32 %v555, %v741
    %v743 = vand.u32 %v742, 4294901760
    %v744 = vsub.f32 %v742, %v743
    %v745 = vand.u32 %v744, 4294901760
    %746 = vmatpush1.msra.mxu0 %v745
    %747 = vmatprep.subr.mxu0 0.0
    %v748 = vand.u32 %v556, 4294901760
    %v749 = vsub.f32 %v556, %v748
    %v750 = vand.u32 %v749, 4294901760
    %v751 = vsub.f32 %v749, %v750
    %v752 = vand.u32 %v751, 4294901760
    %753 = vmatpush1.msra.mxu0 %v752
    %754 = vmatprep.subr.mxu0 0.0
    %v755 = vand.u32 %v557, 4294901760
    %v756 = vsub.f32 %v557, %v755
    %v757 = vand.u32 %v756, 4294901760
    %v758 = vsub.f32 %v756, %v757
    %v759 = vand.u32 %v758, 4294901760
    %760 = vmatpush1.msra.mxu0 %v759
    %761 = vmatprep.subr.mxu0 0.0
    %v762 = vand.u32 %v558, 4294901760
    %v763 = vsub.f32 %v558, %v762
    %v764 = vand.u32 %v763, 4294901760
    %v765 = vsub.f32 %v763, %v764
    %v766 = vand.u32 %v765, 4294901760
    %767 = vmatpush1.msra.mxu0 %v766
    %768 = vmatprep.subr.mxu0 0.0
    %v769 = vand.u32 %v559, 4294901760
    %v770 = vsub.f32 %v559, %v769
    %v771 = vand.u32 %v770, 4294901760
    %v772 = vsub.f32 %v770, %v771
    %v773 = vand.u32 %v772, 4294901760
    %774 = vmatpush1.msra.mxu0 %v773
    %775 = vmatprep.subr.mxu0 0.0
    %v776 = vand.u32 %v560, 4294901760
    %v777 = vsub.f32 %v560, %v776
    %v778 = vand.u32 %v777, 4294901760
    %v779 = vsub.f32 %v777, %v778
    %v780 = vand.u32 %v779, 4294901760
    %781 = vmatpush1.msra.mxu0 %v780
    %782 = vmatprep.subr.mxu0 0.0
    %783 = vmatpush1.msra.mxu0 0.0
    %784 = vmatprep.subr.mxu0 0.0
    %785 = vmatpush1.msra.mxu0 0.0
    %786 = vmatprep.subr.mxu0 0.0
    %787 = vmatpush1.msra.mxu0 0.0
    %788 = vmatprep.subr.mxu0 0.0
    %789 = vmatpush1.msra.mxu0 0.0
    %790 = vmatprep.subr.mxu0 0.0
    %791 = vmatpush1.msra.mxu0 0.0
    %792 = vmatprep.subr.mxu0 0.0
    %793 = vmatpush1.msra.mxu0 0.0
    %794 = vmatprep.subr.mxu0 0.0
    %795 = vmatpush1.msra.mxu0 0.0
    %796 = vmatprep.subr.mxu0 0.0
    %797 = vmatpush1.msra.mxu0 0.0
    %798 = vmatprep.subr.mxu0 0.0
    %799 = vmatpush1.msra.mxu0 0.0
    %800 = vmatprep.subr.mxu0 0.0
    %801 = vmatpush1.msra.mxu0 0.0
    %802 = vmatprep.subr.mxu0 0.0
    %803 = vmatpush1.msra.mxu0 0.0
    %804 = vmatprep.subr.mxu0 0.0
    %805 = vmatpush1.msra.mxu0 0.0
    %806 = vmatprep.subr.mxu0 0.0
    %807 = vmatpush1.msra.mxu0 0.0
    %808 = vmatprep.subr.mxu0 0.0
    %809 = vmatpush1.msra.mxu0 0.0
    %810 = vmatprep.subr.mxu0 0.0
    %811 = vmatpush1.msra.mxu0 0.0
    %812 = vmatprep.subr.mxu0 0.0
    %813 = vmatpush1.msra.mxu0 0.0
    %814 = vmatprep.mubr.f32.mxu0 0.0
    %v815 = vand.u32 %v543, 4294901760
    %816 = vmatmul.mubr.f32.gmra.mrb[0].mxu0 %v815
    %v817 = vpop.f32.mrb[0].mxu0
    %v818 = vadd.f32 %v657, %v817
    %v819 = vpop.f32.mrb[0].mxu0
    %820 = vmatprep.mubr.f32.mxu0 0.0
    %v821 = vand.u32 %v544, 4294901760
    %822 = vmatmul.mubr.f32.gmra.mrb[0].mxu0 %v821
    %v823 = vpop.f32.mrb[0].mxu0
    %v824 = vadd.f32 %v667, %v823
    %v825 = vpop.f32.mrb[0].mxu0
    %826 = vdwg.mxu0
    %827 = vmatprep.subr.mxu0 0.0
    %v828 = vand.u32 %v545, 4294901760
    %v829 = vsub.f32 %v545, %v828
    %830 = vmatpush1.msra.mxu0 %v829
    %831 = vmatprep.subr.mxu0 0.0
    %v832 = vand.u32 %v546, 4294901760
    %v833 = vsub.f32 %v546, %v832
    %834 = vmatpush1.msra.mxu0 %v833
    %835 = vmatprep.subr.mxu0 0.0
    %v836 = vand.u32 %v547, 4294901760
    %v837 = vsub.f32 %v547, %v836
    %838 = vmatpush1.msra.mxu0 %v837
    %839 = vmatprep.subr.mxu0 0.0
    %v840 = vand.u32 %v548, 4294901760
    %v841 = vsub.f32 %v548, %v840
    %842 = vmatpush1.msra.mxu0 %v841
    %843 = vmatprep.subr.mxu0 0.0
    %v844 = vand.u32 %v549, 4294901760
    %v845 = vsub.f32 %v549, %v844
    %846 = vmatpush1.msra.mxu0 %v845
    %847 = vmatprep.subr.mxu0 0.0
    %v848 = vand.u32 %v550, 4294901760
    %v849 = vsub.f32 %v550, %v848
    %850 = vmatpush1.msra.mxu0 %v849
    %851 = vmatprep.subr.mxu0 0.0
    %v852 = vand.u32 %v551, 4294901760
    %v853 = vsub.f32 %v551, %v852
    %854 = vmatpush1.msra.mxu0 %v853
    %855 = vmatprep.subr.mxu0 0.0
    %v856 = vand.u32 %v552, 4294901760
    %v857 = vsub.f32 %v552, %v856
    %858 = vmatpush1.msra.mxu0 %v857
    %859 = vmatprep.subr.mxu0 0.0
    %v860 = vand.u32 %v553, 4294901760
    %v861 = vsub.f32 %v553, %v860
    %862 = vmatpush1.msra.mxu0 %v861
    %863 = vmatprep.subr.mxu0 0.0
    %v864 = vand.u32 %v554, 4294901760
    %v865 = vsub.f32 %v554, %v864
    %866 = vmatpush1.msra.mxu0 %v865
    %867 = vmatprep.subr.mxu0 0.0
    %v868 = vand.u32 %v555, 4294901760
    %v869 = vsub.f32 %v555, %v868
    %870 = vmatpush1.msra.mxu0 %v869
    %871 = vmatprep.subr.mxu0 0.0
    %v872 = vand.u32 %v556, 4294901760
    %v873 = vsub.f32 %v556, %v872
    %874 = vmatpush1.msra.mxu0 %v873
    %875 = vmatprep.subr.mxu0 0.0
    %v876 = vand.u32 %v557, 4294901760
    %v877 = vsub.f32 %v557, %v876
    %878 = vmatpush1.msra.mxu0 %v877
    %879 = vmatprep.subr.mxu0 0.0
    %v880 = vand.u32 %v558, 4294901760
    %v881 = vsub.f32 %v558, %v880
    %882 = vmatpush1.msra.mxu0 %v881
    %883 = vmatprep.subr.mxu0 0.0
    %v884 = vand.u32 %v559, 4294901760
    %v885 = vsub.f32 %v559, %v884
    %886 = vmatpush1.msra.mxu0 %v885
    %887 = vmatprep.subr.mxu0 0.0
    %v888 = vand.u32 %v560, 4294901760
    %v889 = vsub.f32 %v560, %v888
    %890 = vmatpush1.msra.mxu0 %v889
    %891 = vmatprep.subr.mxu0 0.0
    %892 = vmatpush1.msra.mxu0 0.0
    %893 = vmatprep.subr.mxu0 0.0
    %894 = vmatpush1.msra.mxu0 0.0
    %895 = vmatprep.subr.mxu0 0.0
    %896 = vmatpush1.msra.mxu0 0.0
    %897 = vmatprep.subr.mxu0 0.0
    %898 = vmatpush1.msra.mxu0 0.0
    %899 = vmatprep.subr.mxu0 0.0
    %900 = vmatpush1.msra.mxu0 0.0
    %901 = vmatprep.subr.mxu0 0.0
    %902 = vmatpush1.msra.mxu0 0.0
    %903 = vmatprep.subr.mxu0 0.0
    %904 = vmatpush1.msra.mxu0 0.0
    %905 = vmatprep.subr.mxu0 0.0
    %906 = vmatpush1.msra.mxu0 0.0
    %907 = vmatprep.subr.mxu0 0.0
    %908 = vmatpush1.msra.mxu0 0.0
    %909 = vmatprep.subr.mxu0 0.0
    %910 = vmatpush1.msra.mxu0 0.0
    %911 = vmatprep.subr.mxu0 0.0
    %912 = vmatpush1.msra.mxu0 0.0
    %913 = vmatprep.subr.mxu0 0.0
    %914 = vmatpush1.msra.mxu0 0.0
    %915 = vmatprep.subr.mxu0 0.0
    %916 = vmatpush1.msra.mxu0 0.0
    %917 = vmatprep.subr.mxu0 0.0
    %918 = vmatpush1.msra.mxu0 0.0
    %919 = vmatprep.subr.mxu0 0.0
    %920 = vmatpush1.msra.mxu0 0.0
    %921 = vmatprep.subr.mxu0 0.0
    %922 = vmatpush1.msra.mxu0 0.0
    %923 = vmatprep.mubr.f32.mxu0 0.0
    %v924 = vand.u32 %v543, 4294901760
    %v925 = vsub.f32 %v543, %v924
    %926 = vmatmul.mubr.f32.gmra.mrb[0].mxu0 %v925
    %v927 = vpop.f32.mrb[0].mxu0
    %v928 = vadd.f32 %v818, %v927
    %v929 = vpop.f32.mrb[0].mxu0
    %930 = vmatprep.mubr.f32.mxu0 0.0
    %v931 = vand.u32 %v544, 4294901760
    %v932 = vsub.f32 %v544, %v931
    %933 = vmatmul.mubr.f32.gmra.mrb[0].mxu0 %v932
    %v934 = vpop.f32.mrb[0].mxu0
    %v935 = vadd.f32 %v824, %v934
    %v936 = vpop.f32.mrb[0].mxu0
    %937 = vdwg.mxu0
    %938 = vmatprep.subr.mxu0 0.0
    %v939 = vand.u32 %v545, 4294901760
    %940 = vmatpush1.msra.mxu0 %v939
    %941 = vmatprep.subr.mxu0 0.0
    %v942 = vand.u32 %v546, 4294901760
    %943 = vmatpush1.msra.mxu0 %v942
    %944 = vmatprep.subr.mxu0 0.0
    %v945 = vand.u32 %v547, 4294901760
    %946 = vmatpush1.msra.mxu0 %v945
    %947 = vmatprep.subr.mxu0 0.0
    %v948 = vand.u32 %v548, 4294901760
    %949 = vmatpush1.msra.mxu0 %v948
    %950 = vmatprep.subr.mxu0 0.0
    %v951 = vand.u32 %v549, 4294901760
    %952 = vmatpush1.msra.mxu0 %v951
    %953 = vmatprep.subr.mxu0 0.0
    %v954 = vand.u32 %v550, 4294901760
    %955 = vmatpush1.msra.mxu0 %v954
    %956 = vmatprep.subr.mxu0 0.0
    %v957 = vand.u32 %v551, 4294901760
    %958 = vmatpush1.msra.mxu0 %v957
    %959 = vmatprep.subr.mxu0 0.0
    %v960 = vand.u32 %v552, 4294901760
    %961 = vmatpush1.msra.mxu0 %v960
    %962 = vmatprep.subr.mxu0 0.0
    %v963 = vand.u32 %v553, 4294901760
    %964 = vmatpush1.msra.mxu0 %v963
    %965 = vmatprep.subr.mxu0 0.0
    %v966 = vand.u32 %v554, 4294901760
    %967 = vmatpush1.msra.mxu0 %v966
    %968 = vmatprep.subr.mxu0 0.0
    %v969 = vand.u32 %v555, 4294901760
    %970 = vmatpush1.msra.mxu0 %v969
    %971 = vmatprep.subr.mxu0 0.0
    %v972 = vand.u32 %v556, 4294901760
    %973 = vmatpush1.msra.mxu0 %v972
    %974 = vmatprep.subr.mxu0 0.0
    %v975 = vand.u32 %v557, 4294901760
    %976 = vmatpush1.msra.mxu0 %v975
    %977 = vmatprep.subr.mxu0 0.0
    %v978 = vand.u32 %v558, 4294901760
    %979 = vmatpush1.msra.mxu0 %v978
    %980 = vmatprep.subr.mxu0 0.0
    %v981 = vand.u32 %v559, 4294901760
    %982 = vmatpush1.msra.mxu0 %v981
    %983 = vmatprep.subr.mxu0 0.0
    %v984 = vand.u32 %v560, 4294901760
    %985 = vmatpush1.msra.mxu0 %v984
    %986 = vmatprep.subr.mxu0 0.0
    %987 = vmatpush1.msra.mxu0 0.0
    %988 = vmatprep.subr.mxu0 0.0
    %989 = vmatpush1.msra.mxu0 0.0
    %990 = vmatprep.subr.mxu0 0.0
    %991 = vmatpush1.msra.mxu0 0.0
    %992 = vmatprep.subr.mxu0 0.0
    %993 = vmatpush1.msra.mxu0 0.0
    %994 = vmatprep.subr.mxu0 0.0
    %995 = vmatpush1.msra.mxu0 0.0
    %996 = vmatprep.subr.mxu0 0.0
    %997 = vmatpush1.msra.mxu0 0.0
    %998 = vmatprep.subr.mxu0 0.0
    %999 = vmatpush1.msra.mxu0 0.0
    %1000 = vmatprep.subr.mxu0 0.0
    %1001 = vmatpush1.msra.mxu0 0.0
    %1002 = vmatprep.subr.mxu0 0.0
    %1003 = vmatpush1.msra.mxu0 0.0
    %1004 = vmatprep.subr.mxu0 0.0
    %1005 = vmatpush1.msra.mxu0 0.0
    %1006 = vmatprep.subr.mxu0 0.0
    %1007 = vmatpush1.msra.mxu0 0.0
    %1008 = vmatprep.subr.mxu0 0.0
    %1009 = vmatpush1.msra.mxu0 0.0
    %1010 = vmatprep.subr.mxu0 0.0
    %1011 = vmatpush1.msra.mxu0 0.0
    %1012 = vmatprep.subr.mxu0 0.0
    %1013 = vmatpush1.msra.mxu0 0.0
    %1014 = vmatprep.subr.mxu0 0.0
    %1015 = vmatpush1.msra.mxu0 0.0
    %1016 = vmatprep.subr.mxu0 0.0
    %1017 = vmatpush1.msra.mxu0 0.0
    %1018 = vmatprep.mubr.f32.mxu0 0.0
    %v1019 = vand.u32 %v543, 4294901760
    %v1020 = vsub.f32 %v543, %v1019
    %v1021 = vand.u32 %v1020, 4294901760
    %1022 = vmatmul.mubr.f32.gmra.mrb[0].mxu0 %v1021
    %v1023 = vpop.f32.mrb[0].mxu0
    %v1024 = vadd.f32 %v928, %v1023
    %v1025 = vpop.f32.mrb[0].mxu0
    %1026 = vmatprep.mubr.f32.mxu0 0.0
    %v1027 = vand.u32 %v544, 4294901760
    %v1028 = vsub.f32 %v544, %v1027
    %v1029 = vand.u32 %v1028, 4294901760
    %1030 = vmatmul.mubr.f32.gmra.mrb[0].mxu0 %v1029
    %v1031 = vpop.f32.mrb[0].mxu0
    %v1032 = vadd.f32 %v935, %v1031
    %v1033 = vpop.f32.mrb[0].mxu0
    %1034 = vdwg.mxu0
    %1035 = vmatprep.subr.mxu0 0.0
    %v1036 = vand.u32 %v545, 4294901760
    %v1037 = vsub.f32 %v545, %v1036
    %v1038 = vand.u32 %v1037, 4294901760
    %1039 = vmatpush1.msra.mxu0 %v1038
    %1040 = vmatprep.subr.mxu0 0.0
    %v1041 = vand.u32 %v546, 4294901760
    %v1042 = vsub.f32 %v546, %v1041
    %v1043 = vand.u32 %v1042, 4294901760
    %1044 = vmatpush1.msra.mxu0 %v1043
    %1045 = vmatprep.subr.mxu0 0.0
    %v1046 = vand.u32 %v547, 4294901760
    %v1047 = vsub.f32 %v547, %v1046
    %v1048 = vand.u32 %v1047, 4294901760
    %1049 = vmatpush1.msra.mxu0 %v1048
    %1050 = vmatprep.subr.mxu0 0.0
    %v1051 = vand.u32 %v548, 4294901760
    %v1052 = vsub.f32 %v548, %v1051
    %v1053 = vand.u32 %v1052, 4294901760
    %1054 = vmatpush1.msra.mxu0 %v1053
    %1055 = vmatprep.subr.mxu0 0.0
    %v1056 = vand.u32 %v549, 4294901760
    %v1057 = vsub.f32 %v549, %v1056
    %v1058 = vand.u32 %v1057, 4294901760
    %1059 = vmatpush1.msra.mxu0 %v1058
    %1060 = vmatprep.subr.mxu0 0.0
    %v1061 = vand.u32 %v550, 4294901760
    %v1062 = vsub.f32 %v550, %v1061
    %v1063 = vand.u32 %v1062, 4294901760
    %1064 = vmatpush1.msra.mxu0 %v1063
    %1065 = vmatprep.subr.mxu0 0.0
    %v1066 = vand.u32 %v551, 4294901760
    %v1067 = vsub.f32 %v551, %v1066
    %v1068 = vand.u32 %v1067, 4294901760
    %1069 = vmatpush1.msra.mxu0 %v1068
    %1070 = vmatprep.subr.mxu0 0.0
    %v1071 = vand.u32 %v552, 4294901760
    %v1072 = vsub.f32 %v552, %v1071
    %v1073 = vand.u32 %v1072, 4294901760
    %1074 = vmatpush1.msra.mxu0 %v1073
    %1075 = vmatprep.subr.mxu0 0.0
    %v1076 = vand.u32 %v553, 4294901760
    %v1077 = vsub.f32 %v553, %v1076
    %v1078 = vand.u32 %v1077, 4294901760
    %1079 = vmatpush1.msra.mxu0 %v1078
    %1080 = vmatprep.subr.mxu0 0.0
    %v1081 = vand.u32 %v554, 4294901760
    %v1082 = vsub.f32 %v554, %v1081
    %v1083 = vand.u32 %v1082, 4294901760
    %1084 = vmatpush1.msra.mxu0 %v1083
    %1085 = vmatprep.subr.mxu0 0.0
    %v1086 = vand.u32 %v555, 4294901760
    %v1087 = vsub.f32 %v555, %v1086
    %v1088 = vand.u32 %v1087, 4294901760
    %1089 = vmatpush1.msra.mxu0 %v1088
    %1090 = vmatprep.subr.mxu0 0.0
    %v1091 = vand.u32 %v556, 4294901760
    %v1092 = vsub.f32 %v556, %v1091
    %v1093 = vand.u32 %v1092, 4294901760
    %1094 = vmatpush1.msra.mxu0 %v1093
    %1095 = vmatprep.subr.mxu0 0.0
    %v1096 = vand.u32 %v557, 4294901760
    %v1097 = vsub.f32 %v557, %v1096
    %v1098 = vand.u32 %v1097, 4294901760
    %1099 = vmatpush1.msra.mxu0 %v1098
    %1100 = vmatprep.subr.mxu0 0.0
    %v1101 = vand.u32 %v558, 4294901760
    %v1102 = vsub.f32 %v558, %v1101
    %v1103 = vand.u32 %v1102, 4294901760
    %1104 = vmatpush1.msra.mxu0 %v1103
    %1105 = vmatprep.subr.mxu0 0.0
    %v1106 = vand.u32 %v559, 4294901760
    %v1107 = vsub.f32 %v559, %v1106
    %v1108 = vand.u32 %v1107, 4294901760
    %1109 = vmatpush1.msra.mxu0 %v1108
    %1110 = vmatprep.subr.mxu0 0.0
    %v1111 = vand.u32 %v560, 4294901760
    %v1112 = vsub.f32 %v560, %v1111
    %v1113 = vand.u32 %v1112, 4294901760
    %1114 = vmatpush1.msra.mxu0 %v1113
    %1115 = vmatprep.subr.mxu0 0.0
    %1116 = vmatpush1.msra.mxu0 0.0
    %1117 = vmatprep.subr.mxu0 0.0
    %1118 = vmatpush1.msra.mxu0 0.0
    %1119 = vmatprep.subr.mxu0 0.0
    %1120 = vmatpush1.msra.mxu0 0.0
    %1121 = vmatprep.subr.mxu0 0.0
    %1122 = vmatpush1.msra.mxu0 0.0
    %1123 = vmatprep.subr.mxu0 0.0
    %1124 = vmatpush1.msra.mxu0 0.0
    %1125 = vmatprep.subr.mxu0 0.0
    %1126 = vmatpush1.msra.mxu0 0.0
    %1127 = vmatprep.subr.mxu0 0.0
    %1128 = vmatpush1.msra.mxu0 0.0
    %1129 = vmatprep.subr.mxu0 0.0
    %1130 = vmatpush1.msra.mxu0 0.0
    %1131 = vmatprep.subr.mxu0 0.0
    %1132 = vmatpush1.msra.mxu0 0.0
    %1133 = vmatprep.subr.mxu0 0.0
    %1134 = vmatpush1.msra.mxu0 0.0
    %1135 = vmatprep.subr.mxu0 0.0
    %1136 = vmatpush1.msra.mxu0 0.0
    %1137 = vmatprep.subr.mxu0 0.0
    %1138 = vmatpush1.msra.mxu0 0.0
    %1139 = vmatprep.subr.mxu0 0.0
    %1140 = vmatpush1.msra.mxu0 0.0
    %1141 = vmatprep.subr.mxu0 0.0
    %1142 = vmatpush1.msra.mxu0 0.0
    %1143 = vmatprep.subr.mxu0 0.0
    %1144 = vmatpush1.msra.mxu0 0.0
    %1145 = vmatprep.subr.mxu0 0.0
    %1146 = vmatpush1.msra.mxu0 0.0
    %1147 = vmatprep.mubr.f32.mxu0 0.0
    %v1148 = vand.u32 %v543, 4294901760
    %1149 = vmatmul.mubr.f32.gmra.mrb[0].mxu0 %v1148
    %v1150 = vpop.f32.mrb[0].mxu0
    %v1151 = vadd.f32 %v1024, %v1150
    %v1152 = vpop.f32.mrb[0].mxu0
    %1153 = vmatprep.mubr.f32.mxu0 0.0
    %v1154 = vand.u32 %v544, 4294901760
    %1155 = vmatmul.mubr.f32.gmra.mrb[0].mxu0 %v1154
    %v1156 = vpop.f32.mrb[0].mxu0
    %v1157 = vadd.f32 %v1032, %v1156
    %v1158 = vpop.f32.mrb[0].mxu0
    %1159 = vdwg.mxu0
    %1160 = vmatprep.subr.mxu0 0.0
    %v1161 = vand.u32 %v545, 4294901760
    %1162 = vmatpush1.msra.mxu0 %v1161
    %1163 = vmatprep.subr.mxu0 0.0
    %v1164 = vand.u32 %v546, 4294901760
    %1165 = vmatpush1.msra.mxu0 %v1164
    %1166 = vmatprep.subr.mxu0 0.0
    %v1167 = vand.u32 %v547, 4294901760
    %1168 = vmatpush1.msra.mxu0 %v1167
    %1169 = vmatprep.subr.mxu0 0.0
    %v1170 = vand.u32 %v548, 4294901760
    %1171 = vmatpush1.msra.mxu0 %v1170
    %1172 = vmatprep.subr.mxu0 0.0
    %v1173 = vand.u32 %v549, 4294901760
    %1174 = vmatpush1.msra.mxu0 %v1173
    %1175 = vmatprep.subr.mxu0 0.0
    %v1176 = vand.u32 %v550, 4294901760
    %1177 = vmatpush1.msra.mxu0 %v1176
    %1178 = vmatprep.subr.mxu0 0.0
    %v1179 = vand.u32 %v551, 4294901760
    %1180 = vmatpush1.msra.mxu0 %v1179
    %1181 = vmatprep.subr.mxu0 0.0
    %v1182 = vand.u32 %v552, 4294901760
    %1183 = vmatpush1.msra.mxu0 %v1182
    %1184 = vmatprep.subr.mxu0 0.0
    %v1185 = vand.u32 %v553, 4294901760
    %1186 = vmatpush1.msra.mxu0 %v1185
    %1187 = vmatprep.subr.mxu0 0.0
    %v1188 = vand.u32 %v554, 4294901760
    %1189 = vmatpush1.msra.mxu0 %v1188
    %1190 = vmatprep.subr.mxu0 0.0
    %v1191 = vand.u32 %v555, 4294901760
    %1192 = vmatpush1.msra.mxu0 %v1191
    %1193 = vmatprep.subr.mxu0 0.0
    %v1194 = vand.u32 %v556, 4294901760
    %1195 = vmatpush1.msra.mxu0 %v1194
    %1196 = vmatprep.subr.mxu0 0.0
    %v1197 = vand.u32 %v557, 4294901760
    %1198 = vmatpush1.msra.mxu0 %v1197
    %1199 = vmatprep.subr.mxu0 0.0
    %v1200 = vand.u32 %v558, 4294901760
    %1201 = vmatpush1.msra.mxu0 %v1200
    %1202 = vmatprep.subr.mxu0 0.0
    %v1203 = vand.u32 %v559, 4294901760
    %1204 = vmatpush1.msra.mxu0 %v1203
    %1205 = vmatprep.subr.mxu0 0.0
    %v1206 = vand.u32 %v560, 4294901760
    %1207 = vmatpush1.msra.mxu0 %v1206
    %1208 = vmatprep.subr.mxu0 0.0
    %1209 = vmatpush1.msra.mxu0 0.0
    %1210 = vmatprep.subr.mxu0 0.0
    %1211 = vmatpush1.msra.mxu0 0.0
    %1212 = vmatprep.subr.mxu0 0.0
    %1213 = vmatpush1.msra.mxu0 0.0
    %1214 = vmatprep.subr.mxu0 0.0
    %1215 = vmatpush1.msra.mxu0 0.0
    %1216 = vmatprep.subr.mxu0 0.0
    %1217 = vmatpush1.msra.mxu0 0.0
    %1218 = vmatprep.subr.mxu0 0.0
    %1219 = vmatpush1.msra.mxu0 0.0
    %1220 = vmatprep.subr.mxu0 0.0
    %1221 = vmatpush1.msra.mxu0 0.0
    %1222 = vmatprep.subr.mxu0 0.0
    %1223 = vmatpush1.msra.mxu0 0.0
    %1224 = vmatprep.subr.mxu0 0.0
    %1225 = vmatpush1.msra.mxu0 0.0
    %1226 = vmatprep.subr.mxu0 0.0
    %1227 = vmatpush1.msra.mxu0 0.0
    %1228 = vmatprep.subr.mxu0 0.0
    %1229 = vmatpush1.msra.mxu0 0.0
    %1230 = vmatprep.subr.mxu0 0.0
    %1231 = vmatpush1.msra.mxu0 0.0
    %1232 = vmatprep.subr.mxu0 0.0
    %1233 = vmatpush1.msra.mxu0 0.0
    %1234 = vmatprep.subr.mxu0 0.0
    %1235 = vmatpush1.msra.mxu0 0.0
    %1236 = vmatprep.subr.mxu0 0.0
    %1237 = vmatpush1.msra.mxu0 0.0
    %1238 = vmatprep.subr.mxu0 0.0
    %1239 = vmatpush1.msra.mxu0 0.0
    %1240 = vmatprep.mubr.f32.mxu0 0.0
    %v1241 = vand.u32 %v543, 4294901760
    %1242 = vmatmul.mubr.f32.gmra.mrb[0].mxu0 %v1241
    %v1243 = vpop.f32.mrb[0].mxu0
    %v1244 = vadd.f32 %v1151, %v1243
    %v1245 = vpop.f32.mrb[0].mxu0
    %1246 = vmatprep.mubr.f32.mxu0 0.0
    %v1247 = vand.u32 %v544, 4294901760
    %1248 = vmatmul.mubr.f32.gmra.mrb[0].mxu0 %v1247
    %v1249 = vpop.f32.mrb[0].mxu0
    %v1250 = vadd.f32 %v1157, %v1249
    %v1251 = vpop.f32.mrb[0].mxu0
    %1252 = vdwg.mxu0
    %v1253 = vmax.f32 %v1244, 0.0
    %v1254 = vmax.f32 %v1250, 0.0
    %s1255 = scalar_lea.vmem [#allocation2], 128
    %v1256 = vld [vmem:[%s1255] sm:$0xff]
    %v1257 = vld [vmem:[%s1255 + $0x8] sm:$0xff]
    %v1258 = vld [vmem:[%s1255 + $0x10] sm:$0xff]
    %v1259 = vld [vmem:[%s1255 + $0x18] sm:$0xff]
    %v1260 = vld [vmem:[%s1255 + $0x20] sm:$0xff]
    %v1261 = vld [vmem:[%s1255 + $0x28] sm:$0xff]
    %v1262 = vld [vmem:[%s1255 + $0x30] sm:$0xff]
    %v1263 = vld [vmem:[%s1255 + $0x38] sm:$0xff]
    %v1264 = vld [vmem:[%s1255 + $0x40] sm:$0xff]
    %v1265 = vld [vmem:[%s1255 + $0x48] sm:$0xff]
    %v1266 = vld [vmem:[%s1255 + $0x50] sm:$0xff]
    %v1267 = vld [vmem:[%s1255 + $0x58] sm:$0xff]
    %v1268 = vld [vmem:[%s1255 + $0x60] sm:$0xff]
    %v1269 = vld [vmem:[%s1255 + $0x68] sm:$0xff]
    %v1270 = vld [vmem:[%s1255 + $0x70] sm:$0xff]
    %v1271 = vld [vmem:[%s1255 + $0x78] sm:$0xff]
    %s1272 = scalar_lea.vmem %s3, 2
    %v1273 = vld [vmem:[%s1272] sm:$0x1]
    %v1275 = vlaneseq
    %v1276 = vshrl.u32 %v1275, 7
    %v1277 = vsub.s32 0, %v1276
    %v1278 = vrot.slane %v1273, %v1277
    %1280 = vmatprep.subr.mxu0 0.0
    %v1281 = vand.u32 %v1256, 4294901760
    %1282 = vmatpush1.msra.mxu0 %v1281
    %1283 = vmatprep.subr.mxu0 0.0
    %v1284 = vand.u32 %v1257, 4294901760
    %1285 = vmatpush1.msra.mxu0 %v1284
    %1286 = vmatprep.subr.mxu0 0.0
    %v1287 = vand.u32 %v1258, 4294901760
    %1288 = vmatpush1.msra.mxu0 %v1287
    %1289 = vmatprep.subr.mxu0 0.0
    %v1290 = vand.u32 %v1259, 4294901760
    %1291 = vmatpush1.msra.mxu0 %v1290
    %1292 = vmatprep.subr.mxu0 0.0
    %v1293 = vand.u32 %v1260, 4294901760
    %1294 = vmatpush1.msra.mxu0 %v1293
    %1295 = vmatprep.subr.mxu0 0.0
    %v1296 = vand.u32 %v1261, 4294901760
    %1297 = vmatpush1.msra.mxu0 %v1296
    %1298 = vmatprep.subr.mxu0 0.0
    %v1299 = vand.u32 %v1262, 4294901760
    %1300 = vmatpush1.msra.mxu0 %v1299
    %1301 = vmatprep.subr.mxu0 0.0
    %v1302 = vand.u32 %v1263, 4294901760
    %1303 = vmatpush1.msra.mxu0 %v1302
    %1304 = vmatprep.subr.mxu0 0.0
    %v1305 = vand.u32 %v1264, 4294901760
    %1306 = vmatpush1.msra.mxu0 %v1305
    %1307 = vmatprep.subr.mxu0 0.0
    %v1308 = vand.u32 %v1265, 4294901760
    %1309 = vmatpush1.msra.mxu0 %v1308
    %1310 = vmatprep.subr.mxu0 0.0
    %v1311 = vand.u32 %v1266, 4294901760
    %1312 = vmatpush1.msra.mxu0 %v1311
    %1313 = vmatprep.subr.mxu0 0.0
    %v1314 = vand.u32 %v1267, 4294901760
    %1315 = vmatpush1.msra.mxu0 %v1314
    %1316 = vmatprep.subr.mxu0 0.0
    %v1317 = vand.u32 %v1268, 4294901760
    %1318 = vmatpush1.msra.mxu0 %v1317
    %1319 = vmatprep.subr.mxu0 0.0
    %v1320 = vand.u32 %v1269, 4294901760
    %1321 = vmatpush1.msra.mxu0 %v1320
    %1322 = vmatprep.subr.mxu0 0.0
    %v1323 = vand.u32 %v1270, 4294901760
    %1324 = vmatpush1.msra.mxu0 %v1323
    %1325 = vmatprep.subr.mxu0 0.0
    %v1326 = vand.u32 %v1271, 4294901760
    %1327 = vmatpush1.msra.mxu0 %v1326
    %1328 = vmatprep.subr.mxu0 0.0
    %1329 = vmatpush1.msra.mxu0 0.0
    %1330 = vmatprep.subr.mxu0 0.0
    %1331 = vmatpush1.msra.mxu0 0.0
    %1332 = vmatprep.subr.mxu0 0.0
    %1333 = vmatpush1.msra.mxu0 0.0
    %1334 = vmatprep.subr.mxu0 0.0
    %1335 = vmatpush1.msra.mxu0 0.0
    %1336 = vmatprep.subr.mxu0 0.0
    %1337 = vmatpush1.msra.mxu0 0.0
    %1338 = vmatprep.subr.mxu0 0.0
    %1339 = vmatpush1.msra.mxu0 0.0
    %1340 = vmatprep.subr.mxu0 0.0
    %1341 = vmatpush1.msra.mxu0 0.0
    %1342 = vmatprep.subr.mxu0 0.0
    %1343 = vmatpush1.msra.mxu0 0.0
    %1344 = vmatprep.subr.mxu0 0.0
    %1345 = vmatpush1.msra.mxu0 0.0
    %1346 = vmatprep.subr.mxu0 0.0
    %1347 = vmatpush1.msra.mxu0 0.0
    %1348 = vmatprep.subr.mxu0 0.0
    %1349 = vmatpush1.msra.mxu0 0.0
    %1350 = vmatprep.subr.mxu0 0.0
    %1351 = vmatpush1.msra.mxu0 0.0
    %1352 = vmatprep.subr.mxu0 0.0
    %1353 = vmatpush1.msra.mxu0 0.0
    %1354 = vmatprep.subr.mxu0 0.0
    %1355 = vmatpush1.msra.mxu0 0.0
    %1356 = vmatprep.subr.mxu0 0.0
    %1357 = vmatpush1.msra.mxu0 0.0
    %1358 = vmatprep.subr.mxu0 0.0
    %1359 = vmatpush1.msra.mxu0 0.0
    %1360 = vmatprep.mubr.f32.mxu0 0.0
    %v1361 = vand.u32 %v1253, 4294901760
    %v1362 = vsub.f32 %v1253, %v1361
    %v1363 = vand.u32 %v1362, 4294901760
    %v1364 = vsub.f32 %v1362, %v1363
    %v1365 = vand.u32 %v1364, 4294901760
    %1366 = vmatmul.mubr.f32.gmra.mrb[0].mxu0 %v1365
    %v1367 = vpop.f32.mrb[0].mxu0
    %v1368 = vadd.f32 %v1278, %v1367
    %v1369 = vpop.f32.mrb[0].mxu0
    %1370 = vmatprep.mubr.f32.mxu0 0.0
    %v1371 = vand.u32 %v1254, 4294901760
    %v1372 = vsub.f32 %v1254, %v1371
    %v1373 = vand.u32 %v1372, 4294901760
    %v1374 = vsub.f32 %v1372, %v1373
    %v1375 = vand.u32 %v1374, 4294901760
    %1376 = vmatmul.mubr.f32.gmra.mrb[0].mxu0 %v1375
    %v1377 = vpop.f32.mrb[0].mxu0
    %v1378 = vadd.f32 %v1278, %v1377
    %v1379 = vpop.f32.mrb[0].mxu0
    %1380 = vdwg.mxu0
    %1381 = vmatprep.subr.mxu0 0.0
    %v1382 = vand.u32 %v1256, 4294901760
    %v1383 = vsub.f32 %v1256, %v1382
    %v1384 = vand.u32 %v1383, 4294901760
    %v1385 = vsub.f32 %v1383, %v1384
    %v1386 = vand.u32 %v1385, 4294901760
    %1387 = vmatpush1.msra.mxu0 %v1386
    %1388 = vmatprep.subr.mxu0 0.0
    %v1389 = vand.u32 %v1257, 4294901760
    %v1390 = vsub.f32 %v1257, %v1389
    %v1391 = vand.u32 %v1390, 4294901760
    %v1392 = vsub.f32 %v1390, %v1391
    %v1393 = vand.u32 %v1392, 4294901760
    %1394 = vmatpush1.msra.mxu0 %v1393
    %1395 = vmatprep.subr.mxu0 0.0
    %v1396 = vand.u32 %v1258, 4294901760
    %v1397 = vsub.f32 %v1258, %v1396
    %v1398 = vand.u32 %v1397, 4294901760
    %v1399 = vsub.f32 %v1397, %v1398
    %v1400 = vand.u32 %v1399, 4294901760
    %1401 = vmatpush1.msra.mxu0 %v1400
    %1402 = vmatprep.subr.mxu0 0.0
    %v1403 = vand.u32 %v1259, 4294901760
    %v1404 = vsub.f32 %v1259, %v1403
    %v1405 = vand.u32 %v1404, 4294901760
    %v1406 = vsub.f32 %v1404, %v1405
    %v1407 = vand.u32 %v1406, 4294901760
    %1408 = vmatpush1.msra.mxu0 %v1407
    %1409 = vmatprep.subr.mxu0 0.0
    %v1410 = vand.u32 %v1260, 4294901760
    %v1411 = vsub.f32 %v1260, %v1410
    %v1412 = vand.u32 %v1411, 4294901760
    %v1413 = vsub.f32 %v1411, %v1412
    %v1414 = vand.u32 %v1413, 4294901760
    %1415 = vmatpush1.msra.mxu0 %v1414
    %1416 = vmatprep.subr.mxu0 0.0
    %v1417 = vand.u32 %v1261, 4294901760
    %v1418 = vsub.f32 %v1261, %v1417
    %v1419 = vand.u32 %v1418, 4294901760
    %v1420 = vsub.f32 %v1418, %v1419
    %v1421 = vand.u32 %v1420, 4294901760
    %1422 = vmatpush1.msra.mxu0 %v1421
    %1423 = vmatprep.subr.mxu0 0.0
    %v1424 = vand.u32 %v1262, 4294901760
    %v1425 = vsub.f32 %v1262, %v1424
    %v1426 = vand.u32 %v1425, 4294901760
    %v1427 = vsub.f32 %v1425, %v1426
    %v1428 = vand.u32 %v1427, 4294901760
    %1429 = vmatpush1.msra.mxu0 %v1428
    %1430 = vmatprep.subr.mxu0 0.0
    %v1431 = vand.u32 %v1263, 4294901760
    %v1432 = vsub.f32 %v1263, %v1431
    %v1433 = vand.u32 %v1432, 4294901760
    %v1434 = vsub.f32 %v1432, %v1433
    %v1435 = vand.u32 %v1434, 4294901760
    %1436 = vmatpush1.msra.mxu0 %v1435
    %1437 = vmatprep.subr.mxu0 0.0
    %v1438 = vand.u32 %v1264, 4294901760
    %v1439 = vsub.f32 %v1264, %v1438
    %v1440 = vand.u32 %v1439, 4294901760
    %v1441 = vsub.f32 %v1439, %v1440
    %v1442 = vand.u32 %v1441, 4294901760
    %1443 = vmatpush1.msra.mxu0 %v1442
    %1444 = vmatprep.subr.mxu0 0.0
    %v1445 = vand.u32 %v1265, 4294901760
    %v1446 = vsub.f32 %v1265, %v1445
    %v1447 = vand.u32 %v1446, 4294901760
    %v1448 = vsub.f32 %v1446, %v1447
    %v1449 = vand.u32 %v1448, 4294901760
    %1450 = vmatpush1.msra.mxu0 %v1449
    %1451 = vmatprep.subr.mxu0 0.0
    %v1452 = vand.u32 %v1266, 4294901760
    %v1453 = vsub.f32 %v1266, %v1452
    %v1454 = vand.u32 %v1453, 4294901760
    %v1455 = vsub.f32 %v1453, %v1454
    %v1456 = vand.u32 %v1455, 4294901760
    %1457 = vmatpush1.msra.mxu0 %v1456
    %1458 = vmatprep.subr.mxu0 0.0
    %v1459 = vand.u32 %v1267, 4294901760
    %v1460 = vsub.f32 %v1267, %v1459
    %v1461 = vand.u32 %v1460, 4294901760
    %v1462 = vsub.f32 %v1460, %v1461
    %v1463 = vand.u32 %v1462, 4294901760
    %1464 = vmatpush1.msra.mxu0 %v1463
    %1465 = vmatprep.subr.mxu0 0.0
    %v1466 = vand.u32 %v1268, 4294901760
    %v1467 = vsub.f32 %v1268, %v1466
    %v1468 = vand.u32 %v1467, 4294901760
    %v1469 = vsub.f32 %v1467, %v1468
    %v1470 = vand.u32 %v1469, 4294901760
    %1471 = vmatpush1.msra.mxu0 %v1470
    %1472 = vmatprep.subr.mxu0 0.0
    %v1473 = vand.u32 %v1269, 4294901760
    %v1474 = vsub.f32 %v1269, %v1473
    %v1475 = vand.u32 %v1474, 4294901760
    %v1476 = vsub.f32 %v1474, %v1475
    %v1477 = vand.u32 %v1476, 4294901760
    %1478 = vmatpush1.msra.mxu0 %v1477
    %1479 = vmatprep.subr.mxu0 0.0
    %v1480 = vand.u32 %v1270, 4294901760
    %v1481 = vsub.f32 %v1270, %v1480
    %v1482 = vand.u32 %v1481, 4294901760
    %v1483 = vsub.f32 %v1481, %v1482
    %v1484 = vand.u32 %v1483, 4294901760
    %1485 = vmatpush1.msra.mxu0 %v1484
    %1486 = vmatprep.subr.mxu0 0.0
    %v1487 = vand.u32 %v1271, 4294901760
    %v1488 = vsub.f32 %v1271, %v1487
    %v1489 = vand.u32 %v1488, 4294901760
    %v1490 = vsub.f32 %v1488, %v1489
    %v1491 = vand.u32 %v1490, 4294901760
    %1492 = vmatpush1.msra.mxu0 %v1491
    %1493 = vmatprep.subr.mxu0 0.0
    %1494 = vmatpush1.msra.mxu0 0.0
    %1495 = vmatprep.subr.mxu0 0.0
    %1496 = vmatpush1.msra.mxu0 0.0
    %1497 = vmatprep.subr.mxu0 0.0
    %1498 = vmatpush1.msra.mxu0 0.0
    %1499 = vmatprep.subr.mxu0 0.0
    %1500 = vmatpush1.msra.mxu0 0.0
    %1501 = vmatprep.subr.mxu0 0.0
    %1502 = vmatpush1.msra.mxu0 0.0
    %1503 = vmatprep.subr.mxu0 0.0
    %1504 = vmatpush1.msra.mxu0 0.0
    %1505 = vmatprep.subr.mxu0 0.0
    %1506 = vmatpush1.msra.mxu0 0.0
    %1507 = vmatprep.subr.mxu0 0.0
    %1508 = vmatpush1.msra.mxu0 0.0
    %1509 = vmatprep.subr.mxu0 0.0
    %1510 = vmatpush1.msra.mxu0 0.0
    %1511 = vmatprep.subr.mxu0 0.0
    %1512 = vmatpush1.msra.mxu0 0.0
    %1513 = vmatprep.subr.mxu0 0.0
    %1514 = vmatpush1.msra.mxu0 0.0
    %1515 = vmatprep.subr.mxu0 0.0
    %1516 = vmatpush1.msra.mxu0 0.0
    %1517 = vmatprep.subr.mxu0 0.0
    %1518 = vmatpush1.msra.mxu0 0.0
    %1519 = vmatprep.subr.mxu0 0.0
    %1520 = vmatpush1.msra.mxu0 0.0
    %1521 = vmatprep.subr.mxu0 0.0
    %1522 = vmatpush1.msra.mxu0 0.0
    %1523 = vmatprep.subr.mxu0 0.0
    %1524 = vmatpush1.msra.mxu0 0.0
    %1525 = vmatprep.mubr.f32.mxu0 0.0
    %v1526 = vand.u32 %v1253, 4294901760
    %1527 = vmatmul.mubr.f32.gmra.mrb[0].mxu0 %v1526
    %v1528 = vpop.f32.mrb[0].mxu0
    %v1529 = vadd.f32 %v1368, %v1528
    %v1530 = vpop.f32.mrb[0].mxu0
    %1531 = vmatprep.mubr.f32.mxu0 0.0
    %v1532 = vand.u32 %v1254, 4294901760
    %1533 = vmatmul.mubr.f32.gmra.mrb[0].mxu0 %v1532
    %v1534 = vpop.f32.mrb[0].mxu0
    %v1535 = vadd.f32 %v1378, %v1534
    %v1536 = vpop.f32.mrb[0].mxu0
    %1537 = vdwg.mxu0
    %1538 = vmatprep.subr.mxu0 0.0
    %v1539 = vand.u32 %v1256, 4294901760
    %v1540 = vsub.f32 %v1256, %v1539
    %1541 = vmatpush1.msra.mxu0 %v1540
    %1542 = vmatprep.subr.mxu0 0.0
    %v1543 = vand.u32 %v1257, 4294901760
    %v1544 = vsub.f32 %v1257, %v1543
    %1545 = vmatpush1.msra.mxu0 %v1544
    %1546 = vmatprep.subr.mxu0 0.0
    %v1547 = vand.u32 %v1258, 4294901760
    %v1548 = vsub.f32 %v1258, %v1547
    %1549 = vmatpush1.msra.mxu0 %v1548
    %1550 = vmatprep.subr.mxu0 0.0
    %v1551 = vand.u32 %v1259, 4294901760
    %v1552 = vsub.f32 %v1259, %v1551
    %1553 = vmatpush1.msra.mxu0 %v1552
    %1554 = vmatprep.subr.mxu0 0.0
    %v1555 = vand.u32 %v1260, 4294901760
    %v1556 = vsub.f32 %v1260, %v1555
    %1557 = vmatpush1.msra.mxu0 %v1556
    %1558 = vmatprep.subr.mxu0 0.0
    %v1559 = vand.u32 %v1261, 4294901760
    %v1560 = vsub.f32 %v1261, %v1559
    %1561 = vmatpush1.msra.mxu0 %v1560
    %1562 = vmatprep.subr.mxu0 0.0
    %v1563 = vand.u32 %v1262, 4294901760
    %v1564 = vsub.f32 %v1262, %v1563
    %1565 = vmatpush1.msra.mxu0 %v1564
    %1566 = vmatprep.subr.mxu0 0.0
    %v1567 = vand.u32 %v1263, 4294901760
    %v1568 = vsub.f32 %v1263, %v1567
    %1569 = vmatpush1.msra.mxu0 %v1568
    %1570 = vmatprep.subr.mxu0 0.0
    %v1571 = vand.u32 %v1264, 4294901760
    %v1572 = vsub.f32 %v1264, %v1571
    %1573 = vmatpush1.msra.mxu0 %v1572
    %1574 = vmatprep.subr.mxu0 0.0
    %v1575 = vand.u32 %v1265, 4294901760
    %v1576 = vsub.f32 %v1265, %v1575
    %1577 = vmatpush1.msra.mxu0 %v1576
    %1578 = vmatprep.subr.mxu0 0.0
    %v1579 = vand.u32 %v1266, 4294901760
    %v1580 = vsub.f32 %v1266, %v1579
    %1581 = vmatpush1.msra.mxu0 %v1580
    %1582 = vmatprep.subr.mxu0 0.0
    %v1583 = vand.u32 %v1267, 4294901760
    %v1584 = vsub.f32 %v1267, %v1583
    %1585 = vmatpush1.msra.mxu0 %v1584
    %1586 = vmatprep.subr.mxu0 0.0
    %v1587 = vand.u32 %v1268, 4294901760
    %v1588 = vsub.f32 %v1268, %v1587
    %1589 = vmatpush1.msra.mxu0 %v1588
    %1590 = vmatprep.subr.mxu0 0.0
    %v1591 = vand.u32 %v1269, 4294901760
    %v1592 = vsub.f32 %v1269, %v1591
    %1593 = vmatpush1.msra.mxu0 %v1592
    %1594 = vmatprep.subr.mxu0 0.0
    %v1595 = vand.u32 %v1270, 4294901760
    %v1596 = vsub.f32 %v1270, %v1595
    %1597 = vmatpush1.msra.mxu0 %v1596
    %1598 = vmatprep.subr.mxu0 0.0
    %v1599 = vand.u32 %v1271, 4294901760
    %v1600 = vsub.f32 %v1271, %v1599
    %1601 = vmatpush1.msra.mxu0 %v1600
    %1602 = vmatprep.subr.mxu0 0.0
    %1603 = vmatpush1.msra.mxu0 0.0
    %1604 = vmatprep.subr.mxu0 0.0
    %1605 = vmatpush1.msra.mxu0 0.0
    %1606 = vmatprep.subr.mxu0 0.0
    %1607 = vmatpush1.msra.mxu0 0.0
    %1608 = vmatprep.subr.mxu0 0.0
    %1609 = vmatpush1.msra.mxu0 0.0
    %1610 = vmatprep.subr.mxu0 0.0
    %1611 = vmatpush1.msra.mxu0 0.0
    %1612 = vmatprep.subr.mxu0 0.0
    %1613 = vmatpush1.msra.mxu0 0.0
    %1614 = vmatprep.subr.mxu0 0.0
    %1615 = vmatpush1.msra.mxu0 0.0
    %1616 = vmatprep.subr.mxu0 0.0
    %1617 = vmatpush1.msra.mxu0 0.0
    %1618 = vmatprep.subr.mxu0 0.0
    %1619 = vmatpush1.msra.mxu0 0.0
    %1620 = vmatprep.subr.mxu0 0.0
    %1621 = vmatpush1.msra.mxu0 0.0
    %1622 = vmatprep.subr.mxu0 0.0
    %1623 = vmatpush1.msra.mxu0 0.0
    %1624 = vmatprep.subr.mxu0 0.0
    %1625 = vmatpush1.msra.mxu0 0.0
    %1626 = vmatprep.subr.mxu0 0.0
    %1627 = vmatpush1.msra.mxu0 0.0
    %1628 = vmatprep.subr.mxu0 0.0
    %1629 = vmatpush1.msra.mxu0 0.0
    %1630 = vmatprep.subr.mxu0 0.0
    %1631 = vmatpush1.msra.mxu0 0.0
    %1632 = vmatprep.subr.mxu0 0.0
    %1633 = vmatpush1.msra.mxu0 0.0
    %1634 = vmatprep.mubr.f32.mxu0 0.0
    %v1635 = vand.u32 %v1253, 4294901760
    %v1636 = vsub.f32 %v1253, %v1635
    %1637 = vmatmul.mubr.f32.gmra.mrb[0].mxu0 %v1636
    %v1638 = vpop.f32.mrb[0].mxu0
    %v1639 = vadd.f32 %v1529, %v1638
    %v1640 = vpop.f32.mrb[0].mxu0
    %1641 = vmatprep.mubr.f32.mxu0 0.0
    %v1642 = vand.u32 %v1254, 4294901760
    %v1643 = vsub.f32 %v1254, %v1642
    %1644 = vmatmul.mubr.f32.gmra.mrb[0].mxu0 %v1643
    %v1645 = vpop.f32.mrb[0].mxu0
    %v1646 = vadd.f32 %v1535, %v1645
    %v1647 = vpop.f32.mrb[0].mxu0
    %1648 = vdwg.mxu0
    %1649 = vmatprep.subr.mxu0 0.0
    %v1650 = vand.u32 %v1256, 4294901760
    %1651 = vmatpush1.msra.mxu0 %v1650
    %1652 = vmatprep.subr.mxu0 0.0
    %v1653 = vand.u32 %v1257, 4294901760
    %1654 = vmatpush1.msra.mxu0 %v1653
    %1655 = vmatprep.subr.mxu0 0.0
    %v1656 = vand.u32 %v1258, 4294901760
    %1657 = vmatpush1.msra.mxu0 %v1656
    %1658 = vmatprep.subr.mxu0 0.0
    %v1659 = vand.u32 %v1259, 4294901760
    %1660 = vmatpush1.msra.mxu0 %v1659
    %1661 = vmatprep.subr.mxu0 0.0
    %v1662 = vand.u32 %v1260, 4294901760
    %1663 = vmatpush1.msra.mxu0 %v1662
    %1664 = vmatprep.subr.mxu0 0.0
    %v1665 = vand.u32 %v1261, 4294901760
    %1666 = vmatpush1.msra.mxu0 %v1665
    %1667 = vmatprep.subr.mxu0 0.0
    %v1668 = vand.u32 %v1262, 4294901760
    %1669 = vmatpush1.msra.mxu0 %v1668
    %1670 = vmatprep.subr.mxu0 0.0
    %v1671 = vand.u32 %v1263, 4294901760
    %1672 = vmatpush1.msra.mxu0 %v1671
    %1673 = vmatprep.subr.mxu0 0.0
    %v1674 = vand.u32 %v1264, 4294901760
    %1675 = vmatpush1.msra.mxu0 %v1674
    %1676 = vmatprep.subr.mxu0 0.0
    %v1677 = vand.u32 %v1265, 4294901760
    %1678 = vmatpush1.msra.mxu0 %v1677
    %1679 = vmatprep.subr.mxu0 0.0
    %v1680 = vand.u32 %v1266, 4294901760
    %1681 = vmatpush1.msra.mxu0 %v1680
    %1682 = vmatprep.subr.mxu0 0.0
    %v1683 = vand.u32 %v1267, 4294901760
    %1684 = vmatpush1.msra.mxu0 %v1683
    %1685 = vmatprep.subr.mxu0 0.0
    %v1686 = vand.u32 %v1268, 4294901760
    %1687 = vmatpush1.msra.mxu0 %v1686
    %1688 = vmatprep.subr.mxu0 0.0
    %v1689 = vand.u32 %v1269, 4294901760
    %1690 = vmatpush1.msra.mxu0 %v1689
    %1691 = vmatprep.subr.mxu0 0.0
    %v1692 = vand.u32 %v1270, 4294901760
    %1693 = vmatpush1.msra.mxu0 %v1692
    %1694 = vmatprep.subr.mxu0 0.0
    %v1695 = vand.u32 %v1271, 4294901760
    %1696 = vmatpush1.msra.mxu0 %v1695
    %1697 = vmatprep.subr.mxu0 0.0
    %1698 = vmatpush1.msra.mxu0 0.0
    %1699 = vmatprep.subr.mxu0 0.0
    %1700 = vmatpush1.msra.mxu0 0.0
    %1701 = vmatprep.subr.mxu0 0.0
    %1702 = vmatpush1.msra.mxu0 0.0
    %1703 = vmatprep.subr.mxu0 0.0
    %1704 = vmatpush1.msra.mxu0 0.0
    %1705 = vmatprep.subr.mxu0 0.0
    %1706 = vmatpush1.msra.mxu0 0.0
    %1707 = vmatprep.subr.mxu0 0.0
    %1708 = vmatpush1.msra.mxu0 0.0
    %1709 = vmatprep.subr.mxu0 0.0
    %1710 = vmatpush1.msra.mxu0 0.0
    %1711 = vmatprep.subr.mxu0 0.0
    %1712 = vmatpush1.msra.mxu0 0.0
    %1713 = vmatprep.subr.mxu0 0.0
    %1714 = vmatpush1.msra.mxu0 0.0
    %1715 = vmatprep.subr.mxu0 0.0
    %1716 = vmatpush1.msra.mxu0 0.0
    %1717 = vmatprep.subr.mxu0 0.0
    %1718 = vmatpush1.msra.mxu0 0.0
    %1719 = vmatprep.subr.mxu0 0.0
    %1720 = vmatpush1.msra.mxu0 0.0
    %1721 = vmatprep.subr.mxu0 0.0
    %1722 = vmatpush1.msra.mxu0 0.0
    %1723 = vmatprep.subr.mxu0 0.0
    %1724 = vmatpush1.msra.mxu0 0.0
    %1725 = vmatprep.subr.mxu0 0.0
    %1726 = vmatpush1.msra.mxu0 0.0
    %1727 = vmatprep.subr.mxu0 0.0
    %1728 = vmatpush1.msra.mxu0 0.0
    %1729 = vmatprep.mubr.f32.mxu0 0.0
    %v1730 = vand.u32 %v1253, 4294901760
    %v1731 = vsub.f32 %v1253, %v1730
    %v1732 = vand.u32 %v1731, 4294901760
    %1733 = vmatmul.mubr.f32.gmra.mrb[0].mxu0 %v1732
    %v1734 = vpop.f32.mrb[0].mxu0
    %v1735 = vadd.f32 %v1639, %v1734
    %v1736 = vpop.f32.mrb[0].mxu0
    %1737 = vmatprep.mubr.f32.mxu0 0.0
    %v1738 = vand.u32 %v1254, 4294901760
    %v1739 = vsub.f32 %v1254, %v1738
    %v1740 = vand.u32 %v1739, 4294901760
    %1741 = vmatmul.mubr.f32.gmra.mrb[0].mxu0 %v1740
    %v1742 = vpop.f32.mrb[0].mxu0
    %v1743 = vadd.f32 %v1646, %v1742
    %v1744 = vpop.f32.mrb[0].mxu0
    %1745 = vdwg.mxu0
    %1746 = vmatprep.subr.mxu0 0.0
    %v1747 = vand.u32 %v1256, 4294901760
    %v1748 = vsub.f32 %v1256, %v1747
    %v1749 = vand.u32 %v1748, 4294901760
    %1750 = vmatpush1.msra.mxu0 %v1749
    %1751 = vmatprep.subr.mxu0 0.0
    %v1752 = vand.u32 %v1257, 4294901760
    %v1753 = vsub.f32 %v1257, %v1752
    %v1754 = vand.u32 %v1753, 4294901760
    %1755 = vmatpush1.msra.mxu0 %v1754
    %1756 = vmatprep.subr.mxu0 0.0
    %v1757 = vand.u32 %v1258, 4294901760
    %v1758 = vsub.f32 %v1258, %v1757
    %v1759 = vand.u32 %v1758, 4294901760
    %1760 = vmatpush1.msra.mxu0 %v1759
    %1761 = vmatprep.subr.mxu0 0.0
    %v1762 = vand.u32 %v1259, 4294901760
    %v1763 = vsub.f32 %v1259, %v1762
    %v1764 = vand.u32 %v1763, 4294901760
    %1765 = vmatpush1.msra.mxu0 %v1764
    %1766 = vmatprep.subr.mxu0 0.0
    %v1767 = vand.u32 %v1260, 4294901760
    %v1768 = vsub.f32 %v1260, %v1767
    %v1769 = vand.u32 %v1768, 4294901760
    %1770 = vmatpush1.msra.mxu0 %v1769
    %1771 = vmatprep.subr.mxu0 0.0
    %v1772 = vand.u32 %v1261, 4294901760
    %v1773 = vsub.f32 %v1261, %v1772
    %v1774 = vand.u32 %v1773, 4294901760
    %1775 = vmatpush1.msra.mxu0 %v1774
    %1776 = vmatprep.subr.mxu0 0.0
    %v1777 = vand.u32 %v1262, 4294901760
    %v1778 = vsub.f32 %v1262, %v1777
    %v1779 = vand.u32 %v1778, 4294901760
    %1780 = vmatpush1.msra.mxu0 %v1779
    %1781 = vmatprep.subr.mxu0 0.0
    %v1782 = vand.u32 %v1263, 4294901760
    %v1783 = vsub.f32 %v1263, %v1782
    %v1784 = vand.u32 %v1783, 4294901760
    %1785 = vmatpush1.msra.mxu0 %v1784
    %1786 = vmatprep.subr.mxu0 0.0
    %v1787 = vand.u32 %v1264, 4294901760
    %v1788 = vsub.f32 %v1264, %v1787
    %v1789 = vand.u32 %v1788, 4294901760
    %1790 = vmatpush1.msra.mxu0 %v1789
    %1791 = vmatprep.subr.mxu0 0.0
    %v1792 = vand.u32 %v1265, 4294901760
    %v1793 = vsub.f32 %v1265, %v1792
    %v1794 = vand.u32 %v1793, 4294901760
    %1795 = vmatpush1.msra.mxu0 %v1794
    %1796 = vmatprep.subr.mxu0 0.0
    %v1797 = vand.u32 %v1266, 4294901760
    %v1798 = vsub.f32 %v1266, %v1797
    %v1799 = vand.u32 %v1798, 4294901760
    %1800 = vmatpush1.msra.mxu0 %v1799
    %1801 = vmatprep.subr.mxu0 0.0
    %v1802 = vand.u32 %v1267, 4294901760
    %v1803 = vsub.f32 %v1267, %v1802
    %v1804 = vand.u32 %v1803, 4294901760
    %1805 = vmatpush1.msra.mxu0 %v1804
    %1806 = vmatprep.subr.mxu0 0.0
    %v1807 = vand.u32 %v1268, 4294901760
    %v1808 = vsub.f32 %v1268, %v1807
    %v1809 = vand.u32 %v1808, 4294901760
    %1810 = vmatpush1.msra.mxu0 %v1809
    %1811 = vmatprep.subr.mxu0 0.0
    %v1812 = vand.u32 %v1269, 4294901760
    %v1813 = vsub.f32 %v1269, %v1812
    %v1814 = vand.u32 %v1813, 4294901760
    %1815 = vmatpush1.msra.mxu0 %v1814
    %1816 = vmatprep.subr.mxu0 0.0
    %v1817 = vand.u32 %v1270, 4294901760
    %v1818 = vsub.f32 %v1270, %v1817
    %v1819 = vand.u32 %v1818, 4294901760
    %1820 = vmatpush1.msra.mxu0 %v1819
    %1821 = vmatprep.subr.mxu0 0.0
    %v1822 = vand.u32 %v1271, 4294901760
    %v1823 = vsub.f32 %v1271, %v1822
    %v1824 = vand.u32 %v1823, 4294901760
    %1825 = vmatpush1.msra.mxu0 %v1824
    %1826 = vmatprep.subr.mxu0 0.0
    %1827 = vmatpush1.msra.mxu0 0.0
    %1828 = vmatprep.subr.mxu0 0.0
    %1829 = vmatpush1.msra.mxu0 0.0
    %1830 = vmatprep.subr.mxu0 0.0
    %1831 = vmatpush1.msra.mxu0 0.0
    %1832 = vmatprep.subr.mxu0 0.0
    %1833 = vmatpush1.msra.mxu0 0.0
    %1834 = vmatprep.subr.mxu0 0.0
    %1835 = vmatpush1.msra.mxu0 0.0
    %1836 = vmatprep.subr.mxu0 0.0
    %1837 = vmatpush1.msra.mxu0 0.0
    %1838 = vmatprep.subr.mxu0 0.0
    %1839 = vmatpush1.msra.mxu0 0.0
    %1840 = vmatprep.subr.mxu0 0.0
    %1841 = vmatpush1.msra.mxu0 0.0
    %1842 = vmatprep.subr.mxu0 0.0
    %1843 = vmatpush1.msra.mxu0 0.0
    %1844 = vmatprep.subr.mxu0 0.0
    %1845 = vmatpush1.msra.mxu0 0.0
    %1846 = vmatprep.subr.mxu0 0.0
    %1847 = vmatpush1.msra.mxu0 0.0
    %1848 = vmatprep.subr.mxu0 0.0
    %1849 = vmatpush1.msra.mxu0 0.0
    %1850 = vmatprep.subr.mxu0 0.0
    %1851 = vmatpush1.msra.mxu0 0.0
    %1852 = vmatprep.subr.mxu0 0.0
    %1853 = vmatpush1.msra.mxu0 0.0
    %1854 = vmatprep.subr.mxu0 0.0
    %1855 = vmatpush1.msra.mxu0 0.0
    %1856 = vmatprep.subr.mxu0 0.0
    %1857 = vmatpush1.msra.mxu0 0.0
    %1858 = vmatprep.mubr.f32.mxu0 0.0
    %v1859 = vand.u32 %v1253, 4294901760
    %1860 = vmatmul.mubr.f32.gmra.mrb[0].mxu0 %v1859
    %v1861 = vpop.f32.mrb[0].mxu0
    %v1862 = vadd.f32 %v1735, %v1861
    %v1863 = vpop.f32.mrb[0].mxu0
    %1864 = vmatprep.mubr.f32.mxu0 0.0
    %v1865 = vand.u32 %v1254, 4294901760
    %1866 = vmatmul.mubr.f32.gmra.mrb[0].mxu0 %v1865
    %v1867 = vpop.f32.mrb[0].mxu0
    %v1868 = vadd.f32 %v1743, %v1867
    %v1869 = vpop.f32.mrb[0].mxu0
    %1870 = vdwg.mxu0
    %1871 = vmatprep.subr.mxu0 0.0
    %v1872 = vand.u32 %v1256, 4294901760
    %1873 = vmatpush1.msra.mxu0 %v1872
    %1874 = vmatprep.subr.mxu0 0.0
    %v1875 = vand.u32 %v1257, 4294901760
    %1876 = vmatpush1.msra.mxu0 %v1875
    %1877 = vmatprep.subr.mxu0 0.0
    %v1878 = vand.u32 %v1258, 4294901760
    %1879 = vmatpush1.msra.mxu0 %v1878
    %1880 = vmatprep.subr.mxu0 0.0
    %v1881 = vand.u32 %v1259, 4294901760
    %1882 = vmatpush1.msra.mxu0 %v1881
    %1883 = vmatprep.subr.mxu0 0.0
    %v1884 = vand.u32 %v1260, 4294901760
    %1885 = vmatpush1.msra.mxu0 %v1884
    %1886 = vmatprep.subr.mxu0 0.0
    %v1887 = vand.u32 %v1261, 4294901760
    %1888 = vmatpush1.msra.mxu0 %v1887
    %1889 = vmatprep.subr.mxu0 0.0
    %v1890 = vand.u32 %v1262, 4294901760
    %1891 = vmatpush1.msra.mxu0 %v1890
    %1892 = vmatprep.subr.mxu0 0.0
    %v1893 = vand.u32 %v1263, 4294901760
    %1894 = vmatpush1.msra.mxu0 %v1893
    %1895 = vmatprep.subr.mxu0 0.0
    %v1896 = vand.u32 %v1264, 4294901760
    %1897 = vmatpush1.msra.mxu0 %v1896
    %1898 = vmatprep.subr.mxu0 0.0
    %v1899 = vand.u32 %v1265, 4294901760
    %1900 = vmatpush1.msra.mxu0 %v1899
    %1901 = vmatprep.subr.mxu0 0.0
    %v1902 = vand.u32 %v1266, 4294901760
    %1903 = vmatpush1.msra.mxu0 %v1902
    %1904 = vmatprep.subr.mxu0 0.0
    %v1905 = vand.u32 %v1267, 4294901760
    %1906 = vmatpush1.msra.mxu0 %v1905
    %1907 = vmatprep.subr.mxu0 0.0
    %v1908 = vand.u32 %v1268, 4294901760
    %1909 = vmatpush1.msra.mxu0 %v1908
    %1910 = vmatprep.subr.mxu0 0.0
    %v1911 = vand.u32 %v1269, 4294901760
    %1912 = vmatpush1.msra.mxu0 %v1911
    %1913 = vmatprep.subr.mxu0 0.0
    %v1914 = vand.u32 %v1270, 4294901760
    %1915 = vmatpush1.msra.mxu0 %v1914
    %1916 = vmatprep.subr.mxu0 0.0
    %v1917 = vand.u32 %v1271, 4294901760
    %1918 = vmatpush1.msra.mxu0 %v1917
    %1919 = vmatprep.subr.mxu0 0.0
    %1920 = vmatpush1.msra.mxu0 0.0
    %1921 = vmatprep.subr.mxu0 0.0
    %1922 = vmatpush1.msra.mxu0 0.0
    %1923 = vmatprep.subr.mxu0 0.0
    %1924 = vmatpush1.msra.mxu0 0.0
    %1925 = vmatprep.subr.mxu0 0.0
    %1926 = vmatpush1.msra.mxu0 0.0
    %1927 = vmatprep.subr.mxu0 0.0
    %1928 = vmatpush1.msra.mxu0 0.0
    %1929 = vmatprep.subr.mxu0 0.0
    %1930 = vmatpush1.msra.mxu0 0.0
    %1931 = vmatprep.subr.mxu0 0.0
    %1932 = vmatpush1.msra.mxu0 0.0
    %1933 = vmatprep.subr.mxu0 0.0
    %1934 = vmatpush1.msra.mxu0 0.0
    %1935 = vmatprep.subr.mxu0 0.0
    %1936 = vmatpush1.msra.mxu0 0.0
    %1937 = vmatprep.subr.mxu0 0.0
    %1938 = vmatpush1.msra.mxu0 0.0
    %1939 = vmatprep.subr.mxu0 0.0
    %1940 = vmatpush1.msra.mxu0 0.0
    %1941 = vmatprep.subr.mxu0 0.0
    %1942 = vmatpush1.msra.mxu0 0.0
    %1943 = vmatprep.subr.mxu0 0.0
    %1944 = vmatpush1.msra.mxu0 0.0
    %1945 = vmatprep.subr.mxu0 0.0
    %1946 = vmatpush1.msra.mxu0 0.0
    %1947 = vmatprep.subr.mxu0 0.0
    %1948 = vmatpush1.msra.mxu0 0.0
    %1949 = vmatprep.subr.mxu0 0.0
    %1950 = vmatpush1.msra.mxu0 0.0
    %1951 = vmatprep.mubr.f32.mxu0 0.0
    %v1952 = vand.u32 %v1253, 4294901760
    %1953 = vmatmul.mubr.f32.gmra.mrb[0].mxu0 %v1952
    %v1954 = vpop.f32.mrb[0].mxu0
    %v1955 = vadd.f32 %v1862, %v1954
    %v1956 = vpop.f32.mrb[0].mxu0
    %1957 = vmatprep.mubr.f32.mxu0 0.0
    %v1958 = vand.u32 %v1254, 4294901760
    %1959 = vmatmul.mubr.f32.gmra.mrb[0].mxu0 %v1958
    %v1960 = vpop.f32.mrb[0].mxu0
    %v1961 = vadd.f32 %v1868, %v1960
    %v1962 = vpop.f32.mrb[0].mxu0
    %1963 = vdwg.mxu0
    %v1964 = vmax.f32 %v1955, 0.0
    %v1965 = vmax.f32 %v1961, 0.0
    %s1966 = scalar_lea.vmem [#allocation2], 256
    %v1967 = vld [vmem:[%s1966] sm:$0xff]
    %v1968 = vld [vmem:[%s1966 + $0x8] sm:$0xff]
    %v1969 = vld [vmem:[%s1966 + $0x10] sm:$0xff]
    %v1970 = vld [vmem:[%s1966 + $0x18] sm:$0xff]
    %v1971 = vld [vmem:[%s1966 + $0x20] sm:$0xff]
    %v1972 = vld [vmem:[%s1966 + $0x28] sm:$0xff]
    %v1973 = vld [vmem:[%s1966 + $0x30] sm:$0xff]
    %v1974 = vld [vmem:[%s1966 + $0x38] sm:$0xff]
    %v1975 = vld [vmem:[%s1966 + $0x40] sm:$0xff]
    %v1976 = vld [vmem:[%s1966 + $0x48] sm:$0xff]
    %v1977 = vld [vmem:[%s1966 + $0x50] sm:$0xff]
    %v1978 = vld [vmem:[%s1966 + $0x58] sm:$0xff]
    %v1979 = vld [vmem:[%s1966 + $0x60] sm:$0xff]
    %v1980 = vld [vmem:[%s1966 + $0x68] sm:$0xff]
    %v1981 = vld [vmem:[%s1966 + $0x70] sm:$0xff]
    %v1982 = vld [vmem:[%s1966 + $0x78] sm:$0xff]
    %s1983 = scalar_lea.vmem %s3, 3
    %v1984 = vld [vmem:[%s1983] sm:$0x1]
    %v1986 = vlaneseq
    %v1987 = vshrl.u32 %v1986, 7
    %v1988 = vsub.s32 0, %v1987
    %v1989 = vrot.slane %v1984, %v1988
    %1991 = vmatprep.subr.mxu0 0.0
    %v1992 = vand.u32 %v1967, 4294901760
    %1993 = vmatpush1.msra.mxu0 %v1992
    %1994 = vmatprep.subr.mxu0 0.0
    %v1995 = vand.u32 %v1968, 4294901760
    %1996 = vmatpush1.msra.mxu0 %v1995
    %1997 = vmatprep.subr.mxu0 0.0
    %v1998 = vand.u32 %v1969, 4294901760
    %1999 = vmatpush1.msra.mxu0 %v1998
    %2000 = vmatprep.subr.mxu0 0.0
    %v2001 = vand.u32 %v1970, 4294901760
    %2002 = vmatpush1.msra.mxu0 %v2001
    %2003 = vmatprep.subr.mxu0 0.0
    %v2004 = vand.u32 %v1971, 4294901760
    %2005 = vmatpush1.msra.mxu0 %v2004
    %2006 = vmatprep.subr.mxu0 0.0
    %v2007 = vand.u32 %v1972, 4294901760
    %2008 = vmatpush1.msra.mxu0 %v2007
    %2009 = vmatprep.subr.mxu0 0.0
    %v2010 = vand.u32 %v1973, 4294901760
    %2011 = vmatpush1.msra.mxu0 %v2010
    %2012 = vmatprep.subr.mxu0 0.0
    %v2013 = vand.u32 %v1974, 4294901760
    %2014 = vmatpush1.msra.mxu0 %v2013
    %2015 = vmatprep.subr.mxu0 0.0
    %v2016 = vand.u32 %v1975, 4294901760
    %2017 = vmatpush1.msra.mxu0 %v2016
    %2018 = vmatprep.subr.mxu0 0.0
    %v2019 = vand.u32 %v1976, 4294901760
    %2020 = vmatpush1.msra.mxu0 %v2019
    %2021 = vmatprep.subr.mxu0 0.0
    %v2022 = vand.u32 %v1977, 4294901760
    %2023 = vmatpush1.msra.mxu0 %v2022
    %2024 = vmatprep.subr.mxu0 0.0
    %v2025 = vand.u32 %v1978, 4294901760
    %2026 = vmatpush1.msra.mxu0 %v2025
    %2027 = vmatprep.subr.mxu0 0.0
    %v2028 = vand.u32 %v1979, 4294901760
    %2029 = vmatpush1.msra.mxu0 %v2028
    %2030 = vmatprep.subr.mxu0 0.0
    %v2031 = vand.u32 %v1980, 4294901760
    %2032 = vmatpush1.msra.mxu0 %v2031
    %2033 = vmatprep.subr.mxu0 0.0
    %v2034 = vand.u32 %v1981, 4294901760
    %2035 = vmatpush1.msra.mxu0 %v2034
    %2036 = vmatprep.subr.mxu0 0.0
    %v2037 = vand.u32 %v1982, 4294901760
    %2038 = vmatpush1.msra.mxu0 %v2037
    %2039 = vmatprep.subr.mxu0 0.0
    %2040 = vmatpush1.msra.mxu0 0.0
    %2041 = vmatprep.subr.mxu0 0.0
    %2042 = vmatpush1.msra.mxu0 0.0
    %2043 = vmatprep.subr.mxu0 0.0
    %2044 = vmatpush1.msra.mxu0 0.0
    %2045 = vmatprep.subr.mxu0 0.0
    %2046 = vmatpush1.msra.mxu0 0.0
    %2047 = vmatprep.subr.mxu0 0.0
    %2048 = vmatpush1.msra.mxu0 0.0
    %2049 = vmatprep.subr.mxu0 0.0
    %2050 = vmatpush1.msra.mxu0 0.0
    %2051 = vmatprep.subr.mxu0 0.0
    %2052 = vmatpush1.msra.mxu0 0.0
    %2053 = vmatprep.subr.mxu0 0.0
    %2054 = vmatpush1.msra.mxu0 0.0
    %2055 = vmatprep.subr.mxu0 0.0
    %2056 = vmatpush1.msra.mxu0 0.0
    %2057 = vmatprep.subr.mxu0 0.0
    %2058 = vmatpush1.msra.mxu0 0.0
    %2059 = vmatprep.subr.mxu0 0.0
    %2060 = vmatpush1.msra.mxu0 0.0
    %2061 = vmatprep.subr.mxu0 0.0
    %2062 = vmatpush1.msra.mxu0 0.0
    %2063 = vmatprep.subr.mxu0 0.0
    %2064 = vmatpush1.msra.mxu0 0.0
    %2065 = vmatprep.subr.mxu0 0.0
    %2066 = vmatpush1.msra.mxu0 0.0
    %2067 = vmatprep.subr.mxu0 0.0
    %2068 = vmatpush1.msra.mxu0 0.0
    %2069 = vmatprep.subr.mxu0 0.0
    %2070 = vmatpush1.msra.mxu0 0.0
    %2071 = vmatprep.mubr.f32.mxu0 0.0
    %v2072 = vand.u32 %v1964, 4294901760
    %v2073 = vsub.f32 %v1964, %v2072
    %v2074 = vand.u32 %v2073, 4294901760
    %v2075 = vsub.f32 %v2073, %v2074
    %v2076 = vand.u32 %v2075, 4294901760
    %2077 = vmatmul.mubr.f32.gmra.mrb[0].mxu0 %v2076
    %v2078 = vpop.f32.mrb[0].mxu0
    %v2079 = vadd.f32 %v1989, %v2078
    %v2080 = vpop.f32.mrb[0].mxu0
    %2081 = vmatprep.mubr.f32.mxu0 0.0
    %v2082 = vand.u32 %v1965, 4294901760
    %v2083 = vsub.f32 %v1965, %v2082
    %v2084 = vand.u32 %v2083, 4294901760
    %v2085 = vsub.f32 %v2083, %v2084
    %v2086 = vand.u32 %v2085, 4294901760
    %2087 = vmatmul.mubr.f32.gmra.mrb[0].mxu0 %v2086
    %v2088 = vpop.f32.mrb[0].mxu0
    %v2089 = vadd.f32 %v1989, %v2088
    %v2090 = vpop.f32.mrb[0].mxu0
    %2091 = vdwg.mxu0
    %2092 = vmatprep.subr.mxu0 0.0
    %v2093 = vand.u32 %v1967, 4294901760
    %v2094 = vsub.f32 %v1967, %v2093
    %v2095 = vand.u32 %v2094, 4294901760
    %v2096 = vsub.f32 %v2094, %v2095
    %v2097 = vand.u32 %v2096, 4294901760
    %2098 = vmatpush1.msra.mxu0 %v2097
    %2099 = vmatprep.subr.mxu0 0.0
    %v2100 = vand.u32 %v1968, 4294901760
    %v2101 = vsub.f32 %v1968, %v2100
    %v2102 = vand.u32 %v2101, 4294901760
    %v2103 = vsub.f32 %v2101, %v2102
    %v2104 = vand.u32 %v2103, 4294901760
    %2105 = vmatpush1.msra.mxu0 %v2104
    %2106 = vmatprep.subr.mxu0 0.0
    %v2107 = vand.u32 %v1969, 4294901760
    %v2108 = vsub.f32 %v1969, %v2107
    %v2109 = vand.u32 %v2108, 4294901760
    %v2110 = vsub.f32 %v2108, %v2109
    %v2111 = vand.u32 %v2110, 4294901760
    %2112 = vmatpush1.msra.mxu0 %v2111
    %2113 = vmatprep.subr.mxu0 0.0
    %v2114 = vand.u32 %v1970, 4294901760
    %v2115 = vsub.f32 %v1970, %v2114
    %v2116 = vand.u32 %v2115, 4294901760
    %v2117 = vsub.f32 %v2115, %v2116
    %v2118 = vand.u32 %v2117, 4294901760
    %2119 = vmatpush1.msra.mxu0 %v2118
    %2120 = vmatprep.subr.mxu0 0.0
    %v2121 = vand.u32 %v1971, 4294901760
    %v2122 = vsub.f32 %v1971, %v2121
    %v2123 = vand.u32 %v2122, 4294901760
    %v2124 = vsub.f32 %v2122, %v2123
    %v2125 = vand.u32 %v2124, 4294901760
    %2126 = vmatpush1.msra.mxu0 %v2125
    %2127 = vmatprep.subr.mxu0 0.0
    %v2128 = vand.u32 %v1972, 4294901760
    %v2129 = vsub.f32 %v1972, %v2128
    %v2130 = vand.u32 %v2129, 4294901760
    %v2131 = vsub.f32 %v2129, %v2130
    %v2132 = vand.u32 %v2131, 4294901760
    %2133 = vmatpush1.msra.mxu0 %v2132
    %2134 = vmatprep.subr.mxu0 0.0
    %v2135 = vand.u32 %v1973, 4294901760
    %v2136 = vsub.f32 %v1973, %v2135
    %v2137 = vand.u32 %v2136, 4294901760
    %v2138 = vsub.f32 %v2136, %v2137
    %v2139 = vand.u32 %v2138, 4294901760
    %2140 = vmatpush1.msra.mxu0 %v2139
    %2141 = vmatprep.subr.mxu0 0.0
    %v2142 = vand.u32 %v1974, 4294901760
    %v2143 = vsub.f32 %v1974, %v2142
    %v2144 = vand.u32 %v2143, 4294901760
    %v2145 = vsub.f32 %v2143, %v2144
    %v2146 = vand.u32 %v2145, 4294901760
    %2147 = vmatpush1.msra.mxu0 %v2146
    %2148 = vmatprep.subr.mxu0 0.0
    %v2149 = vand.u32 %v1975, 4294901760
    %v2150 = vsub.f32 %v1975, %v2149
    %v2151 = vand.u32 %v2150, 4294901760
    %v2152 = vsub.f32 %v2150, %v2151
    %v2153 = vand.u32 %v2152, 4294901760
    %2154 = vmatpush1.msra.mxu0 %v2153
    %2155 = vmatprep.subr.mxu0 0.0
    %v2156 = vand.u32 %v1976, 4294901760
    %v2157 = vsub.f32 %v1976, %v2156
    %v2158 = vand.u32 %v2157, 4294901760
    %v2159 = vsub.f32 %v2157, %v2158
    %v2160 = vand.u32 %v2159, 4294901760
    %2161 = vmatpush1.msra.mxu0 %v2160
    %2162 = vmatprep.subr.mxu0 0.0
    %v2163 = vand.u32 %v1977, 4294901760
    %v2164 = vsub.f32 %v1977, %v2163
    %v2165 = vand.u32 %v2164, 4294901760
    %v2166 = vsub.f32 %v2164, %v2165
    %v2167 = vand.u32 %v2166, 4294901760
    %2168 = vmatpush1.msra.mxu0 %v2167
    %2169 = vmatprep.subr.mxu0 0.0
    %v2170 = vand.u32 %v1978, 4294901760
    %v2171 = vsub.f32 %v1978, %v2170
    %v2172 = vand.u32 %v2171, 4294901760
    %v2173 = vsub.f32 %v2171, %v2172
    %v2174 = vand.u32 %v2173, 4294901760
    %2175 = vmatpush1.msra.mxu0 %v2174
    %2176 = vmatprep.subr.mxu0 0.0
    %v2177 = vand.u32 %v1979, 4294901760
    %v2178 = vsub.f32 %v1979, %v2177
    %v2179 = vand.u32 %v2178, 4294901760
    %v2180 = vsub.f32 %v2178, %v2179
    %v2181 = vand.u32 %v2180, 4294901760
    %2182 = vmatpush1.msra.mxu0 %v2181
    %2183 = vmatprep.subr.mxu0 0.0
    %v2184 = vand.u32 %v1980, 4294901760
    %v2185 = vsub.f32 %v1980, %v2184
    %v2186 = vand.u32 %v2185, 4294901760
    %v2187 = vsub.f32 %v2185, %v2186
    %v2188 = vand.u32 %v2187, 4294901760
    %2189 = vmatpush1.msra.mxu0 %v2188
    %2190 = vmatprep.subr.mxu0 0.0
    %v2191 = vand.u32 %v1981, 4294901760
    %v2192 = vsub.f32 %v1981, %v2191
    %v2193 = vand.u32 %v2192, 4294901760
    %v2194 = vsub.f32 %v2192, %v2193
    %v2195 = vand.u32 %v2194, 4294901760
    %2196 = vmatpush1.msra.mxu0 %v2195
    %2197 = vmatprep.subr.mxu0 0.0
    %v2198 = vand.u32 %v1982, 4294901760
    %v2199 = vsub.f32 %v1982, %v2198
    %v2200 = vand.u32 %v2199, 4294901760
    %v2201 = vsub.f32 %v2199, %v2200
    %v2202 = vand.u32 %v2201, 4294901760
    %2203 = vmatpush1.msra.mxu0 %v2202
    %2204 = vmatprep.subr.mxu0 0.0
    %2205 = vmatpush1.msra.mxu0 0.0
    %2206 = vmatprep.subr.mxu0 0.0
    %2207 = vmatpush1.msra.mxu0 0.0
    %2208 = vmatprep.subr.mxu0 0.0
    %2209 = vmatpush1.msra.mxu0 0.0
    %2210 = vmatprep.subr.mxu0 0.0
    %2211 = vmatpush1.msra.mxu0 0.0
    %2212 = vmatprep.subr.mxu0 0.0
    %2213 = vmatpush1.msra.mxu0 0.0
    %2214 = vmatprep.subr.mxu0 0.0
    %2215 = vmatpush1.msra.mxu0 0.0
    %2216 = vmatprep.subr.mxu0 0.0
    %2217 = vmatpush1.msra.mxu0 0.0
    %2218 = vmatprep.subr.mxu0 0.0
    %2219 = vmatpush1.msra.mxu0 0.0
    %2220 = vmatprep.subr.mxu0 0.0
    %2221 = vmatpush1.msra.mxu0 0.0
    %2222 = vmatprep.subr.mxu0 0.0
    %2223 = vmatpush1.msra.mxu0 0.0
    %2224 = vmatprep.subr.mxu0 0.0
    %2225 = vmatpush1.msra.mxu0 0.0
    %2226 = vmatprep.subr.mxu0 0.0
    %2227 = vmatpush1.msra.mxu0 0.0
    %2228 = vmatprep.subr.mxu0 0.0
    %2229 = vmatpush1.msra.mxu0 0.0
    %2230 = vmatprep.subr.mxu0 0.0
    %2231 = vmatpush1.msra.mxu0 0.0
    %2232 = vmatprep.subr.mxu0 0.0
    %2233 = vmatpush1.msra.mxu0 0.0
    %2234 = vmatprep.subr.mxu0 0.0
    %2235 = vmatpush1.msra.mxu0 0.0
    %2236 = vmatprep.mubr.f32.mxu0 0.0
    %v2237 = vand.u32 %v1964, 4294901760
    %2238 = vmatmul.mubr.f32.gmra.mrb[0].mxu0 %v2237
    %v2239 = vpop.f32.mrb[0].mxu0
    %v2240 = vadd.f32 %v2079, %v2239
    %v2241 = vpop.f32.mrb[0].mxu0
    %2242 = vmatprep.mubr.f32.mxu0 0.0
    %v2243 = vand.u32 %v1965, 4294901760
    %2244 = vmatmul.mubr.f32.gmra.mrb[0].mxu0 %v2243
    %v2245 = vpop.f32.mrb[0].mxu0
    %v2246 = vadd.f32 %v2089, %v2245
    %v2247 = vpop.f32.mrb[0].mxu0
    %2248 = vdwg.mxu0
    %2249 = vmatprep.subr.mxu0 0.0
    %v2250 = vand.u32 %v1967, 4294901760
    %v2251 = vsub.f32 %v1967, %v2250
    %2252 = vmatpush1.msra.mxu0 %v2251
    %2253 = vmatprep.subr.mxu0 0.0
    %v2254 = vand.u32 %v1968, 4294901760
    %v2255 = vsub.f32 %v1968, %v2254
    %2256 = vmatpush1.msra.mxu0 %v2255
    %2257 = vmatprep.subr.mxu0 0.0
    %v2258 = vand.u32 %v1969, 4294901760
    %v2259 = vsub.f32 %v1969, %v2258
    %2260 = vmatpush1.msra.mxu0 %v2259
    %2261 = vmatprep.subr.mxu0 0.0
    %v2262 = vand.u32 %v1970, 4294901760
    %v2263 = vsub.f32 %v1970, %v2262
    %2264 = vmatpush1.msra.mxu0 %v2263
    %2265 = vmatprep.subr.mxu0 0.0
    %v2266 = vand.u32 %v1971, 4294901760
    %v2267 = vsub.f32 %v1971, %v2266
    %2268 = vmatpush1.msra.mxu0 %v2267
    %2269 = vmatprep.subr.mxu0 0.0
    %v2270 = vand.u32 %v1972, 4294901760
    %v2271 = vsub.f32 %v1972, %v2270
    %2272 = vmatpush1.msra.mxu0 %v2271
    %2273 = vmatprep.subr.mxu0 0.0
    %v2274 = vand.u32 %v1973, 4294901760
    %v2275 = vsub.f32 %v1973, %v2274
    %2276 = vmatpush1.msra.mxu0 %v2275
    %2277 = vmatprep.subr.mxu0 0.0
    %v2278 = vand.u32 %v1974, 4294901760
    %v2279 = vsub.f32 %v1974, %v2278
    %2280 = vmatpush1.msra.mxu0 %v2279
    %2281 = vmatprep.subr.mxu0 0.0
    %v2282 = vand.u32 %v1975, 4294901760
    %v2283 = vsub.f32 %v1975, %v2282
    %2284 = vmatpush1.msra.mxu0 %v2283
    %2285 = vmatprep.subr.mxu0 0.0
    %v2286 = vand.u32 %v1976, 4294901760
    %v2287 = vsub.f32 %v1976, %v2286
    %2288 = vmatpush1.msra.mxu0 %v2287
    %2289 = vmatprep.subr.mxu0 0.0
    %v2290 = vand.u32 %v1977, 4294901760
    %v2291 = vsub.f32 %v1977, %v2290
    %2292 = vmatpush1.msra.mxu0 %v2291
    %2293 = vmatprep.subr.mxu0 0.0
    %v2294 = vand.u32 %v1978, 4294901760
    %v2295 = vsub.f32 %v1978, %v2294
    %2296 = vmatpush1.msra.mxu0 %v2295
    %2297 = vmatprep.subr.mxu0 0.0
    %v2298 = vand.u32 %v1979, 4294901760
    %v2299 = vsub.f32 %v1979, %v2298
    %2300 = vmatpush1.msra.mxu0 %v2299
    %2301 = vmatprep.subr.mxu0 0.0
    %v2302 = vand.u32 %v1980, 4294901760
    %v2303 = vsub.f32 %v1980, %v2302
    %2304 = vmatpush1.msra.mxu0 %v2303
    %2305 = vmatprep.subr.mxu0 0.0
    %v2306 = vand.u32 %v1981, 4294901760
    %v2307 = vsub.f32 %v1981, %v2306
    %2308 = vmatpush1.msra.mxu0 %v2307
    %2309 = vmatprep.subr.mxu0 0.0
    %v2310 = vand.u32 %v1982, 4294901760
    %v2311 = vsub.f32 %v1982, %v2310
    %2312 = vmatpush1.msra.mxu0 %v2311
    %2313 = vmatprep.subr.mxu0 0.0
    %2314 = vmatpush1.msra.mxu0 0.0
    %2315 = vmatprep.subr.mxu0 0.0
    %2316 = vmatpush1.msra.mxu0 0.0
    %2317 = vmatprep.subr.mxu0 0.0
    %2318 = vmatpush1.msra.mxu0 0.0
    %2319 = vmatprep.subr.mxu0 0.0
    %2320 = vmatpush1.msra.mxu0 0.0
    %2321 = vmatprep.subr.mxu0 0.0
    %2322 = vmatpush1.msra.mxu0 0.0
    %2323 = vmatprep.subr.mxu0 0.0
    %2324 = vmatpush1.msra.mxu0 0.0
    %2325 = vmatprep.subr.mxu0 0.0
    %2326 = vmatpush1.msra.mxu0 0.0
    %2327 = vmatprep.subr.mxu0 0.0
    %2328 = vmatpush1.msra.mxu0 0.0
    %2329 = vmatprep.subr.mxu0 0.0
    %2330 = vmatpush1.msra.mxu0 0.0
    %2331 = vmatprep.subr.mxu0 0.0
    %2332 = vmatpush1.msra.mxu0 0.0
    %2333 = vmatprep.subr.mxu0 0.0
    %2334 = vmatpush1.msra.mxu0 0.0
    %2335 = vmatprep.subr.mxu0 0.0
    %2336 = vmatpush1.msra.mxu0 0.0
    %2337 = vmatprep.subr.mxu0 0.0
    %2338 = vmatpush1.msra.mxu0 0.0
    %2339 = vmatprep.subr.mxu0 0.0
    %2340 = vmatpush1.msra.mxu0 0.0
    %2341 = vmatprep.subr.mxu0 0.0
    %2342 = vmatpush1.msra.mxu0 0.0
    %2343 = vmatprep.subr.mxu0 0.0
    %2344 = vmatpush1.msra.mxu0 0.0
    %2345 = vmatprep.mubr.f32.mxu0 0.0
    %v2346 = vand.u32 %v1964, 4294901760
    %v2347 = vsub.f32 %v1964, %v2346
    %2348 = vmatmul.mubr.f32.gmra.mrb[0].mxu0 %v2347
    %v2349 = vpop.f32.mrb[0].mxu0
    %v2350 = vadd.f32 %v2240, %v2349
    %v2351 = vpop.f32.mrb[0].mxu0
    %2352 = vmatprep.mubr.f32.mxu0 0.0
    %v2353 = vand.u32 %v1965, 4294901760
    %v2354 = vsub.f32 %v1965, %v2353
    %2355 = vmatmul.mubr.f32.gmra.mrb[0].mxu0 %v2354
    %v2356 = vpop.f32.mrb[0].mxu0
    %v2357 = vadd.f32 %v2246, %v2356
    %v2358 = vpop.f32.mrb[0].mxu0
    %2359 = vdwg.mxu0
    %2360 = vmatprep.subr.mxu0 0.0
    %v2361 = vand.u32 %v1967, 4294901760
    %2362 = vmatpush1.msra.mxu0 %v2361
    %2363 = vmatprep.subr.mxu0 0.0
    %v2364 = vand.u32 %v1968, 4294901760
    %2365 = vmatpush1.msra.mxu0 %v2364
    %2366 = vmatprep.subr.mxu0 0.0
    %v2367 = vand.u32 %v1969, 4294901760
    %2368 = vmatpush1.msra.mxu0 %v2367
    %2369 = vmatprep.subr.mxu0 0.0
    %v2370 = vand.u32 %v1970, 4294901760
    %2371 = vmatpush1.msra.mxu0 %v2370
    %2372 = vmatprep.subr.mxu0 0.0
    %v2373 = vand.u32 %v1971, 4294901760
    %2374 = vmatpush1.msra.mxu0 %v2373
    %2375 = vmatprep.subr.mxu0 0.0
    %v2376 = vand.u32 %v1972, 4294901760
    %2377 = vmatpush1.msra.mxu0 %v2376
    %2378 = vmatprep.subr.mxu0 0.0
    %v2379 = vand.u32 %v1973, 4294901760
    %2380 = vmatpush1.msra.mxu0 %v2379
    %2381 = vmatprep.subr.mxu0 0.0
    %v2382 = vand.u32 %v1974, 4294901760
    %2383 = vmatpush1.msra.mxu0 %v2382
    %2384 = vmatprep.subr.mxu0 0.0
    %v2385 = vand.u32 %v1975, 4294901760
    %2386 = vmatpush1.msra.mxu0 %v2385
    %2387 = vmatprep.subr.mxu0 0.0
    %v2388 = vand.u32 %v1976, 4294901760
    %2389 = vmatpush1.msra.mxu0 %v2388
    %2390 = vmatprep.subr.mxu0 0.0
    %v2391 = vand.u32 %v1977, 4294901760
    %2392 = vmatpush1.msra.mxu0 %v2391
    %2393 = vmatprep.subr.mxu0 0.0
    %v2394 = vand.u32 %v1978, 4294901760
    %2395 = vmatpush1.msra.mxu0 %v2394
    %2396 = vmatprep.subr.mxu0 0.0
    %v2397 = vand.u32 %v1979, 4294901760
    %2398 = vmatpush1.msra.mxu0 %v2397
    %2399 = vmatprep.subr.mxu0 0.0
    %v2400 = vand.u32 %v1980, 4294901760
    %2401 = vmatpush1.msra.mxu0 %v2400
    %2402 = vmatprep.subr.mxu0 0.0
    %v2403 = vand.u32 %v1981, 4294901760
    %2404 = vmatpush1.msra.mxu0 %v2403
    %2405 = vmatprep.subr.mxu0 0.0
    %v2406 = vand.u32 %v1982, 4294901760
    %2407 = vmatpush1.msra.mxu0 %v2406
    %2408 = vmatprep.subr.mxu0 0.0
    %2409 = vmatpush1.msra.mxu0 0.0
    %2410 = vmatprep.subr.mxu0 0.0
    %2411 = vmatpush1.msra.mxu0 0.0
    %2412 = vmatprep.subr.mxu0 0.0
    %2413 = vmatpush1.msra.mxu0 0.0
    %2414 = vmatprep.subr.mxu0 0.0
    %2415 = vmatpush1.msra.mxu0 0.0
    %2416 = vmatprep.subr.mxu0 0.0
    %2417 = vmatpush1.msra.mxu0 0.0
    %2418 = vmatprep.subr.mxu0 0.0
    %2419 = vmatpush1.msra.mxu0 0.0
    %2420 = vmatprep.subr.mxu0 0.0
    %2421 = vmatpush1.msra.mxu0 0.0
    %2422 = vmatprep.subr.mxu0 0.0
    %2423 = vmatpush1.msra.mxu0 0.0
    %2424 = vmatprep.subr.mxu0 0.0
    %2425 = vmatpush1.msra.mxu0 0.0
    %2426 = vmatprep.subr.mxu0 0.0
    %2427 = vmatpush1.msra.mxu0 0.0
    %2428 = vmatprep.subr.mxu0 0.0
    %2429 = vmatpush1.msra.mxu0 0.0
    %2430 = vmatprep.subr.mxu0 0.0
    %2431 = vmatpush1.msra.mxu0 0.0
    %2432 = vmatprep.subr.mxu0 0.0
    %2433 = vmatpush1.msra.mxu0 0.0
    %2434 = vmatprep.subr.mxu0 0.0
    %2435 = vmatpush1.msra.mxu0 0.0
    %2436 = vmatprep.subr.mxu0 0.0
    %2437 = vmatpush1.msra.mxu0 0.0
    %2438 = vmatprep.subr.mxu0 0.0
    %2439 = vmatpush1.msra.mxu0 0.0
    %2440 = vmatprep.mubr.f32.mxu0 0.0
    %v2441 = vand.u32 %v1964, 4294901760
    %v2442 = vsub.f32 %v1964, %v2441
    %v2443 = vand.u32 %v2442, 4294901760
    %2444 = vmatmul.mubr.f32.gmra.mrb[0].mxu0 %v2443
    %v2445 = vpop.f32.mrb[0].mxu0
    %v2446 = vadd.f32 %v2350, %v2445
    %v2447 = vpop.f32.mrb[0].mxu0
    %2448 = vmatprep.mubr.f32.mxu0 0.0
    %v2449 = vand.u32 %v1965, 4294901760
    %v2450 = vsub.f32 %v1965, %v2449
    %v2451 = vand.u32 %v2450, 4294901760
    %2452 = vmatmul.mubr.f32.gmra.mrb[0].mxu0 %v2451
    %v2453 = vpop.f32.mrb[0].mxu0
    %v2454 = vadd.f32 %v2357, %v2453
    %v2455 = vpop.f32.mrb[0].mxu0
    %2456 = vdwg.mxu0
    %2457 = vmatprep.subr.mxu0 0.0
    %v2458 = vand.u32 %v1967, 4294901760
    %v2459 = vsub.f32 %v1967, %v2458
    %v2460 = vand.u32 %v2459, 4294901760
    %2461 = vmatpush1.msra.mxu0 %v2460
    %2462 = vmatprep.subr.mxu0 0.0
    %v2463 = vand.u32 %v1968, 4294901760
    %v2464 = vsub.f32 %v1968, %v2463
    %v2465 = vand.u32 %v2464, 4294901760
    %2466 = vmatpush1.msra.mxu0 %v2465
    %2467 = vmatprep.subr.mxu0 0.0
    %v2468 = vand.u32 %v1969, 4294901760
    %v2469 = vsub.f32 %v1969, %v2468
    %v2470 = vand.u32 %v2469, 4294901760
    %2471 = vmatpush1.msra.mxu0 %v2470
    %2472 = vmatprep.subr.mxu0 0.0
    %v2473 = vand.u32 %v1970, 4294901760
    %v2474 = vsub.f32 %v1970, %v2473
    %v2475 = vand.u32 %v2474, 4294901760
    %2476 = vmatpush1.msra.mxu0 %v2475
    %2477 = vmatprep.subr.mxu0 0.0
    %v2478 = vand.u32 %v1971, 4294901760
    %v2479 = vsub.f32 %v1971, %v2478
    %v2480 = vand.u32 %v2479, 4294901760
    %2481 = vmatpush1.msra.mxu0 %v2480
    %2482 = vmatprep.subr.mxu0 0.0
    %v2483 = vand.u32 %v1972, 4294901760
    %v2484 = vsub.f32 %v1972, %v2483
    %v2485 = vand.u32 %v2484, 4294901760
    %2486 = vmatpush1.msra.mxu0 %v2485
    %2487 = vmatprep.subr.mxu0 0.0
    %v2488 = vand.u32 %v1973, 4294901760
    %v2489 = vsub.f32 %v1973, %v2488
    %v2490 = vand.u32 %v2489, 4294901760
    %2491 = vmatpush1.msra.mxu0 %v2490
    %2492 = vmatprep.subr.mxu0 0.0
    %v2493 = vand.u32 %v1974, 4294901760
    %v2494 = vsub.f32 %v1974, %v2493
    %v2495 = vand.u32 %v2494, 4294901760
    %2496 = vmatpush1.msra.mxu0 %v2495
    %2497 = vmatprep.subr.mxu0 0.0
    %v2498 = vand.u32 %v1975, 4294901760
    %v2499 = vsub.f32 %v1975, %v2498
    %v2500 = vand.u32 %v2499, 4294901760
    %2501 = vmatpush1.msra.mxu0 %v2500
    %2502 = vmatprep.subr.mxu0 0.0
    %v2503 = vand.u32 %v1976, 4294901760
    %v2504 = vsub.f32 %v1976, %v2503
    %v2505 = vand.u32 %v2504, 4294901760
    %2506 = vmatpush1.msra.mxu0 %v2505
    %2507 = vmatprep.subr.mxu0 0.0
    %v2508 = vand.u32 %v1977, 4294901760
    %v2509 = vsub.f32 %v1977, %v2508
    %v2510 = vand.u32 %v2509, 4294901760
    %2511 = vmatpush1.msra.mxu0 %v2510
    %2512 = vmatprep.subr.mxu0 0.0
    %v2513 = vand.u32 %v1978, 4294901760
    %v2514 = vsub.f32 %v1978, %v2513
    %v2515 = vand.u32 %v2514, 4294901760
    %2516 = vmatpush1.msra.mxu0 %v2515
    %2517 = vmatprep.subr.mxu0 0.0
    %v2518 = vand.u32 %v1979, 4294901760
    %v2519 = vsub.f32 %v1979, %v2518
    %v2520 = vand.u32 %v2519, 4294901760
    %2521 = vmatpush1.msra.mxu0 %v2520
    %2522 = vmatprep.subr.mxu0 0.0
    %v2523 = vand.u32 %v1980, 4294901760
    %v2524 = vsub.f32 %v1980, %v2523
    %v2525 = vand.u32 %v2524, 4294901760
    %2526 = vmatpush1.msra.mxu0 %v2525
    %2527 = vmatprep.subr.mxu0 0.0
    %v2528 = vand.u32 %v1981, 4294901760
    %v2529 = vsub.f32 %v1981, %v2528
    %v2530 = vand.u32 %v2529, 4294901760
    %2531 = vmatpush1.msra.mxu0 %v2530
    %2532 = vmatprep.subr.mxu0 0.0
    %v2533 = vand.u32 %v1982, 4294901760
    %v2534 = vsub.f32 %v1982, %v2533
    %v2535 = vand.u32 %v2534, 4294901760
    %2536 = vmatpush1.msra.mxu0 %v2535
    %2537 = vmatprep.subr.mxu0 0.0
    %2538 = vmatpush1.msra.mxu0 0.0
    %2539 = vmatprep.subr.mxu0 0.0
    %2540 = vmatpush1.msra.mxu0 0.0
    %2541 = vmatprep.subr.mxu0 0.0
    %2542 = vmatpush1.msra.mxu0 0.0
    %2543 = vmatprep.subr.mxu0 0.0
    %2544 = vmatpush1.msra.mxu0 0.0
    %2545 = vmatprep.subr.mxu0 0.0
    %2546 = vmatpush1.msra.mxu0 0.0
    %2547 = vmatprep.subr.mxu0 0.0
    %2548 = vmatpush1.msra.mxu0 0.0
    %2549 = vmatprep.subr.mxu0 0.0
    %2550 = vmatpush1.msra.mxu0 0.0
    %2551 = vmatprep.subr.mxu0 0.0
    %2552 = vmatpush1.msra.mxu0 0.0
    %2553 = vmatprep.subr.mxu0 0.0
    %2554 = vmatpush1.msra.mxu0 0.0
    %2555 = vmatprep.subr.mxu0 0.0
    %2556 = vmatpush1.msra.mxu0 0.0
    %2557 = vmatprep.subr.mxu0 0.0
    %2558 = vmatpush1.msra.mxu0 0.0
    %2559 = vmatprep.subr.mxu0 0.0
    %2560 = vmatpush1.msra.mxu0 0.0
    %2561 = vmatprep.subr.mxu0 0.0
    %2562 = vmatpush1.msra.mxu0 0.0
    %2563 = vmatprep.subr.mxu0 0.0
    %2564 = vmatpush1.msra.mxu0 0.0
    %2565 = vmatprep.subr.mxu0 0.0
    %2566 = vmatpush1.msra.mxu0 0.0
    %2567 = vmatprep.subr.mxu0 0.0
    %2568 = vmatpush1.msra.mxu0 0.0
    %2569 = vmatprep.mubr.f32.mxu0 0.0
    %v2570 = vand.u32 %v1964, 4294901760
    %2571 = vmatmul.mubr.f32.gmra.mrb[0].mxu0 %v2570
    %v2572 = vpop.f32.mrb[0].mxu0
    %v2573 = vadd.f32 %v2446, %v2572
    %v2574 = vpop.f32.mrb[0].mxu0
    %2575 = vmatprep.mubr.f32.mxu0 0.0
    %v2576 = vand.u32 %v1965, 4294901760
    %2577 = vmatmul.mubr.f32.gmra.mrb[0].mxu0 %v2576
    %v2578 = vpop.f32.mrb[0].mxu0
    %v2579 = vadd.f32 %v2454, %v2578
    %v2580 = vpop.f32.mrb[0].mxu0
    %2581 = vdwg.mxu0
    %2582 = vmatprep.subr.mxu0 0.0
    %v2583 = vand.u32 %v1967, 4294901760
    %2584 = vmatpush1.msra.mxu0 %v2583
    %2585 = vmatprep.subr.mxu0 0.0
    %v2586 = vand.u32 %v1968, 4294901760
    %2587 = vmatpush1.msra.mxu0 %v2586
    %2588 = vmatprep.subr.mxu0 0.0
    %v2589 = vand.u32 %v1969, 4294901760
    %2590 = vmatpush1.msra.mxu0 %v2589
    %2591 = vmatprep.subr.mxu0 0.0
    %v2592 = vand.u32 %v1970, 4294901760
    %2593 = vmatpush1.msra.mxu0 %v2592
    %2594 = vmatprep.subr.mxu0 0.0
    %v2595 = vand.u32 %v1971, 4294901760
    %2596 = vmatpush1.msra.mxu0 %v2595
    %2597 = vmatprep.subr.mxu0 0.0
    %v2598 = vand.u32 %v1972, 4294901760
    %2599 = vmatpush1.msra.mxu0 %v2598
    %2600 = vmatprep.subr.mxu0 0.0
    %v2601 = vand.u32 %v1973, 4294901760
    %2602 = vmatpush1.msra.mxu0 %v2601
    %2603 = vmatprep.subr.mxu0 0.0
    %v2604 = vand.u32 %v1974, 4294901760
    %2605 = vmatpush1.msra.mxu0 %v2604
    %2606 = vmatprep.subr.mxu0 0.0
    %v2607 = vand.u32 %v1975, 4294901760
    %2608 = vmatpush1.msra.mxu0 %v2607
    %2609 = vmatprep.subr.mxu0 0.0
    %v2610 = vand.u32 %v1976, 4294901760
    %2611 = vmatpush1.msra.mxu0 %v2610
    %2612 = vmatprep.subr.mxu0 0.0
    %v2613 = vand.u32 %v1977, 4294901760
    %2614 = vmatpush1.msra.mxu0 %v2613
    %2615 = vmatprep.subr.mxu0 0.0
    %v2616 = vand.u32 %v1978, 4294901760
    %2617 = vmatpush1.msra.mxu0 %v2616
    %2618 = vmatprep.subr.mxu0 0.0
    %v2619 = vand.u32 %v1979, 4294901760
    %2620 = vmatpush1.msra.mxu0 %v2619
    %2621 = vmatprep.subr.mxu0 0.0
    %v2622 = vand.u32 %v1980, 4294901760
    %2623 = vmatpush1.msra.mxu0 %v2622
    %2624 = vmatprep.subr.mxu0 0.0
    %v2625 = vand.u32 %v1981, 4294901760
    %2626 = vmatpush1.msra.mxu0 %v2625
    %2627 = vmatprep.subr.mxu0 0.0
    %v2628 = vand.u32 %v1982, 4294901760
    %2629 = vmatpush1.msra.mxu0 %v2628
    %2630 = vmatprep.subr.mxu0 0.0
    %2631 = vmatpush1.msra.mxu0 0.0
    %2632 = vmatprep.subr.mxu0 0.0
    %2633 = vmatpush1.msra.mxu0 0.0
    %2634 = vmatprep.subr.mxu0 0.0
    %2635 = vmatpush1.msra.mxu0 0.0
    %2636 = vmatprep.subr.mxu0 0.0
    %2637 = vmatpush1.msra.mxu0 0.0
    %2638 = vmatprep.subr.mxu0 0.0
    %2639 = vmatpush1.msra.mxu0 0.0
    %2640 = vmatprep.subr.mxu0 0.0
    %2641 = vmatpush1.msra.mxu0 0.0
    %2642 = vmatprep.subr.mxu0 0.0
    %2643 = vmatpush1.msra.mxu0 0.0
    %2644 = vmatprep.subr.mxu0 0.0
    %2645 = vmatpush1.msra.mxu0 0.0
    %2646 = vmatprep.subr.mxu0 0.0
    %2647 = vmatpush1.msra.mxu0 0.0
    %2648 = vmatprep.subr.mxu0 0.0
    %2649 = vmatpush1.msra.mxu0 0.0
    %2650 = vmatprep.subr.mxu0 0.0
    %2651 = vmatpush1.msra.mxu0 0.0
    %2652 = vmatprep.subr.mxu0 0.0
    %2653 = vmatpush1.msra.mxu0 0.0
    %2654 = vmatprep.subr.mxu0 0.0
    %2655 = vmatpush1.msra.mxu0 0.0
    %2656 = vmatprep.subr.mxu0 0.0
    %2657 = vmatpush1.msra.mxu0 0.0
    %2658 = vmatprep.subr.mxu0 0.0
    %2659 = vmatpush1.msra.mxu0 0.0
    %2660 = vmatprep.subr.mxu0 0.0
    %2661 = vmatpush1.msra.mxu0 0.0
    %2662 = vmatprep.mubr.f32.mxu0 0.0
    %v2663 = vand.u32 %v1964, 4294901760
    %2664 = vmatmul.mubr.f32.gmra.mrb[0].mxu0 %v2663
    %v2665 = vpop.f32.mrb[0].mxu0
    %v2666 = vadd.f32 %v2573, %v2665
    %v2667 = vpop.f32.mrb[0].mxu0
    %2668 = vmatprep.mubr.f32.mxu0 0.0
    %v2669 = vand.u32 %v1965, 4294901760
    %2670 = vmatmul.mubr.f32.gmra.mrb[0].mxu0 %v2669
    %v2671 = vpop.f32.mrb[0].mxu0
    %v2672 = vadd.f32 %v2579, %v2671
    %v2673 = vpop.f32.mrb[0].mxu0
    %2674 = vdwg.mxu0
    %v2675 = vmax.f32 %v2666, 0.0
    %v2676 = vmax.f32 %v2672, 0.0
    %s2677 = scalar_lea.vmem [#allocation2], 384
    %v2678 = vld [vmem:[%s2677] sm:$0xff]
    %v2679 = vld [vmem:[%s2677 + $0x8] sm:$0xff]
    %v2680 = vld [vmem:[%s2677 + $0x10] sm:$0xff]
    %v2681 = vld [vmem:[%s2677 + $0x18] sm:$0xff]
    %v2682 = vld [vmem:[%s2677 + $0x20] sm:$0xff]
    %v2683 = vld [vmem:[%s2677 + $0x28] sm:$0xff]
    %v2684 = vld [vmem:[%s2677 + $0x30] sm:$0xff]
    %v2685 = vld [vmem:[%s2677 + $0x38] sm:$0xff]
    %v2686 = vld [vmem:[%s2677 + $0x40] sm:$0xff]
    %v2687 = vld [vmem:[%s2677 + $0x48] sm:$0xff]
    %v2688 = vld [vmem:[%s2677 + $0x50] sm:$0xff]
    %v2689 = vld [vmem:[%s2677 + $0x58] sm:$0xff]
    %v2690 = vld [vmem:[%s2677 + $0x60] sm:$0xff]
    %v2691 = vld [vmem:[%s2677 + $0x68] sm:$0xff]
    %v2692 = vld [vmem:[%s2677 + $0x70] sm:$0xff]
    %v2693 = vld [vmem:[%s2677 + $0x78] sm:$0xff]
    %s2694 = scalar_lea.vmem %s3, 4
    %v2695 = vld [vmem:[%s2694] sm:$0x1]
    %v2697 = vlaneseq
    %v2698 = vshrl.u32 %v2697, 7
    %v2699 = vsub.s32 0, %v2698
    %v2700 = vrot.slane %v2695, %v2699
    %2702 = vmatprep.subr.mxu0 0.0
    %v2703 = vand.u32 %v2678, 4294901760
    %2704 = vmatpush1.msra.mxu0 %v2703
    %2705 = vmatprep.subr.mxu0 0.0
    %v2706 = vand.u32 %v2679, 4294901760
    %2707 = vmatpush1.msra.mxu0 %v2706
    %2708 = vmatprep.subr.mxu0 0.0
    %v2709 = vand.u32 %v2680, 4294901760
    %2710 = vmatpush1.msra.mxu0 %v2709
    %2711 = vmatprep.subr.mxu0 0.0
    %v2712 = vand.u32 %v2681, 4294901760
    %2713 = vmatpush1.msra.mxu0 %v2712
    %2714 = vmatprep.subr.mxu0 0.0
    %v2715 = vand.u32 %v2682, 4294901760
    %2716 = vmatpush1.msra.mxu0 %v2715
    %2717 = vmatprep.subr.mxu0 0.0
    %v2718 = vand.u32 %v2683, 4294901760
    %2719 = vmatpush1.msra.mxu0 %v2718
    %2720 = vmatprep.subr.mxu0 0.0
    %v2721 = vand.u32 %v2684, 4294901760
    %2722 = vmatpush1.msra.mxu0 %v2721
    %2723 = vmatprep.subr.mxu0 0.0
    %v2724 = vand.u32 %v2685, 4294901760
    %2725 = vmatpush1.msra.mxu0 %v2724
    %2726 = vmatprep.subr.mxu0 0.0
    %v2727 = vand.u32 %v2686, 4294901760
    %2728 = vmatpush1.msra.mxu0 %v2727
    %2729 = vmatprep.subr.mxu0 0.0
    %v2730 = vand.u32 %v2687, 4294901760
    %2731 = vmatpush1.msra.mxu0 %v2730
    %2732 = vmatprep.subr.mxu0 0.0
    %v2733 = vand.u32 %v2688, 4294901760
    %2734 = vmatpush1.msra.mxu0 %v2733
    %2735 = vmatprep.subr.mxu0 0.0
    %v2736 = vand.u32 %v2689, 4294901760
    %2737 = vmatpush1.msra.mxu0 %v2736
    %2738 = vmatprep.subr.mxu0 0.0
    %v2739 = vand.u32 %v2690, 4294901760
    %2740 = vmatpush1.msra.mxu0 %v2739
    %2741 = vmatprep.subr.mxu0 0.0
    %v2742 = vand.u32 %v2691, 4294901760
    %2743 = vmatpush1.msra.mxu0 %v2742
    %2744 = vmatprep.subr.mxu0 0.0
    %v2745 = vand.u32 %v2692, 4294901760
    %2746 = vmatpush1.msra.mxu0 %v2745
    %2747 = vmatprep.subr.mxu0 0.0
    %v2748 = vand.u32 %v2693, 4294901760
    %2749 = vmatpush1.msra.mxu0 %v2748
    %2750 = vmatprep.subr.mxu0 0.0
    %2751 = vmatpush1.msra.mxu0 0.0
    %2752 = vmatprep.subr.mxu0 0.0
    %2753 = vmatpush1.msra.mxu0 0.0
    %2754 = vmatprep.subr.mxu0 0.0
    %2755 = vmatpush1.msra.mxu0 0.0
    %2756 = vmatprep.subr.mxu0 0.0
    %2757 = vmatpush1.msra.mxu0 0.0
    %2758 = vmatprep.subr.mxu0 0.0
    %2759 = vmatpush1.msra.mxu0 0.0
    %2760 = vmatprep.subr.mxu0 0.0
    %2761 = vmatpush1.msra.mxu0 0.0
    %2762 = vmatprep.subr.mxu0 0.0
    %2763 = vmatpush1.msra.mxu0 0.0
    %2764 = vmatprep.subr.mxu0 0.0
    %2765 = vmatpush1.msra.mxu0 0.0
    %2766 = vmatprep.subr.mxu0 0.0
    %2767 = vmatpush1.msra.mxu0 0.0
    %2768 = vmatprep.subr.mxu0 0.0
    %2769 = vmatpush1.msra.mxu0 0.0
    %2770 = vmatprep.subr.mxu0 0.0
    %2771 = vmatpush1.msra.mxu0 0.0
    %2772 = vmatprep.subr.mxu0 0.0
    %2773 = vmatpush1.msra.mxu0 0.0
    %2774 = vmatprep.subr.mxu0 0.0
    %2775 = vmatpush1.msra.mxu0 0.0
    %2776 = vmatprep.subr.mxu0 0.0
    %2777 = vmatpush1.msra.mxu0 0.0
    %2778 = vmatprep.subr.mxu0 0.0
    %2779 = vmatpush1.msra.mxu0 0.0
    %2780 = vmatprep.subr.mxu0 0.0
    %2781 = vmatpush1.msra.mxu0 0.0
    %2782 = vmatprep.mubr.f32.mxu0 0.0
    %v2783 = vand.u32 %v2675, 4294901760
    %v2784 = vsub.f32 %v2675, %v2783
    %v2785 = vand.u32 %v2784, 4294901760
    %v2786 = vsub.f32 %v2784, %v2785
    %v2787 = vand.u32 %v2786, 4294901760
    %2788 = vmatmul.mubr.f32.gmra.mrb[0].mxu0 %v2787
    %v2789 = vpop.f32.mrb[0].mxu0
    %v2790 = vadd.f32 %v2700, %v2789
    %v2791 = vpop.f32.mrb[0].mxu0
    %2792 = vmatprep.mubr.f32.mxu0 0.0
    %v2793 = vand.u32 %v2676, 4294901760
    %v2794 = vsub.f32 %v2676, %v2793
    %v2795 = vand.u32 %v2794, 4294901760
    %v2796 = vsub.f32 %v2794, %v2795
    %v2797 = vand.u32 %v2796, 4294901760
    %2798 = vmatmul.mubr.f32.gmra.mrb[0].mxu0 %v2797
    %v2799 = vpop.f32.mrb[0].mxu0
    %v2800 = vadd.f32 %v2700, %v2799
    %v2801 = vpop.f32.mrb[0].mxu0
    %2802 = vdwg.mxu0
    %2803 = vmatprep.subr.mxu0 0.0
    %v2804 = vand.u32 %v2678, 4294901760
    %v2805 = vsub.f32 %v2678, %v2804
    %v2806 = vand.u32 %v2805, 4294901760
    %v2807 = vsub.f32 %v2805, %v2806
    %v2808 = vand.u32 %v2807, 4294901760
    %2809 = vmatpush1.msra.mxu0 %v2808
    %2810 = vmatprep.subr.mxu0 0.0
    %v2811 = vand.u32 %v2679, 4294901760
    %v2812 = vsub.f32 %v2679, %v2811
    %v2813 = vand.u32 %v2812, 4294901760
    %v2814 = vsub.f32 %v2812, %v2813
    %v2815 = vand.u32 %v2814, 4294901760
    %2816 = vmatpush1.msra.mxu0 %v2815
    %2817 = vmatprep.subr.mxu0 0.0
    %v2818 = vand.u32 %v2680, 4294901760
    %v2819 = vsub.f32 %v2680, %v2818
    %v2820 = vand.u32 %v2819, 4294901760
    %v2821 = vsub.f32 %v2819, %v2820
    %v2822 = vand.u32 %v2821, 4294901760
    %2823 = vmatpush1.msra.mxu0 %v2822
    %2824 = vmatprep.subr.mxu0 0.0
    %v2825 = vand.u32 %v2681, 4294901760
    %v2826 = vsub.f32 %v2681, %v2825
    %v2827 = vand.u32 %v2826, 4294901760
    %v2828 = vsub.f32 %v2826, %v2827
    %v2829 = vand.u32 %v2828, 4294901760
    %2830 = vmatpush1.msra.mxu0 %v2829
    %2831 = vmatprep.subr.mxu0 0.0
    %v2832 = vand.u32 %v2682, 4294901760
    %v2833 = vsub.f32 %v2682, %v2832
    %v2834 = vand.u32 %v2833, 4294901760
    %v2835 = vsub.f32 %v2833, %v2834
    %v2836 = vand.u32 %v2835, 4294901760
    %2837 = vmatpush1.msra.mxu0 %v2836
    %2838 = vmatprep.subr.mxu0 0.0
    %v2839 = vand.u32 %v2683, 4294901760
    %v2840 = vsub.f32 %v2683, %v2839
    %v2841 = vand.u32 %v2840, 4294901760
    %v2842 = vsub.f32 %v2840, %v2841
    %v2843 = vand.u32 %v2842, 4294901760
    %2844 = vmatpush1.msra.mxu0 %v2843
    %2845 = vmatprep.subr.mxu0 0.0
    %v2846 = vand.u32 %v2684, 4294901760
    %v2847 = vsub.f32 %v2684, %v2846
    %v2848 = vand.u32 %v2847, 4294901760
    %v2849 = vsub.f32 %v2847, %v2848
    %v2850 = vand.u32 %v2849, 4294901760
    %2851 = vmatpush1.msra.mxu0 %v2850
    %2852 = vmatprep.subr.mxu0 0.0
    %v2853 = vand.u32 %v2685, 4294901760
    %v2854 = vsub.f32 %v2685, %v2853
    %v2855 = vand.u32 %v2854, 4294901760
    %v2856 = vsub.f32 %v2854, %v2855
    %v2857 = vand.u32 %v2856, 4294901760
    %2858 = vmatpush1.msra.mxu0 %v2857
    %2859 = vmatprep.subr.mxu0 0.0
    %v2860 = vand.u32 %v2686, 4294901760
    %v2861 = vsub.f32 %v2686, %v2860
    %v2862 = vand.u32 %v2861, 4294901760
    %v2863 = vsub.f32 %v2861, %v2862
    %v2864 = vand.u32 %v2863, 4294901760
    %2865 = vmatpush1.msra.mxu0 %v2864
    %2866 = vmatprep.subr.mxu0 0.0
    %v2867 = vand.u32 %v2687, 4294901760
    %v2868 = vsub.f32 %v2687, %v2867
    %v2869 = vand.u32 %v2868, 4294901760
    %v2870 = vsub.f32 %v2868, %v2869
    %v2871 = vand.u32 %v2870, 4294901760
    %2872 = vmatpush1.msra.mxu0 %v2871
    %2873 = vmatprep.subr.mxu0 0.0
    %v2874 = vand.u32 %v2688, 4294901760
    %v2875 = vsub.f32 %v2688, %v2874
    %v2876 = vand.u32 %v2875, 4294901760
    %v2877 = vsub.f32 %v2875, %v2876
    %v2878 = vand.u32 %v2877, 4294901760
    %2879 = vmatpush1.msra.mxu0 %v2878
    %2880 = vmatprep.subr.mxu0 0.0
    %v2881 = vand.u32 %v2689, 4294901760
    %v2882 = vsub.f32 %v2689, %v2881
    %v2883 = vand.u32 %v2882, 4294901760
    %v2884 = vsub.f32 %v2882, %v2883
    %v2885 = vand.u32 %v2884, 4294901760
    %2886 = vmatpush1.msra.mxu0 %v2885
    %2887 = vmatprep.subr.mxu0 0.0
    %v2888 = vand.u32 %v2690, 4294901760
    %v2889 = vsub.f32 %v2690, %v2888
    %v2890 = vand.u32 %v2889, 4294901760
    %v2891 = vsub.f32 %v2889, %v2890
    %v2892 = vand.u32 %v2891, 4294901760
    %2893 = vmatpush1.msra.mxu0 %v2892
    %2894 = vmatprep.subr.mxu0 0.0
    %v2895 = vand.u32 %v2691, 4294901760
    %v2896 = vsub.f32 %v2691, %v2895
    %v2897 = vand.u32 %v2896, 4294901760
    %v2898 = vsub.f32 %v2896, %v2897
    %v2899 = vand.u32 %v2898, 4294901760
    %2900 = vmatpush1.msra.mxu0 %v2899
    %2901 = vmatprep.subr.mxu0 0.0
    %v2902 = vand.u32 %v2692, 4294901760
    %v2903 = vsub.f32 %v2692, %v2902
    %v2904 = vand.u32 %v2903, 4294901760
    %v2905 = vsub.f32 %v2903, %v2904
    %v2906 = vand.u32 %v2905, 4294901760
    %2907 = vmatpush1.msra.mxu0 %v2906
    %2908 = vmatprep.subr.mxu0 0.0
    %v2909 = vand.u32 %v2693, 4294901760
    %v2910 = vsub.f32 %v2693, %v2909
    %v2911 = vand.u32 %v2910, 4294901760
    %v2912 = vsub.f32 %v2910, %v2911
    %v2913 = vand.u32 %v2912, 4294901760
    %2914 = vmatpush1.msra.mxu0 %v2913
    %2915 = vmatprep.subr.mxu0 0.0
    %2916 = vmatpush1.msra.mxu0 0.0
    %2917 = vmatprep.subr.mxu0 0.0
    %2918 = vmatpush1.msra.mxu0 0.0
    %2919 = vmatprep.subr.mxu0 0.0
    %2920 = vmatpush1.msra.mxu0 0.0
    %2921 = vmatprep.subr.mxu0 0.0
    %2922 = vmatpush1.msra.mxu0 0.0
    %2923 = vmatprep.subr.mxu0 0.0
    %2924 = vmatpush1.msra.mxu0 0.0
    %2925 = vmatprep.subr.mxu0 0.0
    %2926 = vmatpush1.msra.mxu0 0.0
    %2927 = vmatprep.subr.mxu0 0.0
    %2928 = vmatpush1.msra.mxu0 0.0
    %2929 = vmatprep.subr.mxu0 0.0
    %2930 = vmatpush1.msra.mxu0 0.0
    %2931 = vmatprep.subr.mxu0 0.0
    %2932 = vmatpush1.msra.mxu0 0.0
    %2933 = vmatprep.subr.mxu0 0.0
    %2934 = vmatpush1.msra.mxu0 0.0
    %2935 = vmatprep.subr.mxu0 0.0
    %2936 = vmatpush1.msra.mxu0 0.0
    %2937 = vmatprep.subr.mxu0 0.0
    %2938 = vmatpush1.msra.mxu0 0.0
    %2939 = vmatprep.subr.mxu0 0.0
    %2940 = vmatpush1.msra.mxu0 0.0
    %2941 = vmatprep.subr.mxu0 0.0
    %2942 = vmatpush1.msra.mxu0 0.0
    %2943 = vmatprep.subr.mxu0 0.0
    %2944 = vmatpush1.msra.mxu0 0.0
    %2945 = vmatprep.subr.mxu0 0.0
    %2946 = vmatpush1.msra.mxu0 0.0
    %2947 = vmatprep.mubr.f32.mxu0 0.0
    %v2948 = vand.u32 %v2675, 4294901760
    %2949 = vmatmul.mubr.f32.gmra.mrb[0].mxu0 %v2948
    %v2950 = vpop.f32.mrb[0].mxu0
    %v2951 = vadd.f32 %v2790, %v2950
    %v2952 = vpop.f32.mrb[0].mxu0
    %2953 = vmatprep.mubr.f32.mxu0 0.0
    %v2954 = vand.u32 %v2676, 4294901760
    %2955 = vmatmul.mubr.f32.gmra.mrb[0].mxu0 %v2954
    %v2956 = vpop.f32.mrb[0].mxu0
    %v2957 = vadd.f32 %v2800, %v2956
    %v2958 = vpop.f32.mrb[0].mxu0
    %2959 = vdwg.mxu0
    %2960 = vmatprep.subr.mxu0 0.0
    %v2961 = vand.u32 %v2678, 4294901760
    %v2962 = vsub.f32 %v2678, %v2961
    %2963 = vmatpush1.msra.mxu0 %v2962
    %2964 = vmatprep.subr.mxu0 0.0
    %v2965 = vand.u32 %v2679, 4294901760
    %v2966 = vsub.f32 %v2679, %v2965
    %2967 = vmatpush1.msra.mxu0 %v2966
    %2968 = vmatprep.subr.mxu0 0.0
    %v2969 = vand.u32 %v2680, 4294901760
    %v2970 = vsub.f32 %v2680, %v2969
    %2971 = vmatpush1.msra.mxu0 %v2970
    %2972 = vmatprep.subr.mxu0 0.0
    %v2973 = vand.u32 %v2681, 4294901760
    %v2974 = vsub.f32 %v2681, %v2973
    %2975 = vmatpush1.msra.mxu0 %v2974
    %2976 = vmatprep.subr.mxu0 0.0
    %v2977 = vand.u32 %v2682, 4294901760
    %v2978 = vsub.f32 %v2682, %v2977
    %2979 = vmatpush1.msra.mxu0 %v2978
    %2980 = vmatprep.subr.mxu0 0.0
    %v2981 = vand.u32 %v2683, 4294901760
    %v2982 = vsub.f32 %v2683, %v2981
    %2983 = vmatpush1.msra.mxu0 %v2982
    %2984 = vmatprep.subr.mxu0 0.0
    %v2985 = vand.u32 %v2684, 4294901760
    %v2986 = vsub.f32 %v2684, %v2985
    %2987 = vmatpush1.msra.mxu0 %v2986
    %2988 = vmatprep.subr.mxu0 0.0
    %v2989 = vand.u32 %v2685, 4294901760
    %v2990 = vsub.f32 %v2685, %v2989
    %2991 = vmatpush1.msra.mxu0 %v2990
    %2992 = vmatprep.subr.mxu0 0.0
    %v2993 = vand.u32 %v2686, 4294901760
    %v2994 = vsub.f32 %v2686, %v2993
    %2995 = vmatpush1.msra.mxu0 %v2994
    %2996 = vmatprep.subr.mxu0 0.0
    %v2997 = vand.u32 %v2687, 4294901760
    %v2998 = vsub.f32 %v2687, %v2997
    %2999 = vmatpush1.msra.mxu0 %v2998
    %3000 = vmatprep.subr.mxu0 0.0
    %v3001 = vand.u32 %v2688, 4294901760
    %v3002 = vsub.f32 %v2688, %v3001
    %3003 = vmatpush1.msra.mxu0 %v3002
    %3004 = vmatprep.subr.mxu0 0.0
    %v3005 = vand.u32 %v2689, 4294901760
    %v3006 = vsub.f32 %v2689, %v3005
    %3007 = vmatpush1.msra.mxu0 %v3006
    %3008 = vmatprep.subr.mxu0 0.0
    %v3009 = vand.u32 %v2690, 4294901760
    %v3010 = vsub.f32 %v2690, %v3009
    %3011 = vmatpush1.msra.mxu0 %v3010
    %3012 = vmatprep.subr.mxu0 0.0
    %v3013 = vand.u32 %v2691, 4294901760
    %v3014 = vsub.f32 %v2691, %v3013
    %3015 = vmatpush1.msra.mxu0 %v3014
    %3016 = vmatprep.subr.mxu0 0.0
    %v3017 = vand.u32 %v2692, 4294901760
    %v3018 = vsub.f32 %v2692, %v3017
    %3019 = vmatpush1.msra.mxu0 %v3018
    %3020 = vmatprep.subr.mxu0 0.0
    %v3021 = vand.u32 %v2693, 4294901760
    %v3022 = vsub.f32 %v2693, %v3021
    %3023 = vmatpush1.msra.mxu0 %v3022
    %3024 = vmatprep.subr.mxu0 0.0
    %3025 = vmatpush1.msra.mxu0 0.0
    %3026 = vmatprep.subr.mxu0 0.0
    %3027 = vmatpush1.msra.mxu0 0.0
    %3028 = vmatprep.subr.mxu0 0.0
    %3029 = vmatpush1.msra.mxu0 0.0
    %3030 = vmatprep.subr.mxu0 0.0
    %3031 = vmatpush1.msra.mxu0 0.0
    %3032 = vmatprep.subr.mxu0 0.0
    %3033 = vmatpush1.msra.mxu0 0.0
    %3034 = vmatprep.subr.mxu0 0.0
    %3035 = vmatpush1.msra.mxu0 0.0
    %3036 = vmatprep.subr.mxu0 0.0
    %3037 = vmatpush1.msra.mxu0 0.0
    %3038 = vmatprep.subr.mxu0 0.0
    %3039 = vmatpush1.msra.mxu0 0.0
    %3040 = vmatprep.subr.mxu0 0.0
    %3041 = vmatpush1.msra.mxu0 0.0
    %3042 = vmatprep.subr.mxu0 0.0
    %3043 = vmatpush1.msra.mxu0 0.0
    %3044 = vmatprep.subr.mxu0 0.0
    %3045 = vmatpush1.msra.mxu0 0.0
    %3046 = vmatprep.subr.mxu0 0.0
    %3047 = vmatpush1.msra.mxu0 0.0
    %3048 = vmatprep.subr.mxu0 0.0
    %3049 = vmatpush1.msra.mxu0 0.0
    %3050 = vmatprep.subr.mxu0 0.0
    %3051 = vmatpush1.msra.mxu0 0.0
    %3052 = vmatprep.subr.mxu0 0.0
    %3053 = vmatpush1.msra.mxu0 0.0
    %3054 = vmatprep.subr.mxu0 0.0
    %3055 = vmatpush1.msra.mxu0 0.0
    %3056 = vmatprep.mubr.f32.mxu0 0.0
    %v3057 = vand.u32 %v2675, 4294901760
    %v3058 = vsub.f32 %v2675, %v3057
    %3059 = vmatmul.mubr.f32.gmra.mrb[0].mxu0 %v3058
    %v3060 = vpop.f32.mrb[0].mxu0
    %v3061 = vadd.f32 %v2951, %v3060
    %v3062 = vpop.f32.mrb[0].mxu0
    %3063 = vmatprep.mubr.f32.mxu0 0.0
    %v3064 = vand.u32 %v2676, 4294901760
    %v3065 = vsub.f32 %v2676, %v3064
    %3066 = vmatmul.mubr.f32.gmra.mrb[0].mxu0 %v3065
    %v3067 = vpop.f32.mrb[0].mxu0
    %v3068 = vadd.f32 %v2957, %v3067
    %v3069 = vpop.f32.mrb[0].mxu0
    %3070 = vdwg.mxu0
    %3071 = vmatprep.subr.mxu0 0.0
    %v3072 = vand.u32 %v2678, 4294901760
    %3073 = vmatpush1.msra.mxu0 %v3072
    %3074 = vmatprep.subr.mxu0 0.0
    %v3075 = vand.u32 %v2679, 4294901760
    %3076 = vmatpush1.msra.mxu0 %v3075
    %3077 = vmatprep.subr.mxu0 0.0
    %v3078 = vand.u32 %v2680, 4294901760
    %3079 = vmatpush1.msra.mxu0 %v3078
    %3080 = vmatprep.subr.mxu0 0.0
    %v3081 = vand.u32 %v2681, 4294901760
    %3082 = vmatpush1.msra.mxu0 %v3081
    %3083 = vmatprep.subr.mxu0 0.0
    %v3084 = vand.u32 %v2682, 4294901760
    %3085 = vmatpush1.msra.mxu0 %v3084
    %3086 = vmatprep.subr.mxu0 0.0
    %v3087 = vand.u32 %v2683, 4294901760
    %3088 = vmatpush1.msra.mxu0 %v3087
    %3089 = vmatprep.subr.mxu0 0.0
    %v3090 = vand.u32 %v2684, 4294901760
    %3091 = vmatpush1.msra.mxu0 %v3090
    %3092 = vmatprep.subr.mxu0 0.0
    %v3093 = vand.u32 %v2685, 4294901760
    %3094 = vmatpush1.msra.mxu0 %v3093
    %3095 = vmatprep.subr.mxu0 0.0
    %v3096 = vand.u32 %v2686, 4294901760
    %3097 = vmatpush1.msra.mxu0 %v3096
    %3098 = vmatprep.subr.mxu0 0.0
    %v3099 = vand.u32 %v2687, 4294901760
    %3100 = vmatpush1.msra.mxu0 %v3099
    %3101 = vmatprep.subr.mxu0 0.0
    %v3102 = vand.u32 %v2688, 4294901760
    %3103 = vmatpush1.msra.mxu0 %v3102
    %3104 = vmatprep.subr.mxu0 0.0
    %v3105 = vand.u32 %v2689, 4294901760
    %3106 = vmatpush1.msra.mxu0 %v3105
    %3107 = vmatprep.subr.mxu0 0.0
    %v3108 = vand.u32 %v2690, 4294901760
    %3109 = vmatpush1.msra.mxu0 %v3108
    %3110 = vmatprep.subr.mxu0 0.0
    %v3111 = vand.u32 %v2691, 4294901760
    %3112 = vmatpush1.msra.mxu0 %v3111
    %3113 = vmatprep.subr.mxu0 0.0
    %v3114 = vand.u32 %v2692, 4294901760
    %3115 = vmatpush1.msra.mxu0 %v3114
    %3116 = vmatprep.subr.mxu0 0.0
    %v3117 = vand.u32 %v2693, 4294901760
    %3118 = vmatpush1.msra.mxu0 %v3117
    %3119 = vmatprep.subr.mxu0 0.0
    %3120 = vmatpush1.msra.mxu0 0.0
    %3121 = vmatprep.subr.mxu0 0.0
    %3122 = vmatpush1.msra.mxu0 0.0
    %3123 = vmatprep.subr.mxu0 0.0
    %3124 = vmatpush1.msra.mxu0 0.0
    %3125 = vmatprep.subr.mxu0 0.0
    %3126 = vmatpush1.msra.mxu0 0.0
    %3127 = vmatprep.subr.mxu0 0.0
    %3128 = vmatpush1.msra.mxu0 0.0
    %3129 = vmatprep.subr.mxu0 0.0
    %3130 = vmatpush1.msra.mxu0 0.0
    %3131 = vmatprep.subr.mxu0 0.0
    %3132 = vmatpush1.msra.mxu0 0.0
    %3133 = vmatprep.subr.mxu0 0.0
    %3134 = vmatpush1.msra.mxu0 0.0
    %3135 = vmatprep.subr.mxu0 0.0
    %3136 = vmatpush1.msra.mxu0 0.0
    %3137 = vmatprep.subr.mxu0 0.0
    %3138 = vmatpush1.msra.mxu0 0.0
    %3139 = vmatprep.subr.mxu0 0.0
    %3140 = vmatpush1.msra.mxu0 0.0
    %3141 = vmatprep.subr.mxu0 0.0
    %3142 = vmatpush1.msra.mxu0 0.0
    %3143 = vmatprep.subr.mxu0 0.0
    %3144 = vmatpush1.msra.mxu0 0.0
    %3145 = vmatprep.subr.mxu0 0.0
    %3146 = vmatpush1.msra.mxu0 0.0
    %3147 = vmatprep.subr.mxu0 0.0
    %3148 = vmatpush1.msra.mxu0 0.0
    %3149 = vmatprep.subr.mxu0 0.0
    %3150 = vmatpush1.msra.mxu0 0.0
    %3151 = vmatprep.mubr.f32.mxu0 0.0
    %v3152 = vand.u32 %v2675, 4294901760
    %v3153 = vsub.f32 %v2675, %v3152
    %v3154 = vand.u32 %v3153, 4294901760
    %3155 = vmatmul.mubr.f32.gmra.mrb[0].mxu0 %v3154
    %v3156 = vpop.f32.mrb[0].mxu0
    %v3157 = vadd.f32 %v3061, %v3156
    %v3158 = vpop.f32.mrb[0].mxu0
    %3159 = vmatprep.mubr.f32.mxu0 0.0
    %v3160 = vand.u32 %v2676, 4294901760
    %v3161 = vsub.f32 %v2676, %v3160
    %v3162 = vand.u32 %v3161, 4294901760
    %3163 = vmatmul.mubr.f32.gmra.mrb[0].mxu0 %v3162
    %v3164 = vpop.f32.mrb[0].mxu0
    %v3165 = vadd.f32 %v3068, %v3164
    %v3166 = vpop.f32.mrb[0].mxu0
    %3167 = vdwg.mxu0
    %3168 = vmatprep.subr.mxu0 0.0
    %v3169 = vand.u32 %v2678, 4294901760
    %v3170 = vsub.f32 %v2678, %v3169
    %v3171 = vand.u32 %v3170, 4294901760
    %3172 = vmatpush1.msra.mxu0 %v3171
    %3173 = vmatprep.subr.mxu0 0.0
    %v3174 = vand.u32 %v2679, 4294901760
    %v3175 = vsub.f32 %v2679, %v3174
    %v3176 = vand.u32 %v3175, 4294901760
    %3177 = vmatpush1.msra.mxu0 %v3176
    %3178 = vmatprep.subr.mxu0 0.0
    %v3179 = vand.u32 %v2680, 4294901760
    %v3180 = vsub.f32 %v2680, %v3179
    %v3181 = vand.u32 %v3180, 4294901760
    %3182 = vmatpush1.msra.mxu0 %v3181
    %3183 = vmatprep.subr.mxu0 0.0
    %v3184 = vand.u32 %v2681, 4294901760
    %v3185 = vsub.f32 %v2681, %v3184
    %v3186 = vand.u32 %v3185, 4294901760
    %3187 = vmatpush1.msra.mxu0 %v3186
    %3188 = vmatprep.subr.mxu0 0.0
    %v3189 = vand.u32 %v2682, 4294901760
    %v3190 = vsub.f32 %v2682, %v3189
    %v3191 = vand.u32 %v3190, 4294901760
    %3192 = vmatpush1.msra.mxu0 %v3191
    %3193 = vmatprep.subr.mxu0 0.0
    %v3194 = vand.u32 %v2683, 4294901760
    %v3195 = vsub.f32 %v2683, %v3194
    %v3196 = vand.u32 %v3195, 4294901760
    %3197 = vmatpush1.msra.mxu0 %v3196
    %3198 = vmatprep.subr.mxu0 0.0
    %v3199 = vand.u32 %v2684, 4294901760
    %v3200 = vsub.f32 %v2684, %v3199
    %v3201 = vand.u32 %v3200, 4294901760
    %3202 = vmatpush1.msra.mxu0 %v3201
    %3203 = vmatprep.subr.mxu0 0.0
    %v3204 = vand.u32 %v2685, 4294901760
    %v3205 = vsub.f32 %v2685, %v3204
    %v3206 = vand.u32 %v3205, 4294901760
    %3207 = vmatpush1.msra.mxu0 %v3206
    %3208 = vmatprep.subr.mxu0 0.0
    %v3209 = vand.u32 %v2686, 4294901760
    %v3210 = vsub.f32 %v2686, %v3209
    %v3211 = vand.u32 %v3210, 4294901760
    %3212 = vmatpush1.msra.mxu0 %v3211
    %3213 = vmatprep.subr.mxu0 0.0
    %v3214 = vand.u32 %v2687, 4294901760
    %v3215 = vsub.f32 %v2687, %v3214
    %v3216 = vand.u32 %v3215, 4294901760
    %3217 = vmatpush1.msra.mxu0 %v3216
    %3218 = vmatprep.subr.mxu0 0.0
    %v3219 = vand.u32 %v2688, 4294901760
    %v3220 = vsub.f32 %v2688, %v3219
    %v3221 = vand.u32 %v3220, 4294901760
    %3222 = vmatpush1.msra.mxu0 %v3221
    %3223 = vmatprep.subr.mxu0 0.0
    %v3224 = vand.u32 %v2689, 4294901760
    %v3225 = vsub.f32 %v2689, %v3224
    %v3226 = vand.u32 %v3225, 4294901760
    %3227 = vmatpush1.msra.mxu0 %v3226
    %3228 = vmatprep.subr.mxu0 0.0
    %v3229 = vand.u32 %v2690, 4294901760
    %v3230 = vsub.f32 %v2690, %v3229
    %v3231 = vand.u32 %v3230, 4294901760
    %3232 = vmatpush1.msra.mxu0 %v3231
    %3233 = vmatprep.subr.mxu0 0.0
    %v3234 = vand.u32 %v2691, 4294901760
    %v3235 = vsub.f32 %v2691, %v3234
    %v3236 = vand.u32 %v3235, 4294901760
    %3237 = vmatpush1.msra.mxu0 %v3236
    %3238 = vmatprep.subr.mxu0 0.0
    %v3239 = vand.u32 %v2692, 4294901760
    %v3240 = vsub.f32 %v2692, %v3239
    %v3241 = vand.u32 %v3240, 4294901760
    %3242 = vmatpush1.msra.mxu0 %v3241
    %3243 = vmatprep.subr.mxu0 0.0
    %v3244 = vand.u32 %v2693, 4294901760
    %v3245 = vsub.f32 %v2693, %v3244
    %v3246 = vand.u32 %v3245, 4294901760
    %3247 = vmatpush1.msra.mxu0 %v3246
    %3248 = vmatprep.subr.mxu0 0.0
    %3249 = vmatpush1.msra.mxu0 0.0
    %3250 = vmatprep.subr.mxu0 0.0
    %3251 = vmatpush1.msra.mxu0 0.0
    %3252 = vmatprep.subr.mxu0 0.0
    %3253 = vmatpush1.msra.mxu0 0.0
    %3254 = vmatprep.subr.mxu0 0.0
    %3255 = vmatpush1.msra.mxu0 0.0
    %3256 = vmatprep.subr.mxu0 0.0
    %3257 = vmatpush1.msra.mxu0 0.0
    %3258 = vmatprep.subr.mxu0 0.0
    %3259 = vmatpush1.msra.mxu0 0.0
    %3260 = vmatprep.subr.mxu0 0.0
    %3261 = vmatpush1.msra.mxu0 0.0
    %3262 = vmatprep.subr.mxu0 0.0
    %3263 = vmatpush1.msra.mxu0 0.0
    %3264 = vmatprep.subr.mxu0 0.0
    %3265 = vmatpush1.msra.mxu0 0.0
    %3266 = vmatprep.subr.mxu0 0.0
    %3267 = vmatpush1.msra.mxu0 0.0
    %3268 = vmatprep.subr.mxu0 0.0
    %3269 = vmatpush1.msra.mxu0 0.0
    %3270 = vmatprep.subr.mxu0 0.0
    %3271 = vmatpush1.msra.mxu0 0.0
    %3272 = vmatprep.subr.mxu0 0.0
    %3273 = vmatpush1.msra.mxu0 0.0
    %3274 = vmatprep.subr.mxu0 0.0
    %3275 = vmatpush1.msra.mxu0 0.0
    %3276 = vmatprep.subr.mxu0 0.0
    %3277 = vmatpush1.msra.mxu0 0.0
    %3278 = vmatprep.subr.mxu0 0.0
    %3279 = vmatpush1.msra.mxu0 0.0
    %3280 = vmatprep.mubr.f32.mxu0 0.0
    %v3281 = vand.u32 %v2675, 4294901760
    %3282 = vmatmul.mubr.f32.gmra.mrb[0].mxu0 %v3281
    %v3283 = vpop.f32.mrb[0].mxu0
    %v3284 = vadd.f32 %v3157, %v3283
    %v3285 = vpop.f32.mrb[0].mxu0
    %3286 = vmatprep.mubr.f32.mxu0 0.0
    %v3287 = vand.u32 %v2676, 4294901760
    %3288 = vmatmul.mubr.f32.gmra.mrb[0].mxu0 %v3287
    %v3289 = vpop.f32.mrb[0].mxu0
    %v3290 = vadd.f32 %v3165, %v3289
    %v3291 = vpop.f32.mrb[0].mxu0
    %3292 = vdwg.mxu0
    %3293 = vmatprep.subr.mxu0 0.0
    %v3294 = vand.u32 %v2678, 4294901760
    %3295 = vmatpush1.msra.mxu0 %v3294
    %3296 = vmatprep.subr.mxu0 0.0
    %v3297 = vand.u32 %v2679, 4294901760
    %3298 = vmatpush1.msra.mxu0 %v3297
    %3299 = vmatprep.subr.mxu0 0.0
    %v3300 = vand.u32 %v2680, 4294901760
    %3301 = vmatpush1.msra.mxu0 %v3300
    %3302 = vmatprep.subr.mxu0 0.0
    %v3303 = vand.u32 %v2681, 4294901760
    %3304 = vmatpush1.msra.mxu0 %v3303
    %3305 = vmatprep.subr.mxu0 0.0
    %v3306 = vand.u32 %v2682, 4294901760
    %3307 = vmatpush1.msra.mxu0 %v3306
    %3308 = vmatprep.subr.mxu0 0.0
    %v3309 = vand.u32 %v2683, 4294901760
    %3310 = vmatpush1.msra.mxu0 %v3309
    %3311 = vmatprep.subr.mxu0 0.0
    %v3312 = vand.u32 %v2684, 4294901760
    %3313 = vmatpush1.msra.mxu0 %v3312
    %3314 = vmatprep.subr.mxu0 0.0
    %v3315 = vand.u32 %v2685, 4294901760
    %3316 = vmatpush1.msra.mxu0 %v3315
    %3317 = vmatprep.subr.mxu0 0.0
    %v3318 = vand.u32 %v2686, 4294901760
    %3319 = vmatpush1.msra.mxu0 %v3318
    %3320 = vmatprep.subr.mxu0 0.0
    %v3321 = vand.u32 %v2687, 4294901760
    %3322 = vmatpush1.msra.mxu0 %v3321
    %3323 = vmatprep.subr.mxu0 0.0
    %v3324 = vand.u32 %v2688, 4294901760
    %3325 = vmatpush1.msra.mxu0 %v3324
    %3326 = vmatprep.subr.mxu0 0.0
    %v3327 = vand.u32 %v2689, 4294901760
    %3328 = vmatpush1.msra.mxu0 %v3327
    %3329 = vmatprep.subr.mxu0 0.0
    %v3330 = vand.u32 %v2690, 4294901760
    %3331 = vmatpush1.msra.mxu0 %v3330
    %3332 = vmatprep.subr.mxu0 0.0
    %v3333 = vand.u32 %v2691, 4294901760
    %3334 = vmatpush1.msra.mxu0 %v3333
    %3335 = vmatprep.subr.mxu0 0.0
    %v3336 = vand.u32 %v2692, 4294901760
    %3337 = vmatpush1.msra.mxu0 %v3336
    %3338 = vmatprep.subr.mxu0 0.0
    %v3339 = vand.u32 %v2693, 4294901760
    %3340 = vmatpush1.msra.mxu0 %v3339
    %3341 = vmatprep.subr.mxu0 0.0
    %3342 = vmatpush1.msra.mxu0 0.0
    %3343 = vmatprep.subr.mxu0 0.0
    %3344 = vmatpush1.msra.mxu0 0.0
    %3345 = vmatprep.subr.mxu0 0.0
    %3346 = vmatpush1.msra.mxu0 0.0
    %3347 = vmatprep.subr.mxu0 0.0
    %3348 = vmatpush1.msra.mxu0 0.0
    %3349 = vmatprep.subr.mxu0 0.0
    %3350 = vmatpush1.msra.mxu0 0.0
    %3351 = vmatprep.subr.mxu0 0.0
    %3352 = vmatpush1.msra.mxu0 0.0
    %3353 = vmatprep.subr.mxu0 0.0
    %3354 = vmatpush1.msra.mxu0 0.0
    %3355 = vmatprep.subr.mxu0 0.0
    %3356 = vmatpush1.msra.mxu0 0.0
    %3357 = vmatprep.subr.mxu0 0.0
    %3358 = vmatpush1.msra.mxu0 0.0
    %3359 = vmatprep.subr.mxu0 0.0
    %3360 = vmatpush1.msra.mxu0 0.0
    %3361 = vmatprep.subr.mxu0 0.0
    %3362 = vmatpush1.msra.mxu0 0.0
    %3363 = vmatprep.subr.mxu0 0.0
    %3364 = vmatpush1.msra.mxu0 0.0
    %3365 = vmatprep.subr.mxu0 0.0
    %3366 = vmatpush1.msra.mxu0 0.0
    %3367 = vmatprep.subr.mxu0 0.0
    %3368 = vmatpush1.msra.mxu0 0.0
    %3369 = vmatprep.subr.mxu0 0.0
    %3370 = vmatpush1.msra.mxu0 0.0
    %3371 = vmatprep.subr.mxu0 0.0
    %3372 = vmatpush1.msra.mxu0 0.0
    %3373 = vmatprep.mubr.f32.mxu0 0.0
    %v3374 = vand.u32 %v2675, 4294901760
    %3375 = vmatmul.mubr.f32.gmra.mrb[0].mxu0 %v3374
    %v3376 = vpop.f32.mrb[0].mxu0
    %v3377 = vadd.f32 %v3284, %v3376
    %v3378 = vpop.f32.mrb[0].mxu0
    %3379 = vmatprep.mubr.f32.mxu0 0.0
    %v3380 = vand.u32 %v2676, 4294901760
    %3381 = vmatmul.mubr.f32.gmra.mrb[0].mxu0 %v3380
    %v3382 = vpop.f32.mrb[0].mxu0
    %v3383 = vadd.f32 %v3290, %v3382
    %v3384 = vpop.f32.mrb[0].mxu0
    %3385 = vdwg.mxu0
    %v3386 = vmax.f32 %v3377, 0.0
    %v3387 = vmax.f32 %v3383, 0.0
    %s3388 = scalar_lea.vmem [#allocation2], 512
    %v3389 = vld [vmem:[%s3388] sm:$0xff]
    %v3390 = vld [vmem:[%s3388 + $0x8] sm:$0xff]
    %v3391 = vld [vmem:[%s3388 + $0x10] sm:$0xff]
    %v3392 = vld [vmem:[%s3388 + $0x18] sm:$0xff]
    %v3393 = vld [vmem:[%s3388 + $0x20] sm:$0xff]
    %v3394 = vld [vmem:[%s3388 + $0x28] sm:$0xff]
    %v3395 = vld [vmem:[%s3388 + $0x30] sm:$0xff]
    %v3396 = vld [vmem:[%s3388 + $0x38] sm:$0xff]
    %v3397 = vld [vmem:[%s3388 + $0x40] sm:$0xff]
    %v3398 = vld [vmem:[%s3388 + $0x48] sm:$0xff]
    %v3399 = vld [vmem:[%s3388 + $0x50] sm:$0xff]
    %v3400 = vld [vmem:[%s3388 + $0x58] sm:$0xff]
    %v3401 = vld [vmem:[%s3388 + $0x60] sm:$0xff]
    %v3402 = vld [vmem:[%s3388 + $0x68] sm:$0xff]
    %v3403 = vld [vmem:[%s3388 + $0x70] sm:$0xff]
    %v3404 = vld [vmem:[%s3388 + $0x78] sm:$0xff]
    %s3405 = scalar_lea.vmem %s3, 5
    %v3406 = vld [vmem:[%s3405] sm:$0x1]
    %v3408 = vlaneseq
    %v3409 = vshrl.u32 %v3408, 7
    %v3410 = vsub.s32 0, %v3409
    %v3411 = vrot.slane %v3406, %v3410
    %3413 = vmatprep.subr.mxu0 0.0
    %v3414 = vand.u32 %v3389, 4294901760
    %3415 = vmatpush1.msra.mxu0 %v3414
    %3416 = vmatprep.subr.mxu0 0.0
    %v3417 = vand.u32 %v3390, 4294901760
    %3418 = vmatpush1.msra.mxu0 %v3417
    %3419 = vmatprep.subr.mxu0 0.0
    %v3420 = vand.u32 %v3391, 4294901760
    %3421 = vmatpush1.msra.mxu0 %v3420
    %3422 = vmatprep.subr.mxu0 0.0
    %v3423 = vand.u32 %v3392, 4294901760
    %3424 = vmatpush1.msra.mxu0 %v3423
    %3425 = vmatprep.subr.mxu0 0.0
    %v3426 = vand.u32 %v3393, 4294901760
    %3427 = vmatpush1.msra.mxu0 %v3426
    %3428 = vmatprep.subr.mxu0 0.0
    %v3429 = vand.u32 %v3394, 4294901760
    %3430 = vmatpush1.msra.mxu0 %v3429
    %3431 = vmatprep.subr.mxu0 0.0
    %v3432 = vand.u32 %v3395, 4294901760
    %3433 = vmatpush1.msra.mxu0 %v3432
    %3434 = vmatprep.subr.mxu0 0.0
    %v3435 = vand.u32 %v3396, 4294901760
    %3436 = vmatpush1.msra.mxu0 %v3435
    %3437 = vmatprep.subr.mxu0 0.0
    %v3438 = vand.u32 %v3397, 4294901760
    %3439 = vmatpush1.msra.mxu0 %v3438
    %3440 = vmatprep.subr.mxu0 0.0
    %v3441 = vand.u32 %v3398, 4294901760
    %3442 = vmatpush1.msra.mxu0 %v3441
    %3443 = vmatprep.subr.mxu0 0.0
    %v3444 = vand.u32 %v3399, 4294901760
    %3445 = vmatpush1.msra.mxu0 %v3444
    %3446 = vmatprep.subr.mxu0 0.0
    %v3447 = vand.u32 %v3400, 4294901760
    %3448 = vmatpush1.msra.mxu0 %v3447
    %3449 = vmatprep.subr.mxu0 0.0
    %v3450 = vand.u32 %v3401, 4294901760
    %3451 = vmatpush1.msra.mxu0 %v3450
    %3452 = vmatprep.subr.mxu0 0.0
    %v3453 = vand.u32 %v3402, 4294901760
    %3454 = vmatpush1.msra.mxu0 %v3453
    %3455 = vmatprep.subr.mxu0 0.0
    %v3456 = vand.u32 %v3403, 4294901760
    %3457 = vmatpush1.msra.mxu0 %v3456
    %3458 = vmatprep.subr.mxu0 0.0
    %v3459 = vand.u32 %v3404, 4294901760
    %3460 = vmatpush1.msra.mxu0 %v3459
    %3461 = vmatprep.subr.mxu0 0.0
    %3462 = vmatpush1.msra.mxu0 0.0
    %3463 = vmatprep.subr.mxu0 0.0
    %3464 = vmatpush1.msra.mxu0 0.0
    %3465 = vmatprep.subr.mxu0 0.0
    %3466 = vmatpush1.msra.mxu0 0.0
    %3467 = vmatprep.subr.mxu0 0.0
    %3468 = vmatpush1.msra.mxu0 0.0
    %3469 = vmatprep.subr.mxu0 0.0
    %3470 = vmatpush1.msra.mxu0 0.0
    %3471 = vmatprep.subr.mxu0 0.0
    %3472 = vmatpush1.msra.mxu0 0.0
    %3473 = vmatprep.subr.mxu0 0.0
    %3474 = vmatpush1.msra.mxu0 0.0
    %3475 = vmatprep.subr.mxu0 0.0
    %3476 = vmatpush1.msra.mxu0 0.0
    %3477 = vmatprep.subr.mxu0 0.0
    %3478 = vmatpush1.msra.mxu0 0.0
    %3479 = vmatprep.subr.mxu0 0.0
    %3480 = vmatpush1.msra.mxu0 0.0
    %3481 = vmatprep.subr.mxu0 0.0
    %3482 = vmatpush1.msra.mxu0 0.0
    %3483 = vmatprep.subr.mxu0 0.0
    %3484 = vmatpush1.msra.mxu0 0.0
    %3485 = vmatprep.subr.mxu0 0.0
    %3486 = vmatpush1.msra.mxu0 0.0
    %3487 = vmatprep.subr.mxu0 0.0
    %3488 = vmatpush1.msra.mxu0 0.0
    %3489 = vmatprep.subr.mxu0 0.0
    %3490 = vmatpush1.msra.mxu0 0.0
    %3491 = vmatprep.subr.mxu0 0.0
    %3492 = vmatpush1.msra.mxu0 0.0
    %3493 = vmatprep.mubr.f32.mxu0 0.0
    %v3494 = vand.u32 %v3386, 4294901760
    %v3495 = vsub.f32 %v3386, %v3494
    %v3496 = vand.u32 %v3495, 4294901760
    %v3497 = vsub.f32 %v3495, %v3496
    %v3498 = vand.u32 %v3497, 4294901760
    %3499 = vmatmul.mubr.f32.gmra.mrb[0].mxu0 %v3498
    %v3500 = vpop.f32.mrb[0].mxu0
    %v3501 = vadd.f32 %v3411, %v3500
    %v3502 = vpop.f32.mrb[0].mxu0
    %3503 = vmatprep.mubr.f32.mxu0 0.0
    %v3504 = vand.u32 %v3387, 4294901760
    %v3505 = vsub.f32 %v3387, %v3504
    %v3506 = vand.u32 %v3505, 4294901760
    %v3507 = vsub.f32 %v3505, %v3506
    %v3508 = vand.u32 %v3507, 4294901760
    %3509 = vmatmul.mubr.f32.gmra.mrb[0].mxu0 %v3508
    %v3510 = vpop.f32.mrb[0].mxu0
    %v3511 = vadd.f32 %v3411, %v3510
    %v3512 = vpop.f32.mrb[0].mxu0
    %3513 = vdwg.mxu0
    %3514 = vmatprep.subr.mxu0 0.0
    %v3515 = vand.u32 %v3389, 4294901760
    %v3516 = vsub.f32 %v3389, %v3515
    %v3517 = vand.u32 %v3516, 4294901760
    %v3518 = vsub.f32 %v3516, %v3517
    %v3519 = vand.u32 %v3518, 4294901760
    %3520 = vmatpush1.msra.mxu0 %v3519
    %3521 = vmatprep.subr.mxu0 0.0
    %v3522 = vand.u32 %v3390, 4294901760
    %v3523 = vsub.f32 %v3390, %v3522
    %v3524 = vand.u32 %v3523, 4294901760
    %v3525 = vsub.f32 %v3523, %v3524
    %v3526 = vand.u32 %v3525, 4294901760
    %3527 = vmatpush1.msra.mxu0 %v3526
    %3528 = vmatprep.subr.mxu0 0.0
    %v3529 = vand.u32 %v3391, 4294901760
    %v3530 = vsub.f32 %v3391, %v3529
    %v3531 = vand.u32 %v3530, 4294901760
    %v3532 = vsub.f32 %v3530, %v3531
    %v3533 = vand.u32 %v3532, 4294901760
    %3534 = vmatpush1.msra.mxu0 %v3533
    %3535 = vmatprep.subr.mxu0 0.0
    %v3536 = vand.u32 %v3392, 4294901760
    %v3537 = vsub.f32 %v3392, %v3536
    %v3538 = vand.u32 %v3537, 4294901760
    %v3539 = vsub.f32 %v3537, %v3538
    %v3540 = vand.u32 %v3539, 4294901760
    %3541 = vmatpush1.msra.mxu0 %v3540
    %3542 = vmatprep.subr.mxu0 0.0
    %v3543 = vand.u32 %v3393, 4294901760
    %v3544 = vsub.f32 %v3393, %v3543
    %v3545 = vand.u32 %v3544, 4294901760
    %v3546 = vsub.f32 %v3544, %v3545
    %v3547 = vand.u32 %v3546, 4294901760
    %3548 = vmatpush1.msra.mxu0 %v3547
    %3549 = vmatprep.subr.mxu0 0.0
    %v3550 = vand.u32 %v3394, 4294901760
    %v3551 = vsub.f32 %v3394, %v3550
    %v3552 = vand.u32 %v3551, 4294901760
    %v3553 = vsub.f32 %v3551, %v3552
    %v3554 = vand.u32 %v3553, 4294901760
    %3555 = vmatpush1.msra.mxu0 %v3554
    %3556 = vmatprep.subr.mxu0 0.0
    %v3557 = vand.u32 %v3395, 4294901760
    %v3558 = vsub.f32 %v3395, %v3557
    %v3559 = vand.u32 %v3558, 4294901760
    %v3560 = vsub.f32 %v3558, %v3559
    %v3561 = vand.u32 %v3560, 4294901760
    %3562 = vmatpush1.msra.mxu0 %v3561
    %3563 = vmatprep.subr.mxu0 0.0
    %v3564 = vand.u32 %v3396, 4294901760
    %v3565 = vsub.f32 %v3396, %v3564
    %v3566 = vand.u32 %v3565, 4294901760
    %v3567 = vsub.f32 %v3565, %v3566
    %v3568 = vand.u32 %v3567, 4294901760
    %3569 = vmatpush1.msra.mxu0 %v3568
    %3570 = vmatprep.subr.mxu0 0.0
    %v3571 = vand.u32 %v3397, 4294901760
    %v3572 = vsub.f32 %v3397, %v3571
    %v3573 = vand.u32 %v3572, 4294901760
    %v3574 = vsub.f32 %v3572, %v3573
    %v3575 = vand.u32 %v3574, 4294901760
    %3576 = vmatpush1.msra.mxu0 %v3575
    %3577 = vmatprep.subr.mxu0 0.0
    %v3578 = vand.u32 %v3398, 4294901760
    %v3579 = vsub.f32 %v3398, %v3578
    %v3580 = vand.u32 %v3579, 4294901760
    %v3581 = vsub.f32 %v3579, %v3580
    %v3582 = vand.u32 %v3581, 4294901760
    %3583 = vmatpush1.msra.mxu0 %v3582
    %3584 = vmatprep.subr.mxu0 0.0
    %v3585 = vand.u32 %v3399, 4294901760
    %v3586 = vsub.f32 %v3399, %v3585
    %v3587 = vand.u32 %v3586, 4294901760
    %v3588 = vsub.f32 %v3586, %v3587
    %v3589 = vand.u32 %v3588, 4294901760
    %3590 = vmatpush1.msra.mxu0 %v3589
    %3591 = vmatprep.subr.mxu0 0.0
    %v3592 = vand.u32 %v3400, 4294901760
    %v3593 = vsub.f32 %v3400, %v3592
    %v3594 = vand.u32 %v3593, 4294901760
    %v3595 = vsub.f32 %v3593, %v3594
    %v3596 = vand.u32 %v3595, 4294901760
    %3597 = vmatpush1.msra.mxu0 %v3596
    %3598 = vmatprep.subr.mxu0 0.0
    %v3599 = vand.u32 %v3401, 4294901760
    %v3600 = vsub.f32 %v3401, %v3599
    %v3601 = vand.u32 %v3600, 4294901760
    %v3602 = vsub.f32 %v3600, %v3601
    %v3603 = vand.u32 %v3602, 4294901760
    %3604 = vmatpush1.msra.mxu0 %v3603
    %3605 = vmatprep.subr.mxu0 0.0
    %v3606 = vand.u32 %v3402, 4294901760
    %v3607 = vsub.f32 %v3402, %v3606
    %v3608 = vand.u32 %v3607, 4294901760
    %v3609 = vsub.f32 %v3607, %v3608
    %v3610 = vand.u32 %v3609, 4294901760
    %3611 = vmatpush1.msra.mxu0 %v3610
    %3612 = vmatprep.subr.mxu0 0.0
    %v3613 = vand.u32 %v3403, 4294901760
    %v3614 = vsub.f32 %v3403, %v3613
    %v3615 = vand.u32 %v3614, 4294901760
    %v3616 = vsub.f32 %v3614, %v3615
    %v3617 = vand.u32 %v3616, 4294901760
    %3618 = vmatpush1.msra.mxu0 %v3617
    %3619 = vmatprep.subr.mxu0 0.0
    %v3620 = vand.u32 %v3404, 4294901760
    %v3621 = vsub.f32 %v3404, %v3620
    %v3622 = vand.u32 %v3621, 4294901760
    %v3623 = vsub.f32 %v3621, %v3622
    %v3624 = vand.u32 %v3623, 4294901760
    %3625 = vmatpush1.msra.mxu0 %v3624
    %3626 = vmatprep.subr.mxu0 0.0
    %3627 = vmatpush1.msra.mxu0 0.0
    %3628 = vmatprep.subr.mxu0 0.0
    %3629 = vmatpush1.msra.mxu0 0.0
    %3630 = vmatprep.subr.mxu0 0.0
    %3631 = vmatpush1.msra.mxu0 0.0
    %3632 = vmatprep.subr.mxu0 0.0
    %3633 = vmatpush1.msra.mxu0 0.0
    %3634 = vmatprep.subr.mxu0 0.0
    %3635 = vmatpush1.msra.mxu0 0.0
    %3636 = vmatprep.subr.mxu0 0.0
    %3637 = vmatpush1.msra.mxu0 0.0
    %3638 = vmatprep.subr.mxu0 0.0
    %3639 = vmatpush1.msra.mxu0 0.0
    %3640 = vmatprep.subr.mxu0 0.0
    %3641 = vmatpush1.msra.mxu0 0.0
    %3642 = vmatprep.subr.mxu0 0.0
    %3643 = vmatpush1.msra.mxu0 0.0
    %3644 = vmatprep.subr.mxu0 0.0
    %3645 = vmatpush1.msra.mxu0 0.0
    %3646 = vmatprep.subr.mxu0 0.0
    %3647 = vmatpush1.msra.mxu0 0.0
    %3648 = vmatprep.subr.mxu0 0.0
    %3649 = vmatpush1.msra.mxu0 0.0
    %3650 = vmatprep.subr.mxu0 0.0
    %3651 = vmatpush1.msra.mxu0 0.0
    %3652 = vmatprep.subr.mxu0 0.0
    %3653 = vmatpush1.msra.mxu0 0.0
    %3654 = vmatprep.subr.mxu0 0.0
    %3655 = vmatpush1.msra.mxu0 0.0
    %3656 = vmatprep.subr.mxu0 0.0
    %3657 = vmatpush1.msra.mxu0 0.0
    %3658 = vmatprep.mubr.f32.mxu0 0.0
    %v3659 = vand.u32 %v3386, 4294901760
    %3660 = vmatmul.mubr.f32.gmra.mrb[0].mxu0 %v3659
    %v3661 = vpop.f32.mrb[0].mxu0
    %v3662 = vadd.f32 %v3501, %v3661
    %v3663 = vpop.f32.mrb[0].mxu0
    %3664 = vmatprep.mubr.f32.mxu0 0.0
    %v3665 = vand.u32 %v3387, 4294901760
    %3666 = vmatmul.mubr.f32.gmra.mrb[0].mxu0 %v3665
    %v3667 = vpop.f32.mrb[0].mxu0
    %v3668 = vadd.f32 %v3511, %v3667
    %v3669 = vpop.f32.mrb[0].mxu0
    %3670 = vdwg.mxu0
    %3671 = vmatprep.subr.mxu0 0.0
    %v3672 = vand.u32 %v3389, 4294901760
    %v3673 = vsub.f32 %v3389, %v3672
    %3674 = vmatpush1.msra.mxu0 %v3673
    %3675 = vmatprep.subr.mxu0 0.0
    %v3676 = vand.u32 %v3390, 4294901760
    %v3677 = vsub.f32 %v3390, %v3676
    %3678 = vmatpush1.msra.mxu0 %v3677
    %3679 = vmatprep.subr.mxu0 0.0
    %v3680 = vand.u32 %v3391, 4294901760
    %v3681 = vsub.f32 %v3391, %v3680
    %3682 = vmatpush1.msra.mxu0 %v3681
    %3683 = vmatprep.subr.mxu0 0.0
    %v3684 = vand.u32 %v3392, 4294901760
    %v3685 = vsub.f32 %v3392, %v3684
    %3686 = vmatpush1.msra.mxu0 %v3685
    %3687 = vmatprep.subr.mxu0 0.0
    %v3688 = vand.u32 %v3393, 4294901760
    %v3689 = vsub.f32 %v3393, %v3688
    %3690 = vmatpush1.msra.mxu0 %v3689
    %3691 = vmatprep.subr.mxu0 0.0
    %v3692 = vand.u32 %v3394, 4294901760
    %v3693 = vsub.f32 %v3394, %v3692
    %3694 = vmatpush1.msra.mxu0 %v3693
    %3695 = vmatprep.subr.mxu0 0.0
    %v3696 = vand.u32 %v3395, 4294901760
    %v3697 = vsub.f32 %v3395, %v3696
    %3698 = vmatpush1.msra.mxu0 %v3697
    %3699 = vmatprep.subr.mxu0 0.0
    %v3700 = vand.u32 %v3396, 4294901760
    %v3701 = vsub.f32 %v3396, %v3700
    %3702 = vmatpush1.msra.mxu0 %v3701
    %3703 = vmatprep.subr.mxu0 0.0
    %v3704 = vand.u32 %v3397, 4294901760
    %v3705 = vsub.f32 %v3397, %v3704
    %3706 = vmatpush1.msra.mxu0 %v3705
    %3707 = vmatprep.subr.mxu0 0.0
    %v3708 = vand.u32 %v3398, 4294901760
    %v3709 = vsub.f32 %v3398, %v3708
    %3710 = vmatpush1.msra.mxu0 %v3709
    %3711 = vmatprep.subr.mxu0 0.0
    %v3712 = vand.u32 %v3399, 4294901760
    %v3713 = vsub.f32 %v3399, %v3712
    %3714 = vmatpush1.msra.mxu0 %v3713
    %3715 = vmatprep.subr.mxu0 0.0
    %v3716 = vand.u32 %v3400, 4294901760
    %v3717 = vsub.f32 %v3400, %v3716
    %3718 = vmatpush1.msra.mxu0 %v3717
    %3719 = vmatprep.subr.mxu0 0.0
    %v3720 = vand.u32 %v3401, 4294901760
    %v3721 = vsub.f32 %v3401, %v3720
    %3722 = vmatpush1.msra.mxu0 %v3721
    %3723 = vmatprep.subr.mxu0 0.0
    %v3724 = vand.u32 %v3402, 4294901760
    %v3725 = vsub.f32 %v3402, %v3724
    %3726 = vmatpush1.msra.mxu0 %v3725
    %3727 = vmatprep.subr.mxu0 0.0
    %v3728 = vand.u32 %v3403, 4294901760
    %v3729 = vsub.f32 %v3403, %v3728
    %3730 = vmatpush1.msra.mxu0 %v3729
    %3731 = vmatprep.subr.mxu0 0.0
    %v3732 = vand.u32 %v3404, 4294901760
    %v3733 = vsub.f32 %v3404, %v3732
    %3734 = vmatpush1.msra.mxu0 %v3733
    %3735 = vmatprep.subr.mxu0 0.0
    %3736 = vmatpush1.msra.mxu0 0.0
    %3737 = vmatprep.subr.mxu0 0.0
    %3738 = vmatpush1.msra.mxu0 0.0
    %3739 = vmatprep.subr.mxu0 0.0
    %3740 = vmatpush1.msra.mxu0 0.0
    %3741 = vmatprep.subr.mxu0 0.0
    %3742 = vmatpush1.msra.mxu0 0.0
    %3743 = vmatprep.subr.mxu0 0.0
    %3744 = vmatpush1.msra.mxu0 0.0
    %3745 = vmatprep.subr.mxu0 0.0
    %3746 = vmatpush1.msra.mxu0 0.0
    %3747 = vmatprep.subr.mxu0 0.0
    %3748 = vmatpush1.msra.mxu0 0.0
    %3749 = vmatprep.subr.mxu0 0.0
    %3750 = vmatpush1.msra.mxu0 0.0
    %3751 = vmatprep.subr.mxu0 0.0
    %3752 = vmatpush1.msra.mxu0 0.0
    %3753 = vmatprep.subr.mxu0 0.0
    %3754 = vmatpush1.msra.mxu0 0.0
    %3755 = vmatprep.subr.mxu0 0.0
    %3756 = vmatpush1.msra.mxu0 0.0
    %3757 = vmatprep.subr.mxu0 0.0
    %3758 = vmatpush1.msra.mxu0 0.0
    %3759 = vmatprep.subr.mxu0 0.0
    %3760 = vmatpush1.msra.mxu0 0.0
    %3761 = vmatprep.subr.mxu0 0.0
    %3762 = vmatpush1.msra.mxu0 0.0
    %3763 = vmatprep.subr.mxu0 0.0
    %3764 = vmatpush1.msra.mxu0 0.0
    %3765 = vmatprep.subr.mxu0 0.0
    %3766 = vmatpush1.msra.mxu0 0.0
    %3767 = vmatprep.mubr.f32.mxu0 0.0
    %v3768 = vand.u32 %v3386, 4294901760
    %v3769 = vsub.f32 %v3386, %v3768
    %3770 = vmatmul.mubr.f32.gmra.mrb[0].mxu0 %v3769
    %v3771 = vpop.f32.mrb[0].mxu0
    %v3772 = vadd.f32 %v3662, %v3771
    %v3773 = vpop.f32.mrb[0].mxu0
    %3774 = vmatprep.mubr.f32.mxu0 0.0
    %v3775 = vand.u32 %v3387, 4294901760
    %v3776 = vsub.f32 %v3387, %v3775
    %3777 = vmatmul.mubr.f32.gmra.mrb[0].mxu0 %v3776
    %v3778 = vpop.f32.mrb[0].mxu0
    %v3779 = vadd.f32 %v3668, %v3778
    %v3780 = vpop.f32.mrb[0].mxu0
    %3781 = vdwg.mxu0
    %3782 = vmatprep.subr.mxu0 0.0
    %v3783 = vand.u32 %v3389, 4294901760
    %3784 = vmatpush1.msra.mxu0 %v3783
    %3785 = vmatprep.subr.mxu0 0.0
    %v3786 = vand.u32 %v3390, 4294901760
    %3787 = vmatpush1.msra.mxu0 %v3786
    %3788 = vmatprep.subr.mxu0 0.0
    %v3789 = vand.u32 %v3391, 4294901760
    %3790 = vmatpush1.msra.mxu0 %v3789
    %3791 = vmatprep.subr.mxu0 0.0
    %v3792 = vand.u32 %v3392, 4294901760
    %3793 = vmatpush1.msra.mxu0 %v3792
    %3794 = vmatprep.subr.mxu0 0.0
    %v3795 = vand.u32 %v3393, 4294901760
    %3796 = vmatpush1.msra.mxu0 %v3795
    %3797 = vmatprep.subr.mxu0 0.0
    %v3798 = vand.u32 %v3394, 4294901760
    %3799 = vmatpush1.msra.mxu0 %v3798
    %3800 = vmatprep.subr.mxu0 0.0
    %v3801 = vand.u32 %v3395, 4294901760
    %3802 = vmatpush1.msra.mxu0 %v3801
    %3803 = vmatprep.subr.mxu0 0.0
    %v3804 = vand.u32 %v3396, 4294901760
    %3805 = vmatpush1.msra.mxu0 %v3804
    %3806 = vmatprep.subr.mxu0 0.0
    %v3807 = vand.u32 %v3397, 4294901760
    %3808 = vmatpush1.msra.mxu0 %v3807
    %3809 = vmatprep.subr.mxu0 0.0
    %v3810 = vand.u32 %v3398, 4294901760
    %3811 = vmatpush1.msra.mxu0 %v3810
    %3812 = vmatprep.subr.mxu0 0.0
    %v3813 = vand.u32 %v3399, 4294901760
    %3814 = vmatpush1.msra.mxu0 %v3813
    %3815 = vmatprep.subr.mxu0 0.0
    %v3816 = vand.u32 %v3400, 4294901760
    %3817 = vmatpush1.msra.mxu0 %v3816
    %3818 = vmatprep.subr.mxu0 0.0
    %v3819 = vand.u32 %v3401, 4294901760
    %3820 = vmatpush1.msra.mxu0 %v3819
    %3821 = vmatprep.subr.mxu0 0.0
    %v3822 = vand.u32 %v3402, 4294901760
    %3823 = vmatpush1.msra.mxu0 %v3822
    %3824 = vmatprep.subr.mxu0 0.0
    %v3825 = vand.u32 %v3403, 4294901760
    %3826 = vmatpush1.msra.mxu0 %v3825
    %3827 = vmatprep.subr.mxu0 0.0
    %v3828 = vand.u32 %v3404, 4294901760
    %3829 = vmatpush1.msra.mxu0 %v3828
    %3830 = vmatprep.subr.mxu0 0.0
    %3831 = vmatpush1.msra.mxu0 0.0
    %3832 = vmatprep.subr.mxu0 0.0
    %3833 = vmatpush1.msra.mxu0 0.0
    %3834 = vmatprep.subr.mxu0 0.0
    %3835 = vmatpush1.msra.mxu0 0.0
    %3836 = vmatprep.subr.mxu0 0.0
    %3837 = vmatpush1.msra.mxu0 0.0
    %3838 = vmatprep.subr.mxu0 0.0
    %3839 = vmatpush1.msra.mxu0 0.0
    %3840 = vmatprep.subr.mxu0 0.0
    %3841 = vmatpush1.msra.mxu0 0.0
    %3842 = vmatprep.subr.mxu0 0.0
    %3843 = vmatpush1.msra.mxu0 0.0
    %3844 = vmatprep.subr.mxu0 0.0
    %3845 = vmatpush1.msra.mxu0 0.0
    %3846 = vmatprep.subr.mxu0 0.0
    %3847 = vmatpush1.msra.mxu0 0.0
    %3848 = vmatprep.subr.mxu0 0.0
    %3849 = vmatpush1.msra.mxu0 0.0
    %3850 = vmatprep.subr.mxu0 0.0
    %3851 = vmatpush1.msra.mxu0 0.0
    %3852 = vmatprep.subr.mxu0 0.0
    %3853 = vmatpush1.msra.mxu0 0.0
    %3854 = vmatprep.subr.mxu0 0.0
    %3855 = vmatpush1.msra.mxu0 0.0
    %3856 = vmatprep.subr.mxu0 0.0
    %3857 = vmatpush1.msra.mxu0 0.0
    %3858 = vmatprep.subr.mxu0 0.0
    %3859 = vmatpush1.msra.mxu0 0.0
    %3860 = vmatprep.subr.mxu0 0.0
    %3861 = vmatpush1.msra.mxu0 0.0
    %3862 = vmatprep.mubr.f32.mxu0 0.0
    %v3863 = vand.u32 %v3386, 4294901760
    %v3864 = vsub.f32 %v3386, %v3863
    %v3865 = vand.u32 %v3864, 4294901760
    %3866 = vmatmul.mubr.f32.gmra.mrb[0].mxu0 %v3865
    %v3867 = vpop.f32.mrb[0].mxu0
    %v3868 = vadd.f32 %v3772, %v3867
    %v3869 = vpop.f32.mrb[0].mxu0
    %3870 = vmatprep.mubr.f32.mxu0 0.0
    %v3871 = vand.u32 %v3387, 4294901760
    %v3872 = vsub.f32 %v3387, %v3871
    %v3873 = vand.u32 %v3872, 4294901760
    %3874 = vmatmul.mubr.f32.gmra.mrb[0].mxu0 %v3873
    %v3875 = vpop.f32.mrb[0].mxu0
    %v3876 = vadd.f32 %v3779, %v3875
    %v3877 = vpop.f32.mrb[0].mxu0
    %3878 = vdwg.mxu0
    %3879 = vmatprep.subr.mxu0 0.0
    %v3880 = vand.u32 %v3389, 4294901760
    %v3881 = vsub.f32 %v3389, %v3880
    %v3882 = vand.u32 %v3881, 4294901760
    %3883 = vmatpush1.msra.mxu0 %v3882
    %3884 = vmatprep.subr.mxu0 0.0
    %v3885 = vand.u32 %v3390, 4294901760
    %v3886 = vsub.f32 %v3390, %v3885
    %v3887 = vand.u32 %v3886, 4294901760
    %3888 = vmatpush1.msra.mxu0 %v3887
    %3889 = vmatprep.subr.mxu0 0.0
    %v3890 = vand.u32 %v3391, 4294901760
    %v3891 = vsub.f32 %v3391, %v3890
    %v3892 = vand.u32 %v3891, 4294901760
    %3893 = vmatpush1.msra.mxu0 %v3892
    %3894 = vmatprep.subr.mxu0 0.0
    %v3895 = vand.u32 %v3392, 4294901760
    %v3896 = vsub.f32 %v3392, %v3895
    %v3897 = vand.u32 %v3896, 4294901760
    %3898 = vmatpush1.msra.mxu0 %v3897
    %3899 = vmatprep.subr.mxu0 0.0
    %v3900 = vand.u32 %v3393, 4294901760
    %v3901 = vsub.f32 %v3393, %v3900
    %v3902 = vand.u32 %v3901, 4294901760
    %3903 = vmatpush1.msra.mxu0 %v3902
    %3904 = vmatprep.subr.mxu0 0.0
    %v3905 = vand.u32 %v3394, 4294901760
    %v3906 = vsub.f32 %v3394, %v3905
    %v3907 = vand.u32 %v3906, 4294901760
    %3908 = vmatpush1.msra.mxu0 %v3907
    %3909 = vmatprep.subr.mxu0 0.0
    %v3910 = vand.u32 %v3395, 4294901760
    %v3911 = vsub.f32 %v3395, %v3910
    %v3912 = vand.u32 %v3911, 4294901760
    %3913 = vmatpush1.msra.mxu0 %v3912
    %3914 = vmatprep.subr.mxu0 0.0
    %v3915 = vand.u32 %v3396, 4294901760
    %v3916 = vsub.f32 %v3396, %v3915
    %v3917 = vand.u32 %v3916, 4294901760
    %3918 = vmatpush1.msra.mxu0 %v3917
    %3919 = vmatprep.subr.mxu0 0.0
    %v3920 = vand.u32 %v3397, 4294901760
    %v3921 = vsub.f32 %v3397, %v3920
    %v3922 = vand.u32 %v3921, 4294901760
    %3923 = vmatpush1.msra.mxu0 %v3922
    %3924 = vmatprep.subr.mxu0 0.0
    %v3925 = vand.u32 %v3398, 4294901760
    %v3926 = vsub.f32 %v3398, %v3925
    %v3927 = vand.u32 %v3926, 4294901760
    %3928 = vmatpush1.msra.mxu0 %v3927
    %3929 = vmatprep.subr.mxu0 0.0
    %v3930 = vand.u32 %v3399, 4294901760
    %v3931 = vsub.f32 %v3399, %v3930
    %v3932 = vand.u32 %v3931, 4294901760
    %3933 = vmatpush1.msra.mxu0 %v3932
    %3934 = vmatprep.subr.mxu0 0.0
    %v3935 = vand.u32 %v3400, 4294901760
    %v3936 = vsub.f32 %v3400, %v3935
    %v3937 = vand.u32 %v3936, 4294901760
    %3938 = vmatpush1.msra.mxu0 %v3937
    %3939 = vmatprep.subr.mxu0 0.0
    %v3940 = vand.u32 %v3401, 4294901760
    %v3941 = vsub.f32 %v3401, %v3940
    %v3942 = vand.u32 %v3941, 4294901760
    %3943 = vmatpush1.msra.mxu0 %v3942
    %3944 = vmatprep.subr.mxu0 0.0
    %v3945 = vand.u32 %v3402, 4294901760
    %v3946 = vsub.f32 %v3402, %v3945
    %v3947 = vand.u32 %v3946, 4294901760
    %3948 = vmatpush1.msra.mxu0 %v3947
    %3949 = vmatprep.subr.mxu0 0.0
    %v3950 = vand.u32 %v3403, 4294901760
    %v3951 = vsub.f32 %v3403, %v3950
    %v3952 = vand.u32 %v3951, 4294901760
    %3953 = vmatpush1.msra.mxu0 %v3952
    %3954 = vmatprep.subr.mxu0 0.0
    %v3955 = vand.u32 %v3404, 4294901760
    %v3956 = vsub.f32 %v3404, %v3955
    %v3957 = vand.u32 %v3956, 4294901760
    %3958 = vmatpush1.msra.mxu0 %v3957
    %3959 = vmatprep.subr.mxu0 0.0
    %3960 = vmatpush1.msra.mxu0 0.0
    %3961 = vmatprep.subr.mxu0 0.0
    %3962 = vmatpush1.msra.mxu0 0.0
    %3963 = vmatprep.subr.mxu0 0.0
    %3964 = vmatpush1.msra.mxu0 0.0
    %3965 = vmatprep.subr.mxu0 0.0
    %3966 = vmatpush1.msra.mxu0 0.0
    %3967 = vmatprep.subr.mxu0 0.0
    %3968 = vmatpush1.msra.mxu0 0.0
    %3969 = vmatprep.subr.mxu0 0.0
    %3970 = vmatpush1.msra.mxu0 0.0
    %3971 = vmatprep.subr.mxu0 0.0
    %3972 = vmatpush1.msra.mxu0 0.0
    %3973 = vmatprep.subr.mxu0 0.0
    %3974 = vmatpush1.msra.mxu0 0.0
    %3975 = vmatprep.subr.mxu0 0.0
    %3976 = vmatpush1.msra.mxu0 0.0
    %3977 = vmatprep.subr.mxu0 0.0
    %3978 = vmatpush1.msra.mxu0 0.0
    %3979 = vmatprep.subr.mxu0 0.0
    %3980 = vmatpush1.msra.mxu0 0.0
    %3981 = vmatprep.subr.mxu0 0.0
    %3982 = vmatpush1.msra.mxu0 0.0
    %3983 = vmatprep.subr.mxu0 0.0
    %3984 = vmatpush1.msra.mxu0 0.0
    %3985 = vmatprep.subr.mxu0 0.0
    %3986 = vmatpush1.msra.mxu0 0.0
    %3987 = vmatprep.subr.mxu0 0.0
    %3988 = vmatpush1.msra.mxu0 0.0
    %3989 = vmatprep.subr.mxu0 0.0
    %3990 = vmatpush1.msra.mxu0 0.0
    %3991 = vmatprep.mubr.f32.mxu0 0.0
    %v3992 = vand.u32 %v3386, 4294901760
    %3993 = vmatmul.mubr.f32.gmra.mrb[0].mxu0 %v3992
    %v3994 = vpop.f32.mrb[0].mxu0
    %v3995 = vadd.f32 %v3868, %v3994
    %v3996 = vpop.f32.mrb[0].mxu0
    %3997 = vmatprep.mubr.f32.mxu0 0.0
    %v3998 = vand.u32 %v3387, 4294901760
    %3999 = vmatmul.mubr.f32.gmra.mrb[0].mxu0 %v3998
    %v4000 = vpop.f32.mrb[0].mxu0
    %v4001 = vadd.f32 %v3876, %v4000
    %v4002 = vpop.f32.mrb[0].mxu0
    %4003 = vdwg.mxu0
    %4004 = vmatprep.subr.mxu0 0.0
    %v4005 = vand.u32 %v3389, 4294901760
    %4006 = vmatpush1.msra.mxu0 %v4005
    %4007 = vmatprep.subr.mxu0 0.0
    %v4008 = vand.u32 %v3390, 4294901760
    %4009 = vmatpush1.msra.mxu0 %v4008
    %4010 = vmatprep.subr.mxu0 0.0
    %v4011 = vand.u32 %v3391, 4294901760
    %4012 = vmatpush1.msra.mxu0 %v4011
    %4013 = vmatprep.subr.mxu0 0.0
    %v4014 = vand.u32 %v3392, 4294901760
    %4015 = vmatpush1.msra.mxu0 %v4014
    %4016 = vmatprep.subr.mxu0 0.0
    %v4017 = vand.u32 %v3393, 4294901760
    %4018 = vmatpush1.msra.mxu0 %v4017
    %4019 = vmatprep.subr.mxu0 0.0
    %v4020 = vand.u32 %v3394, 4294901760
    %4021 = vmatpush1.msra.mxu0 %v4020
    %4022 = vmatprep.subr.mxu0 0.0
    %v4023 = vand.u32 %v3395, 4294901760
    %4024 = vmatpush1.msra.mxu0 %v4023
    %4025 = vmatprep.subr.mxu0 0.0
    %v4026 = vand.u32 %v3396, 4294901760
    %4027 = vmatpush1.msra.mxu0 %v4026
    %4028 = vmatprep.subr.mxu0 0.0
    %v4029 = vand.u32 %v3397, 4294901760
    %4030 = vmatpush1.msra.mxu0 %v4029
    %4031 = vmatprep.subr.mxu0 0.0
    %v4032 = vand.u32 %v3398, 4294901760
    %4033 = vmatpush1.msra.mxu0 %v4032
    %4034 = vmatprep.subr.mxu0 0.0
    %v4035 = vand.u32 %v3399, 4294901760
    %4036 = vmatpush1.msra.mxu0 %v4035
    %4037 = vmatprep.subr.mxu0 0.0
    %v4038 = vand.u32 %v3400, 4294901760
    %4039 = vmatpush1.msra.mxu0 %v4038
    %4040 = vmatprep.subr.mxu0 0.0
    %v4041 = vand.u32 %v3401, 4294901760
    %4042 = vmatpush1.msra.mxu0 %v4041
    %4043 = vmatprep.subr.mxu0 0.0
    %v4044 = vand.u32 %v3402, 4294901760
    %4045 = vmatpush1.msra.mxu0 %v4044
    %4046 = vmatprep.subr.mxu0 0.0
    %v4047 = vand.u32 %v3403, 4294901760
    %4048 = vmatpush1.msra.mxu0 %v4047
    %4049 = vmatprep.subr.mxu0 0.0
    %v4050 = vand.u32 %v3404, 4294901760
    %4051 = vmatpush1.msra.mxu0 %v4050
    %4052 = vmatprep.subr.mxu0 0.0
    %4053 = vmatpush1.msra.mxu0 0.0
    %4054 = vmatprep.subr.mxu0 0.0
    %4055 = vmatpush1.msra.mxu0 0.0
    %4056 = vmatprep.subr.mxu0 0.0
    %4057 = vmatpush1.msra.mxu0 0.0
    %4058 = vmatprep.subr.mxu0 0.0
    %4059 = vmatpush1.msra.mxu0 0.0
    %4060 = vmatprep.subr.mxu0 0.0
    %4061 = vmatpush1.msra.mxu0 0.0
    %4062 = vmatprep.subr.mxu0 0.0
    %4063 = vmatpush1.msra.mxu0 0.0
    %4064 = vmatprep.subr.mxu0 0.0
    %4065 = vmatpush1.msra.mxu0 0.0
    %4066 = vmatprep.subr.mxu0 0.0
    %4067 = vmatpush1.msra.mxu0 0.0
    %4068 = vmatprep.subr.mxu0 0.0
    %4069 = vmatpush1.msra.mxu0 0.0
    %4070 = vmatprep.subr.mxu0 0.0
    %4071 = vmatpush1.msra.mxu0 0.0
    %4072 = vmatprep.subr.mxu0 0.0
    %4073 = vmatpush1.msra.mxu0 0.0
    %4074 = vmatprep.subr.mxu0 0.0
    %4075 = vmatpush1.msra.mxu0 0.0
    %4076 = vmatprep.subr.mxu0 0.0
    %4077 = vmatpush1.msra.mxu0 0.0
    %4078 = vmatprep.subr.mxu0 0.0
    %4079 = vmatpush1.msra.mxu0 0.0
    %4080 = vmatprep.subr.mxu0 0.0
    %4081 = vmatpush1.msra.mxu0 0.0
    %4082 = vmatprep.subr.mxu0 0.0
    %4083 = vmatpush1.msra.mxu0 0.0
    %4084 = vmatprep.mubr.f32.mxu0 0.0
    %v4085 = vand.u32 %v3386, 4294901760
    %4086 = vmatmul.mubr.f32.gmra.mrb[0].mxu0 %v4085
    %v4087 = vpop.f32.mrb[0].mxu0
    %v4088 = vadd.f32 %v3995, %v4087
    %v4089 = vpop.f32.mrb[0].mxu0
    %4090 = vmatprep.mubr.f32.mxu0 0.0
    %v4091 = vand.u32 %v3387, 4294901760
    %4092 = vmatmul.mubr.f32.gmra.mrb[0].mxu0 %v4091
    %v4093 = vpop.f32.mrb[0].mxu0
    %v4094 = vadd.f32 %v4001, %v4093
    %v4095 = vpop.f32.mrb[0].mxu0
    %4096 = vdwg.mxu0
    %v4097 = vmax.f32 %v4088, 0.0
    %v4098 = vmax.f32 %v4094, 0.0
    %v4099 = vld [vmem:[%s4] sm:$0xff]
    %v4100 = vld [vmem:[%s4 + $0x8] sm:$0xff]
    %v4101 = vld [vmem:[%s4 + $0x10] sm:$0xff]
    %v4102 = vld [vmem:[%s4 + $0x18] sm:$0xff]
    %v4103 = vld [vmem:[%s4 + $0x20] sm:$0xff]
    %v4104 = vld [vmem:[%s4 + $0x28] sm:$0xff]
    %v4105 = vld [vmem:[%s4 + $0x30] sm:$0xff]
    %v4106 = vld [vmem:[%s4 + $0x38] sm:$0xff]
    %v4107 = vld [vmem:[%s4 + $0x40] sm:$0xff]
    %v4108 = vld [vmem:[%s4 + $0x48] sm:$0xff]
    %v4109 = vld [vmem:[%s4 + $0x50] sm:$0xff]
    %v4110 = vld [vmem:[%s4 + $0x58] sm:$0xff]
    %v4111 = vld [vmem:[%s4 + $0x60] sm:$0xff]
    %v4112 = vld [vmem:[%s4 + $0x68] sm:$0xff]
    %v4113 = vld [vmem:[%s4 + $0x70] sm:$0xff]
    %v4114 = vld [vmem:[%s4 + $0x78] sm:$0xff]
    %v4115 = vld [vmem:[%s5] sm:$0x1]
    %v4117 = vlaneseq
    %v4118 = vshrl.u32 %v4117, 7
    %v4119 = vsub.s32 0, %v4118
    %v4120 = vrot.slane %v4115, %v4119
    %4122 = vmatprep.subr.mxu0 0.0
    %v4123 = vand.u32 %v4099, 4294901760
    %4124 = vmatpush1.msra.mxu0 %v4123
    %4125 = vmatprep.subr.mxu0 0.0
    %v4126 = vand.u32 %v4100, 4294901760
    %4127 = vmatpush1.msra.mxu0 %v4126
    %4128 = vmatprep.subr.mxu0 0.0
    %v4129 = vand.u32 %v4101, 4294901760
    %4130 = vmatpush1.msra.mxu0 %v4129
    %4131 = vmatprep.subr.mxu0 0.0
    %v4132 = vand.u32 %v4102, 4294901760
    %4133 = vmatpush1.msra.mxu0 %v4132
    %4134 = vmatprep.subr.mxu0 0.0
    %v4135 = vand.u32 %v4103, 4294901760
    %4136 = vmatpush1.msra.mxu0 %v4135
    %4137 = vmatprep.subr.mxu0 0.0
    %v4138 = vand.u32 %v4104, 4294901760
    %4139 = vmatpush1.msra.mxu0 %v4138
    %4140 = vmatprep.subr.mxu0 0.0
    %v4141 = vand.u32 %v4105, 4294901760
    %4142 = vmatpush1.msra.mxu0 %v4141
    %4143 = vmatprep.subr.mxu0 0.0
    %v4144 = vand.u32 %v4106, 4294901760
    %4145 = vmatpush1.msra.mxu0 %v4144
    %4146 = vmatprep.subr.mxu0 0.0
    %v4147 = vand.u32 %v4107, 4294901760
    %4148 = vmatpush1.msra.mxu0 %v4147
    %4149 = vmatprep.subr.mxu0 0.0
    %v4150 = vand.u32 %v4108, 4294901760
    %4151 = vmatpush1.msra.mxu0 %v4150
    %4152 = vmatprep.subr.mxu0 0.0
    %v4153 = vand.u32 %v4109, 4294901760
    %4154 = vmatpush1.msra.mxu0 %v4153
    %4155 = vmatprep.subr.mxu0 0.0
    %v4156 = vand.u32 %v4110, 4294901760
    %4157 = vmatpush1.msra.mxu0 %v4156
    %4158 = vmatprep.subr.mxu0 0.0
    %v4159 = vand.u32 %v4111, 4294901760
    %4160 = vmatpush1.msra.mxu0 %v4159
    %4161 = vmatprep.subr.mxu0 0.0
    %v4162 = vand.u32 %v4112, 4294901760
    %4163 = vmatpush1.msra.mxu0 %v4162
    %4164 = vmatprep.subr.mxu0 0.0
    %v4165 = vand.u32 %v4113, 4294901760
    %4166 = vmatpush1.msra.mxu0 %v4165
    %4167 = vmatprep.subr.mxu0 0.0
    %v4168 = vand.u32 %v4114, 4294901760
    %4169 = vmatpush1.msra.mxu0 %v4168
    %4170 = vmatprep.subr.mxu0 0.0
    %4171 = vmatpush1.msra.mxu0 0.0
    %4172 = vmatprep.subr.mxu0 0.0
    %4173 = vmatpush1.msra.mxu0 0.0
    %4174 = vmatprep.subr.mxu0 0.0
    %4175 = vmatpush1.msra.mxu0 0.0
    %4176 = vmatprep.subr.mxu0 0.0
    %4177 = vmatpush1.msra.mxu0 0.0
    %4178 = vmatprep.subr.mxu0 0.0
    %4179 = vmatpush1.msra.mxu0 0.0
    %4180 = vmatprep.subr.mxu0 0.0
    %4181 = vmatpush1.msra.mxu0 0.0
    %4182 = vmatprep.subr.mxu0 0.0
    %4183 = vmatpush1.msra.mxu0 0.0
    %4184 = vmatprep.subr.mxu0 0.0
    %4185 = vmatpush1.msra.mxu0 0.0
    %4186 = vmatprep.subr.mxu0 0.0
    %4187 = vmatpush1.msra.mxu0 0.0
    %4188 = vmatprep.subr.mxu0 0.0
    %4189 = vmatpush1.msra.mxu0 0.0
    %4190 = vmatprep.subr.mxu0 0.0
    %4191 = vmatpush1.msra.mxu0 0.0
    %4192 = vmatprep.subr.mxu0 0.0
    %4193 = vmatpush1.msra.mxu0 0.0
    %4194 = vmatprep.subr.mxu0 0.0
    %4195 = vmatpush1.msra.mxu0 0.0
    %4196 = vmatprep.subr.mxu0 0.0
    %4197 = vmatpush1.msra.mxu0 0.0
    %4198 = vmatprep.subr.mxu0 0.0
    %4199 = vmatpush1.msra.mxu0 0.0
    %4200 = vmatprep.subr.mxu0 0.0
    %4201 = vmatpush1.msra.mxu0 0.0
    %4202 = vmatprep.mubr.f32.mxu0 0.0
    %v4203 = vand.u32 %v4097, 4294901760
    %v4204 = vsub.f32 %v4097, %v4203
    %v4205 = vand.u32 %v4204, 4294901760
    %v4206 = vsub.f32 %v4204, %v4205
    %v4207 = vand.u32 %v4206, 4294901760
    %4208 = vmatmul.mubr.f32.gmra.mrb[0].mxu0 %v4207
    %v4209 = vpop.f32.mrb[0].mxu0
    %v4210 = vadd.f32 %v4120, %v4209
    %v4211 = vpop.f32.mrb[0].mxu0
    %4212 = vmatprep.mubr.f32.mxu0 0.0
    %v4213 = vand.u32 %v4098, 4294901760
    %v4214 = vsub.f32 %v4098, %v4213
    %v4215 = vand.u32 %v4214, 4294901760
    %v4216 = vsub.f32 %v4214, %v4215
    %v4217 = vand.u32 %v4216, 4294901760
    %4218 = vmatmul.mubr.f32.gmra.mrb[0].mxu0 %v4217
    %v4219 = vpop.f32.mrb[0].mxu0
    %v4220 = vadd.f32 %v4120, %v4219
    %v4221 = vpop.f32.mrb[0].mxu0
    %4222 = vdwg.mxu0
    %4223 = vmatprep.subr.mxu0 0.0
    %v4224 = vand.u32 %v4099, 4294901760
    %v4225 = vsub.f32 %v4099, %v4224
    %v4226 = vand.u32 %v4225, 4294901760
    %v4227 = vsub.f32 %v4225, %v4226
    %v4228 = vand.u32 %v4227, 4294901760
    %4229 = vmatpush1.msra.mxu0 %v4228
    %4230 = vmatprep.subr.mxu0 0.0
    %v4231 = vand.u32 %v4100, 4294901760
    %v4232 = vsub.f32 %v4100, %v4231
    %v4233 = vand.u32 %v4232, 4294901760
    %v4234 = vsub.f32 %v4232, %v4233
    %v4235 = vand.u32 %v4234, 4294901760
    %4236 = vmatpush1.msra.mxu0 %v4235
    %4237 = vmatprep.subr.mxu0 0.0
    %v4238 = vand.u32 %v4101, 4294901760
    %v4239 = vsub.f32 %v4101, %v4238
    %v4240 = vand.u32 %v4239, 4294901760
    %v4241 = vsub.f32 %v4239, %v4240
    %v4242 = vand.u32 %v4241, 4294901760
    %4243 = vmatpush1.msra.mxu0 %v4242
    %4244 = vmatprep.subr.mxu0 0.0
    %v4245 = vand.u32 %v4102, 4294901760
    %v4246 = vsub.f32 %v4102, %v4245
    %v4247 = vand.u32 %v4246, 4294901760
    %v4248 = vsub.f32 %v4246, %v4247
    %v4249 = vand.u32 %v4248, 4294901760
    %4250 = vmatpush1.msra.mxu0 %v4249
    %4251 = vmatprep.subr.mxu0 0.0
    %v4252 = vand.u32 %v4103, 4294901760
    %v4253 = vsub.f32 %v4103, %v4252
    %v4254 = vand.u32 %v4253, 4294901760
    %v4255 = vsub.f32 %v4253, %v4254
    %v4256 = vand.u32 %v4255, 4294901760
    %4257 = vmatpush1.msra.mxu0 %v4256
    %4258 = vmatprep.subr.mxu0 0.0
    %v4259 = vand.u32 %v4104, 4294901760
    %v4260 = vsub.f32 %v4104, %v4259
    %v4261 = vand.u32 %v4260, 4294901760
    %v4262 = vsub.f32 %v4260, %v4261
    %v4263 = vand.u32 %v4262, 4294901760
    %4264 = vmatpush1.msra.mxu0 %v4263
    %4265 = vmatprep.subr.mxu0 0.0
    %v4266 = vand.u32 %v4105, 4294901760
    %v4267 = vsub.f32 %v4105, %v4266
    %v4268 = vand.u32 %v4267, 4294901760
    %v4269 = vsub.f32 %v4267, %v4268
    %v4270 = vand.u32 %v4269, 4294901760
    %4271 = vmatpush1.msra.mxu0 %v4270
    %4272 = vmatprep.subr.mxu0 0.0
    %v4273 = vand.u32 %v4106, 4294901760
    %v4274 = vsub.f32 %v4106, %v4273
    %v4275 = vand.u32 %v4274, 4294901760
    %v4276 = vsub.f32 %v4274, %v4275
    %v4277 = vand.u32 %v4276, 4294901760
    %4278 = vmatpush1.msra.mxu0 %v4277
    %4279 = vmatprep.subr.mxu0 0.0
    %v4280 = vand.u32 %v4107, 4294901760
    %v4281 = vsub.f32 %v4107, %v4280
    %v4282 = vand.u32 %v4281, 4294901760
    %v4283 = vsub.f32 %v4281, %v4282
    %v4284 = vand.u32 %v4283, 4294901760
    %4285 = vmatpush1.msra.mxu0 %v4284
    %4286 = vmatprep.subr.mxu0 0.0
    %v4287 = vand.u32 %v4108, 4294901760
    %v4288 = vsub.f32 %v4108, %v4287
    %v4289 = vand.u32 %v4288, 4294901760
    %v4290 = vsub.f32 %v4288, %v4289
    %v4291 = vand.u32 %v4290, 4294901760
    %4292 = vmatpush1.msra.mxu0 %v4291
    %4293 = vmatprep.subr.mxu0 0.0
    %v4294 = vand.u32 %v4109, 4294901760
    %v4295 = vsub.f32 %v4109, %v4294
    %v4296 = vand.u32 %v4295, 4294901760
    %v4297 = vsub.f32 %v4295, %v4296
    %v4298 = vand.u32 %v4297, 4294901760
    %4299 = vmatpush1.msra.mxu0 %v4298
    %4300 = vmatprep.subr.mxu0 0.0
    %v4301 = vand.u32 %v4110, 4294901760
    %v4302 = vsub.f32 %v4110, %v4301
    %v4303 = vand.u32 %v4302, 4294901760
    %v4304 = vsub.f32 %v4302, %v4303
    %v4305 = vand.u32 %v4304, 4294901760
    %4306 = vmatpush1.msra.mxu0 %v4305
    %4307 = vmatprep.subr.mxu0 0.0
    %v4308 = vand.u32 %v4111, 4294901760
    %v4309 = vsub.f32 %v4111, %v4308
    %v4310 = vand.u32 %v4309, 4294901760
    %v4311 = vsub.f32 %v4309, %v4310
    %v4312 = vand.u32 %v4311, 4294901760
    %4313 = vmatpush1.msra.mxu0 %v4312
    %4314 = vmatprep.subr.mxu0 0.0
    %v4315 = vand.u32 %v4112, 4294901760
    %v4316 = vsub.f32 %v4112, %v4315
    %v4317 = vand.u32 %v4316, 4294901760
    %v4318 = vsub.f32 %v4316, %v4317
    %v4319 = vand.u32 %v4318, 4294901760
    %4320 = vmatpush1.msra.mxu0 %v4319
    %4321 = vmatprep.subr.mxu0 0.0
    %v4322 = vand.u32 %v4113, 4294901760
    %v4323 = vsub.f32 %v4113, %v4322
    %v4324 = vand.u32 %v4323, 4294901760
    %v4325 = vsub.f32 %v4323, %v4324
    %v4326 = vand.u32 %v4325, 4294901760
    %4327 = vmatpush1.msra.mxu0 %v4326
    %4328 = vmatprep.subr.mxu0 0.0
    %v4329 = vand.u32 %v4114, 4294901760
    %v4330 = vsub.f32 %v4114, %v4329
    %v4331 = vand.u32 %v4330, 4294901760
    %v4332 = vsub.f32 %v4330, %v4331
    %v4333 = vand.u32 %v4332, 4294901760
    %4334 = vmatpush1.msra.mxu0 %v4333
    %4335 = vmatprep.subr.mxu0 0.0
    %4336 = vmatpush1.msra.mxu0 0.0
    %4337 = vmatprep.subr.mxu0 0.0
    %4338 = vmatpush1.msra.mxu0 0.0
    %4339 = vmatprep.subr.mxu0 0.0
    %4340 = vmatpush1.msra.mxu0 0.0
    %4341 = vmatprep.subr.mxu0 0.0
    %4342 = vmatpush1.msra.mxu0 0.0
    %4343 = vmatprep.subr.mxu0 0.0
    %4344 = vmatpush1.msra.mxu0 0.0
    %4345 = vmatprep.subr.mxu0 0.0
    %4346 = vmatpush1.msra.mxu0 0.0
    %4347 = vmatprep.subr.mxu0 0.0
    %4348 = vmatpush1.msra.mxu0 0.0
    %4349 = vmatprep.subr.mxu0 0.0
    %4350 = vmatpush1.msra.mxu0 0.0
    %4351 = vmatprep.subr.mxu0 0.0
    %4352 = vmatpush1.msra.mxu0 0.0
    %4353 = vmatprep.subr.mxu0 0.0
    %4354 = vmatpush1.msra.mxu0 0.0
    %4355 = vmatprep.subr.mxu0 0.0
    %4356 = vmatpush1.msra.mxu0 0.0
    %4357 = vmatprep.subr.mxu0 0.0
    %4358 = vmatpush1.msra.mxu0 0.0
    %4359 = vmatprep.subr.mxu0 0.0
    %4360 = vmatpush1.msra.mxu0 0.0
    %4361 = vmatprep.subr.mxu0 0.0
    %4362 = vmatpush1.msra.mxu0 0.0
    %4363 = vmatprep.subr.mxu0 0.0
    %4364 = vmatpush1.msra.mxu0 0.0
    %4365 = vmatprep.subr.mxu0 0.0
    %4366 = vmatpush1.msra.mxu0 0.0
    %4367 = vmatprep.mubr.f32.mxu0 0.0
    %v4368 = vand.u32 %v4097, 4294901760
    %4369 = vmatmul.mubr.f32.gmra.mrb[0].mxu0 %v4368
    %v4370 = vpop.f32.mrb[0].mxu0
    %v4371 = vadd.f32 %v4210, %v4370
    %v4372 = vpop.f32.mrb[0].mxu0
    %4373 = vmatprep.mubr.f32.mxu0 0.0
    %v4374 = vand.u32 %v4098, 4294901760
    %4375 = vmatmul.mubr.f32.gmra.mrb[0].mxu0 %v4374
    %v4376 = vpop.f32.mrb[0].mxu0
    %v4377 = vadd.f32 %v4220, %v4376
    %v4378 = vpop.f32.mrb[0].mxu0
    %4379 = vdwg.mxu0
    %4380 = vmatprep.subr.mxu0 0.0
    %v4381 = vand.u32 %v4099, 4294901760
    %v4382 = vsub.f32 %v4099, %v4381
    %4383 = vmatpush1.msra.mxu0 %v4382
    %4384 = vmatprep.subr.mxu0 0.0
    %v4385 = vand.u32 %v4100, 4294901760
    %v4386 = vsub.f32 %v4100, %v4385
    %4387 = vmatpush1.msra.mxu0 %v4386
    %4388 = vmatprep.subr.mxu0 0.0
    %v4389 = vand.u32 %v4101, 4294901760
    %v4390 = vsub.f32 %v4101, %v4389
    %4391 = vmatpush1.msra.mxu0 %v4390
    %4392 = vmatprep.subr.mxu0 0.0
    %v4393 = vand.u32 %v4102, 4294901760
    %v4394 = vsub.f32 %v4102, %v4393
    %4395 = vmatpush1.msra.mxu0 %v4394
    %4396 = vmatprep.subr.mxu0 0.0
    %v4397 = vand.u32 %v4103, 4294901760
    %v4398 = vsub.f32 %v4103, %v4397
    %4399 = vmatpush1.msra.mxu0 %v4398
    %4400 = vmatprep.subr.mxu0 0.0
    %v4401 = vand.u32 %v4104, 4294901760
    %v4402 = vsub.f32 %v4104, %v4401
    %4403 = vmatpush1.msra.mxu0 %v4402
    %4404 = vmatprep.subr.mxu0 0.0
    %v4405 = vand.u32 %v4105, 4294901760
    %v4406 = vsub.f32 %v4105, %v4405
    %4407 = vmatpush1.msra.mxu0 %v4406
    %4408 = vmatprep.subr.mxu0 0.0
    %v4409 = vand.u32 %v4106, 4294901760
    %v4410 = vsub.f32 %v4106, %v4409
    %4411 = vmatpush1.msra.mxu0 %v4410
    %4412 = vmatprep.subr.mxu0 0.0
    %v4413 = vand.u32 %v4107, 4294901760
    %v4414 = vsub.f32 %v4107, %v4413
    %4415 = vmatpush1.msra.mxu0 %v4414
    %4416 = vmatprep.subr.mxu0 0.0
    %v4417 = vand.u32 %v4108, 4294901760
    %v4418 = vsub.f32 %v4108, %v4417
    %4419 = vmatpush1.msra.mxu0 %v4418
    %4420 = vmatprep.subr.mxu0 0.0
    %v4421 = vand.u32 %v4109, 4294901760
    %v4422 = vsub.f32 %v4109, %v4421
    %4423 = vmatpush1.msra.mxu0 %v4422
    %4424 = vmatprep.subr.mxu0 0.0
    %v4425 = vand.u32 %v4110, 4294901760
    %v4426 = vsub.f32 %v4110, %v4425
    %4427 = vmatpush1.msra.mxu0 %v4426
    %4428 = vmatprep.subr.mxu0 0.0
    %v4429 = vand.u32 %v4111, 4294901760
    %v4430 = vsub.f32 %v4111, %v4429
    %4431 = vmatpush1.msra.mxu0 %v4430
    %4432 = vmatprep.subr.mxu0 0.0
    %v4433 = vand.u32 %v4112, 4294901760
    %v4434 = vsub.f32 %v4112, %v4433
    %4435 = vmatpush1.msra.mxu0 %v4434
    %4436 = vmatprep.subr.mxu0 0.0
    %v4437 = vand.u32 %v4113, 4294901760
    %v4438 = vsub.f32 %v4113, %v4437
    %4439 = vmatpush1.msra.mxu0 %v4438
    %4440 = vmatprep.subr.mxu0 0.0
    %v4441 = vand.u32 %v4114, 4294901760
    %v4442 = vsub.f32 %v4114, %v4441
    %4443 = vmatpush1.msra.mxu0 %v4442
    %4444 = vmatprep.subr.mxu0 0.0
    %4445 = vmatpush1.msra.mxu0 0.0
    %4446 = vmatprep.subr.mxu0 0.0
    %4447 = vmatpush1.msra.mxu0 0.0
    %4448 = vmatprep.subr.mxu0 0.0
    %4449 = vmatpush1.msra.mxu0 0.0
    %4450 = vmatprep.subr.mxu0 0.0
    %4451 = vmatpush1.msra.mxu0 0.0
    %4452 = vmatprep.subr.mxu0 0.0
    %4453 = vmatpush1.msra.mxu0 0.0
    %4454 = vmatprep.subr.mxu0 0.0
    %4455 = vmatpush1.msra.mxu0 0.0
    %4456 = vmatprep.subr.mxu0 0.0
    %4457 = vmatpush1.msra.mxu0 0.0
    %4458 = vmatprep.subr.mxu0 0.0
    %4459 = vmatpush1.msra.mxu0 0.0
    %4460 = vmatprep.subr.mxu0 0.0
    %4461 = vmatpush1.msra.mxu0 0.0
    %4462 = vmatprep.subr.mxu0 0.0
    %4463 = vmatpush1.msra.mxu0 0.0
    %4464 = vmatprep.subr.mxu0 0.0
    %4465 = vmatpush1.msra.mxu0 0.0
    %4466 = vmatprep.subr.mxu0 0.0
    %4467 = vmatpush1.msra.mxu0 0.0
    %4468 = vmatprep.subr.mxu0 0.0
    %4469 = vmatpush1.msra.mxu0 0.0
    %4470 = vmatprep.subr.mxu0 0.0
    %4471 = vmatpush1.msra.mxu0 0.0
    %4472 = vmatprep.subr.mxu0 0.0
    %4473 = vmatpush1.msra.mxu0 0.0
    %4474 = vmatprep.subr.mxu0 0.0
    %4475 = vmatpush1.msra.mxu0 0.0
    %4476 = vmatprep.mubr.f32.mxu0 0.0
    %v4477 = vand.u32 %v4097, 4294901760
    %v4478 = vsub.f32 %v4097, %v4477
    %4479 = vmatmul.mubr.f32.gmra.mrb[0].mxu0 %v4478
    %v4480 = vpop.f32.mrb[0].mxu0
    %v4481 = vadd.f32 %v4371, %v4480
    %v4482 = vpop.f32.mrb[0].mxu0
    %4483 = vmatprep.mubr.f32.mxu0 0.0
    %v4484 = vand.u32 %v4098, 4294901760
    %v4485 = vsub.f32 %v4098, %v4484
    %4486 = vmatmul.mubr.f32.gmra.mrb[0].mxu0 %v4485
    %v4487 = vpop.f32.mrb[0].mxu0
    %v4488 = vadd.f32 %v4377, %v4487
    %v4489 = vpop.f32.mrb[0].mxu0
    %4490 = vdwg.mxu0
    %4491 = vmatprep.subr.mxu0 0.0
    %v4492 = vand.u32 %v4099, 4294901760
    %4493 = vmatpush1.msra.mxu0 %v4492
    %4494 = vmatprep.subr.mxu0 0.0
    %v4495 = vand.u32 %v4100, 4294901760
    %4496 = vmatpush1.msra.mxu0 %v4495
    %4497 = vmatprep.subr.mxu0 0.0
    %v4498 = vand.u32 %v4101, 4294901760
    %4499 = vmatpush1.msra.mxu0 %v4498
    %4500 = vmatprep.subr.mxu0 0.0
    %v4501 = vand.u32 %v4102, 4294901760
    %4502 = vmatpush1.msra.mxu0 %v4501
    %4503 = vmatprep.subr.mxu0 0.0
    %v4504 = vand.u32 %v4103, 4294901760
    %4505 = vmatpush1.msra.mxu0 %v4504
    %4506 = vmatprep.subr.mxu0 0.0
    %v4507 = vand.u32 %v4104, 4294901760
    %4508 = vmatpush1.msra.mxu0 %v4507
    %4509 = vmatprep.subr.mxu0 0.0
    %v4510 = vand.u32 %v4105, 4294901760
    %4511 = vmatpush1.msra.mxu0 %v4510
    %4512 = vmatprep.subr.mxu0 0.0
    %v4513 = vand.u32 %v4106, 4294901760
    %4514 = vmatpush1.msra.mxu0 %v4513
    %4515 = vmatprep.subr.mxu0 0.0
    %v4516 = vand.u32 %v4107, 4294901760
    %4517 = vmatpush1.msra.mxu0 %v4516
    %4518 = vmatprep.subr.mxu0 0.0
    %v4519 = vand.u32 %v4108, 4294901760
    %4520 = vmatpush1.msra.mxu0 %v4519
    %4521 = vmatprep.subr.mxu0 0.0
    %v4522 = vand.u32 %v4109, 4294901760
    %4523 = vmatpush1.msra.mxu0 %v4522
    %4524 = vmatprep.subr.mxu0 0.0
    %v4525 = vand.u32 %v4110, 4294901760
    %4526 = vmatpush1.msra.mxu0 %v4525
    %4527 = vmatprep.subr.mxu0 0.0
    %v4528 = vand.u32 %v4111, 4294901760
    %4529 = vmatpush1.msra.mxu0 %v4528
    %4530 = vmatprep.subr.mxu0 0.0
    %v4531 = vand.u32 %v4112, 4294901760
    %4532 = vmatpush1.msra.mxu0 %v4531
    %4533 = vmatprep.subr.mxu0 0.0
    %v4534 = vand.u32 %v4113, 4294901760
    %4535 = vmatpush1.msra.mxu0 %v4534
    %4536 = vmatprep.subr.mxu0 0.0
    %v4537 = vand.u32 %v4114, 4294901760
    %4538 = vmatpush1.msra.mxu0 %v4537
    %4539 = vmatprep.subr.mxu0 0.0
    %4540 = vmatpush1.msra.mxu0 0.0
    %4541 = vmatprep.subr.mxu0 0.0
    %4542 = vmatpush1.msra.mxu0 0.0
    %4543 = vmatprep.subr.mxu0 0.0
    %4544 = vmatpush1.msra.mxu0 0.0
    %4545 = vmatprep.subr.mxu0 0.0
    %4546 = vmatpush1.msra.mxu0 0.0
    %4547 = vmatprep.subr.mxu0 0.0
    %4548 = vmatpush1.msra.mxu0 0.0
    %4549 = vmatprep.subr.mxu0 0.0
    %4550 = vmatpush1.msra.mxu0 0.0
    %4551 = vmatprep.subr.mxu0 0.0
    %4552 = vmatpush1.msra.mxu0 0.0
    %4553 = vmatprep.subr.mxu0 0.0
    %4554 = vmatpush1.msra.mxu0 0.0
    %4555 = vmatprep.subr.mxu0 0.0
    %4556 = vmatpush1.msra.mxu0 0.0
    %4557 = vmatprep.subr.mxu0 0.0
    %4558 = vmatpush1.msra.mxu0 0.0
    %4559 = vmatprep.subr.mxu0 0.0
    %4560 = vmatpush1.msra.mxu0 0.0
    %4561 = vmatprep.subr.mxu0 0.0
    %4562 = vmatpush1.msra.mxu0 0.0
    %4563 = vmatprep.subr.mxu0 0.0
    %4564 = vmatpush1.msra.mxu0 0.0
    %4565 = vmatprep.subr.mxu0 0.0
    %4566 = vmatpush1.msra.mxu0 0.0
    %4567 = vmatprep.subr.mxu0 0.0
    %4568 = vmatpush1.msra.mxu0 0.0
    %4569 = vmatprep.subr.mxu0 0.0
    %4570 = vmatpush1.msra.mxu0 0.0
    %4571 = vmatprep.mubr.f32.mxu0 0.0
    %v4572 = vand.u32 %v4097, 4294901760
    %v4573 = vsub.f32 %v4097, %v4572
    %v4574 = vand.u32 %v4573, 4294901760
    %4575 = vmatmul.mubr.f32.gmra.mrb[0].mxu0 %v4574
    %v4576 = vpop.f32.mrb[0].mxu0
    %v4577 = vadd.f32 %v4481, %v4576
    %v4578 = vpop.f32.mrb[0].mxu0
    %4579 = vmatprep.mubr.f32.mxu0 0.0
    %v4580 = vand.u32 %v4098, 4294901760
    %v4581 = vsub.f32 %v4098, %v4580
    %v4582 = vand.u32 %v4581, 4294901760
    %4583 = vmatmul.mubr.f32.gmra.mrb[0].mxu0 %v4582
    %v4584 = vpop.f32.mrb[0].mxu0
    %v4585 = vadd.f32 %v4488, %v4584
    %v4586 = vpop.f32.mrb[0].mxu0
    %4587 = vdwg.mxu0
    %4588 = vmatprep.subr.mxu0 0.0
    %v4589 = vand.u32 %v4099, 4294901760
    %v4590 = vsub.f32 %v4099, %v4589
    %v4591 = vand.u32 %v4590, 4294901760
    %4592 = vmatpush1.msra.mxu0 %v4591
    %4593 = vmatprep.subr.mxu0 0.0
    %v4594 = vand.u32 %v4100, 4294901760
    %v4595 = vsub.f32 %v4100, %v4594
    %v4596 = vand.u32 %v4595, 4294901760
    %4597 = vmatpush1.msra.mxu0 %v4596
    %4598 = vmatprep.subr.mxu0 0.0
    %v4599 = vand.u32 %v4101, 4294901760
    %v4600 = vsub.f32 %v4101, %v4599
    %v4601 = vand.u32 %v4600, 4294901760
    %4602 = vmatpush1.msra.mxu0 %v4601
    %4603 = vmatprep.subr.mxu0 0.0
    %v4604 = vand.u32 %v4102, 4294901760
    %v4605 = vsub.f32 %v4102, %v4604
    %v4606 = vand.u32 %v4605, 4294901760
    %4607 = vmatpush1.msra.mxu0 %v4606
    %4608 = vmatprep.subr.mxu0 0.0
    %v4609 = vand.u32 %v4103, 4294901760
    %v4610 = vsub.f32 %v4103, %v4609
    %v4611 = vand.u32 %v4610, 4294901760
    %4612 = vmatpush1.msra.mxu0 %v4611
    %4613 = vmatprep.subr.mxu0 0.0
    %v4614 = vand.u32 %v4104, 4294901760
    %v4615 = vsub.f32 %v4104, %v4614
    %v4616 = vand.u32 %v4615, 4294901760
    %4617 = vmatpush1.msra.mxu0 %v4616
    %4618 = vmatprep.subr.mxu0 0.0
    %v4619 = vand.u32 %v4105, 4294901760
    %v4620 = vsub.f32 %v4105, %v4619
    %v4621 = vand.u32 %v4620, 4294901760
    %4622 = vmatpush1.msra.mxu0 %v4621
    %4623 = vmatprep.subr.mxu0 0.0
    %v4624 = vand.u32 %v4106, 4294901760
    %v4625 = vsub.f32 %v4106, %v4624
    %v4626 = vand.u32 %v4625, 4294901760
    %4627 = vmatpush1.msra.mxu0 %v4626
    %4628 = vmatprep.subr.mxu0 0.0
    %v4629 = vand.u32 %v4107, 4294901760
    %v4630 = vsub.f32 %v4107, %v4629
    %v4631 = vand.u32 %v4630, 4294901760
    %4632 = vmatpush1.msra.mxu0 %v4631
    %4633 = vmatprep.subr.mxu0 0.0
    %v4634 = vand.u32 %v4108, 4294901760
    %v4635 = vsub.f32 %v4108, %v4634
    %v4636 = vand.u32 %v4635, 4294901760
    %4637 = vmatpush1.msra.mxu0 %v4636
    %4638 = vmatprep.subr.mxu0 0.0
    %v4639 = vand.u32 %v4109, 4294901760
    %v4640 = vsub.f32 %v4109, %v4639
    %v4641 = vand.u32 %v4640, 4294901760
    %4642 = vmatpush1.msra.mxu0 %v4641
    %4643 = vmatprep.subr.mxu0 0.0
    %v4644 = vand.u32 %v4110, 4294901760
    %v4645 = vsub.f32 %v4110, %v4644
    %v4646 = vand.u32 %v4645, 4294901760
    %4647 = vmatpush1.msra.mxu0 %v4646
    %4648 = vmatprep.subr.mxu0 0.0
    %v4649 = vand.u32 %v4111, 4294901760
    %v4650 = vsub.f32 %v4111, %v4649
    %v4651 = vand.u32 %v4650, 4294901760
    %4652 = vmatpush1.msra.mxu0 %v4651
    %4653 = vmatprep.subr.mxu0 0.0
    %v4654 = vand.u32 %v4112, 4294901760
    %v4655 = vsub.f32 %v4112, %v4654
    %v4656 = vand.u32 %v4655, 4294901760
    %4657 = vmatpush1.msra.mxu0 %v4656
    %4658 = vmatprep.subr.mxu0 0.0
    %v4659 = vand.u32 %v4113, 4294901760
    %v4660 = vsub.f32 %v4113, %v4659
    %v4661 = vand.u32 %v4660, 4294901760
    %4662 = vmatpush1.msra.mxu0 %v4661
    %4663 = vmatprep.subr.mxu0 0.0
    %v4664 = vand.u32 %v4114, 4294901760
    %v4665 = vsub.f32 %v4114, %v4664
    %v4666 = vand.u32 %v4665, 4294901760
    %4667 = vmatpush1.msra.mxu0 %v4666
    %4668 = vmatprep.subr.mxu0 0.0
    %4669 = vmatpush1.msra.mxu0 0.0
    %4670 = vmatprep.subr.mxu0 0.0
    %4671 = vmatpush1.msra.mxu0 0.0
    %4672 = vmatprep.subr.mxu0 0.0
    %4673 = vmatpush1.msra.mxu0 0.0
    %4674 = vmatprep.subr.mxu0 0.0
    %4675 = vmatpush1.msra.mxu0 0.0
    %4676 = vmatprep.subr.mxu0 0.0
    %4677 = vmatpush1.msra.mxu0 0.0
    %4678 = vmatprep.subr.mxu0 0.0
    %4679 = vmatpush1.msra.mxu0 0.0
    %4680 = vmatprep.subr.mxu0 0.0
    %4681 = vmatpush1.msra.mxu0 0.0
    %4682 = vmatprep.subr.mxu0 0.0
    %4683 = vmatpush1.msra.mxu0 0.0
    %4684 = vmatprep.subr.mxu0 0.0
    %4685 = vmatpush1.msra.mxu0 0.0
    %4686 = vmatprep.subr.mxu0 0.0
    %4687 = vmatpush1.msra.mxu0 0.0
    %4688 = vmatprep.subr.mxu0 0.0
    %4689 = vmatpush1.msra.mxu0 0.0
    %4690 = vmatprep.subr.mxu0 0.0
    %4691 = vmatpush1.msra.mxu0 0.0
    %4692 = vmatprep.subr.mxu0 0.0
    %4693 = vmatpush1.msra.mxu0 0.0
    %4694 = vmatprep.subr.mxu0 0.0
    %4695 = vmatpush1.msra.mxu0 0.0
    %4696 = vmatprep.subr.mxu0 0.0
    %4697 = vmatpush1.msra.mxu0 0.0
    %4698 = vmatprep.subr.mxu0 0.0
    %4699 = vmatpush1.msra.mxu0 0.0
    %4700 = vmatprep.mubr.f32.mxu0 0.0
    %v4701 = vand.u32 %v4097, 4294901760
    %4702 = vmatmul.mubr.f32.gmra.mrb[0].mxu0 %v4701
    %v4703 = vpop.f32.mrb[0].mxu0
    %v4704 = vadd.f32 %v4577, %v4703
    %v4705 = vpop.f32.mrb[0].mxu0
    %4706 = vmatprep.mubr.f32.mxu0 0.0
    %v4707 = vand.u32 %v4098, 4294901760
    %4708 = vmatmul.mubr.f32.gmra.mrb[0].mxu0 %v4707
    %v4709 = vpop.f32.mrb[0].mxu0
    %v4710 = vadd.f32 %v4585, %v4709
    %v4711 = vpop.f32.mrb[0].mxu0
    %4712 = vdwg.mxu0
    %4713 = vmatprep.subr.mxu0 0.0
    %v4714 = vand.u32 %v4099, 4294901760
    %4715 = vmatpush1.msra.mxu0 %v4714
    %4716 = vmatprep.subr.mxu0 0.0
    %v4717 = vand.u32 %v4100, 4294901760
    %4718 = vmatpush1.msra.mxu0 %v4717
    %4719 = vmatprep.subr.mxu0 0.0
    %v4720 = vand.u32 %v4101, 4294901760
    %4721 = vmatpush1.msra.mxu0 %v4720
    %4722 = vmatprep.subr.mxu0 0.0
    %v4723 = vand.u32 %v4102, 4294901760
    %4724 = vmatpush1.msra.mxu0 %v4723
    %4725 = vmatprep.subr.mxu0 0.0
    %v4726 = vand.u32 %v4103, 4294901760
    %4727 = vmatpush1.msra.mxu0 %v4726
    %4728 = vmatprep.subr.mxu0 0.0
    %v4729 = vand.u32 %v4104, 4294901760
    %4730 = vmatpush1.msra.mxu0 %v4729
    %4731 = vmatprep.subr.mxu0 0.0
    %v4732 = vand.u32 %v4105, 4294901760
    %4733 = vmatpush1.msra.mxu0 %v4732
    %4734 = vmatprep.subr.mxu0 0.0
    %v4735 = vand.u32 %v4106, 4294901760
    %4736 = vmatpush1.msra.mxu0 %v4735
    %4737 = vmatprep.subr.mxu0 0.0
    %v4738 = vand.u32 %v4107, 4294901760
    %4739 = vmatpush1.msra.mxu0 %v4738
    %4740 = vmatprep.subr.mxu0 0.0
    %v4741 = vand.u32 %v4108, 4294901760
    %4742 = vmatpush1.msra.mxu0 %v4741
    %4743 = vmatprep.subr.mxu0 0.0
    %v4744 = vand.u32 %v4109, 4294901760
    %4745 = vmatpush1.msra.mxu0 %v4744
    %4746 = vmatprep.subr.mxu0 0.0
    %v4747 = vand.u32 %v4110, 4294901760
    %4748 = vmatpush1.msra.mxu0 %v4747
    %4749 = vmatprep.subr.mxu0 0.0
    %v4750 = vand.u32 %v4111, 4294901760
    %4751 = vmatpush1.msra.mxu0 %v4750
    %4752 = vmatprep.subr.mxu0 0.0
    %v4753 = vand.u32 %v4112, 4294901760
    %4754 = vmatpush1.msra.mxu0 %v4753
    %4755 = vmatprep.subr.mxu0 0.0
    %v4756 = vand.u32 %v4113, 4294901760
    %4757 = vmatpush1.msra.mxu0 %v4756
    %4758 = vmatprep.subr.mxu0 0.0
    %v4759 = vand.u32 %v4114, 4294901760
    %4760 = vmatpush1.msra.mxu0 %v4759
    %4761 = vmatprep.subr.mxu0 0.0
    %4762 = vmatpush1.msra.mxu0 0.0
    %4763 = vmatprep.subr.mxu0 0.0
    %4764 = vmatpush1.msra.mxu0 0.0
    %4765 = vmatprep.subr.mxu0 0.0
    %4766 = vmatpush1.msra.mxu0 0.0
    %4767 = vmatprep.subr.mxu0 0.0
    %4768 = vmatpush1.msra.mxu0 0.0
    %4769 = vmatprep.subr.mxu0 0.0
    %4770 = vmatpush1.msra.mxu0 0.0
    %4771 = vmatprep.subr.mxu0 0.0
    %4772 = vmatpush1.msra.mxu0 0.0
    %4773 = vmatprep.subr.mxu0 0.0
    %4774 = vmatpush1.msra.mxu0 0.0
    %4775 = vmatprep.subr.mxu0 0.0
    %4776 = vmatpush1.msra.mxu0 0.0
    %4777 = vmatprep.subr.mxu0 0.0
    %4778 = vmatpush1.msra.mxu0 0.0
    %4779 = vmatprep.subr.mxu0 0.0
    %4780 = vmatpush1.msra.mxu0 0.0
    %4781 = vmatprep.subr.mxu0 0.0
    %4782 = vmatpush1.msra.mxu0 0.0
    %4783 = vmatprep.subr.mxu0 0.0
    %4784 = vmatpush1.msra.mxu0 0.0
    %4785 = vmatprep.subr.mxu0 0.0
    %4786 = vmatpush1.msra.mxu0 0.0
    %4787 = vmatprep.subr.mxu0 0.0
    %4788 = vmatpush1.msra.mxu0 0.0
    %4789 = vmatprep.subr.mxu0 0.0
    %4790 = vmatpush1.msra.mxu0 0.0
    %4791 = vmatprep.subr.mxu0 0.0
    %4792 = vmatpush1.msra.mxu0 0.0
    %4793 = vmatprep.mubr.f32.mxu0 0.0
    %v4794 = vand.u32 %v4097, 4294901760
    %4795 = vmatmul.mubr.f32.gmra.mrb[0].mxu0 %v4794
    %v4796 = vpop.f32.mrb[0].mxu0
    %v4797 = vadd.f32 %v4704, %v4796
    %v4798 = vpop.f32.mrb[0].mxu0
    %4799 = vmatprep.mubr.f32.mxu0 0.0
    %v4800 = vand.u32 %v4098, 4294901760
    %4801 = vmatmul.mubr.f32.gmra.mrb[0].mxu0 %v4800
    %v4802 = vpop.f32.mrb[0].mxu0
    %v4803 = vadd.f32 %v4710, %v4802
    %v4804 = vpop.f32.mrb[0].mxu0
    %4805 = vdwg.mxu0
    %4806 = vst.msk [vmem:[%s6] sm:$0xff] %vm47, %v4797
    %4807 = vst.msk [vmem:[%s6 + $0x8] sm:$0xff] %vm47, %v4803
    // Predicated region
    $region30: #{tpu_custom_call.1} parent=1 // pred_check
      _
    $region31: #{tpu_custom_call.1} parent=1 // pred_check_branch
      %4809 = sbr.rel (0) target = $region33
    $region32: #{tpu_custom_call.1} parent=1 // pred_region
      _
    $region33: #{tpu_custom_call.1} parent=1 // pred_fallthru
      _
    // Predicated region
    $region34: #{tpu_custom_call.1} parent=1 // pred_check
      _
    $region35: #{tpu_custom_call.1} parent=1 // pred_check_branch
      %4811 = sbr.rel (0) target = $region37
    $region36: #{tpu_custom_call.1} parent=1 // pred_region
      _
    $region37: #{tpu_custom_call.1} parent=1 // pred_fallthru
      _
    %4812 = vsyncpa [#allocation3], 1

</llo_original>
